<compile_context>
chip_gen: v7x
topology: tpu7x:2x2x1
jax: 0.10.0
libtpu: 0.0.40
codegen_flags: <defaults>
</compile_context>

<pallas_src>
import functools
import math

import jax
import jax.numpy as jnp
from jax.experimental import pallas as pl
from jax.experimental.pallas import tpu as pltpu


# --------------------------- tiling / VMEM helpers ---------------------------

def _pick_tile(dim, cap, base):
    """Largest multiple of `base` that divides `dim` and is <= cap.

    Guarantees exact tiling (no silently dropped remainder, e.g. 640 | 16000
    and 1280 | 32000 at the real layer widths where 512 does not divide)."""
    assert dim % base == 0, (dim, base)
    best = base
    t = base
    limit = min(dim, cap)
    while t <= limit:
        if dim % t == 0:
            best = t
        t += base
    return best


def _vmem_capacity_bytes():
    """Physical VMEM of the attached TPU (64 MiB v7x, 128 MiB v5e/v6e)."""
    try:
        return int(pltpu.get_tpu_info().vmem_capacity_bytes)
    except Exception:
        return 64 * 1024 * 1024          # conservative (v7x-sized) fallback


def _vmem_limit(est_bytes):
    cap = max(32 * 1024 * 1024, _vmem_capacity_bytes() // 2)
    return int(min(cap, max(2 * est_bytes, 16 * 1024 * 1024)))


# ------------------------ streaming (large-width) kernel ---------------------

def _linear_kernel(x_ref, w_ref, b_ref, o_ref, acc_ref, *, relu):
    """One (tm, tn) output tile of  y = act(x @ w + b),  K-tiled reduction."""
    k = pl.program_id(2)

    @pl.when(k == 0)
    def _init():
        acc_ref[...] = jnp.zeros_like(acc_ref)

    a = x_ref[...]
    if a.dtype != jnp.bfloat16:          # static; no-op when activations are bf16
        a = a.astype(jnp.bfloat16)
    acc_ref[...] += jnp.dot(a, w_ref[...], preferred_element_type=jnp.float32)

    @pl.when(k == pl.num_programs(2) - 1)
    def _finalize():
        y = acc_ref[...] + b_ref[...]    # bias added once per output tile
        if relu:
            y = jnp.maximum(y, 0.0)
        o_ref[...] = y.astype(o_ref.dtype)


def linear_pallas(x, w_bf16, b, *, relu, out_dtype=jnp.bfloat16,
                  tm_cap=256, tn_cap=2048, tk_cap=1024):
    """y = act(x @ w + b).  x:(M,K) bf16/f32, w:(K,N) bf16 pre-transposed, b:(1,N) f32."""
    M, K = x.shape
    Kw, N = w_bf16.shape
    assert K == Kw and b.shape == (1, N)
    assert M % 8 == 0 and K % 128 == 0 and N % 128 == 0, "caller must pad to (8,128)"

    tm = _pick_tile(M, tm_cap, 8)
    tk = _pick_tile(K, tk_cap, 128)
    tn = _pick_tile(N, tn_cap, 128)
    # v7x: make sure the "parallel" N axis has >= 2 blocks so both TensorCores
    # get output tiles (single-TC v5e/v6e are barely affected by the smaller tile).
    if N // tn == 1 and N >= 256:
        tn = _pick_tile(N, N // 2, 128)

    assert M % tm == 0 and N % tn == 0 and K % tk == 0
    grid = (M // tm, N // tn, K // tk)

    x_bytes = jnp.dtype(x.dtype).itemsize
    o_bytes = jnp.dtype(out_dtype).itemsize
    est = (2 * tm * tk * x_bytes         # activations (double-buffered)
           + 2 * tk * tn * 2             # bf16 weights (double-buffered)
           + 2 * tn * 4                  # bias
           + 2 * tm * tn * o_bytes       # output tile
           + tm * tn * 4)                # f32 accumulator

    kernel = functools.partial(_linear_kernel, relu=relu)
    return pl.pallas_call(
        kernel,
        out_shape=jax.ShapeDtypeStruct((M, N), out_dtype),
        grid_spec=pltpu.PrefetchScalarGridSpec(
            num_scalar_prefetch=0,
            grid=grid,
            in_specs=[
                pl.BlockSpec((tm, tk), lambda i, j, k: (i, k)),   # activations
                pl.BlockSpec((tk, tn), lambda i, j, k: (k, j)),   # weights (bf16)
                pl.BlockSpec((1, tn), lambda i, j, k: (0, j)),    # bias (f32)
            ],
            out_specs=pl.BlockSpec((tm, tn), lambda i, j, k: (i, j)),
            scratch_shapes=[pltpu.VMEM((tm, tn), jnp.float32)],
        ),
        compiler_params=pltpu.CompilerParams(
            dimension_semantics=("parallel", "parallel", "arbitrary"),
            vmem_limit_bytes=_vmem_limit(est),
        ),
    )(x, w_bf16, b)


# --------------------- fused (small-width, VMEM-resident) kernel -------------

def _fused_mlp_kernel(*refs, relus):
    """All layers in one body; weights/biases fully resident in VMEM."""
    n = len(relus)
    x_ref = refs[0]
    o_ref = refs[1 + 2 * n]
    h = x_ref[...]
    if h.dtype != jnp.bfloat16:
        h = h.astype(jnp.bfloat16)
    for i in range(n):
        w_ref = refs[1 + 2 * i]
        b_ref = refs[2 + 2 * i]
        y = jnp.dot(h, w_ref[...], preferred_element_type=jnp.float32) + b_ref[...]
        if relus[i]:
            y = jnp.maximum(y, 0.0)
        h = y.astype(jnp.bfloat16) if i + 1 < n else y
    o_ref[...] = h.astype(o_ref.dtype)


def fused_mlp_pallas(x, layers, *, out_dtype=jnp.float32, tm_cap=256):
    """layers: list of (w_bf16 (K,N), b_f32 (1,N), relu). Whole MLP in one call."""
    M, D0 = x.shape
    assert M % 8 == 0 and D0 == layers[0][0].shape[0]
    relus = tuple(bool(r) for _, _, r in layers)
    Dn = layers[-1][0].shape[1]

    tm = _pick_tile(M, tm_cap, 8)
    grid = (M // tm,)

    in_specs = [pl.BlockSpec((tm, D0), lambda i: (i, 0))]
    args = [x]
    resident_bytes = 0
    max_width = D0
    for w, bias, _ in layers:
        Kw, Nw = w.shape
        assert Kw % 128 == 0 and Nw % 128 == 0 and bias.shape == (1, Nw)
        in_specs.append(pl.BlockSpec((Kw, Nw), lambda i: (0, 0)))
        in_specs.append(pl.BlockSpec((1, Nw), lambda i: (0, 0)))
        args.extend([w, bias])
        resident_bytes += Kw * Nw * 2 + Nw * 4
        max_width = max(max_width, Nw)

    est = (2 * resident_bytes                                   # weights/biases (double-buffered)
           + 2 * tm * D0 * jnp.dtype(x.dtype).itemsize          # input tile
           + 2 * tm * Dn * jnp.dtype(out_dtype).itemsize        # output tile
           + 4 * tm * max_width * 4)                            # f32 intermediates headroom

    kernel = functools.partial(_fused_mlp_kernel, relus=relus)
    return pl.pallas_call(
        kernel,
        out_shape=jax.ShapeDtypeStruct((M, Dn), out_dtype),
        grid_spec=pltpu.PrefetchScalarGridSpec(
            num_scalar_prefetch=0,
            grid=grid,
            in_specs=in_specs,
            out_specs=pl.BlockSpec((tm, Dn), lambda i: (i, 0)),
        ),
        compiler_params=pltpu.CompilerParams(
            dimension_semantics=("parallel",),
            vmem_limit_bytes=_vmem_limit(est),
        ),
    )(*args)


# --------------------------- autoencoder forward -----------------------------

_LAYERS = (("enc1", True), ("enc2", True), ("enc3", False),   # encode: ReLU, ReLU, none
           ("dec1", True), ("dec2", True), ("dec3", False))   # decode: ReLU, ReLU, none

_FUSE_WEIGHT_BUDGET = 8 * 1024 * 1024   # total bf16 weight bytes that safely fit VMEM


def autoencoder_pallas(x, params, *, force_streaming=False):
    B = x.shape[0]
    h = x.reshape(B, -1).astype(jnp.bfloat16)     # x.view(B, -1); bf16 activations
    Mp = ((B + 7) // 8) * 8                       # pad rows to a sublane multiple
    if Mp != B:
        # Padded rows pick up bias garbage through the layers; this is safe because
        # every op is row-independent and the rows are sliced off before the reshape.
        h = jnp.pad(h, ((0, Mp - B), (0, 0)))

    layers = [(params[n + "_w"], params[n + "_b"], r) for n, r in _LAYERS]
    weight_bytes = sum(int(w.size) * w.dtype.itemsize for w, _, _ in layers)

    if (not force_streaming) and weight_bytes <= _FUSE_WEIGHT_BUDGET:
        # Smoke-test widths: one fused call, weights resident, no activation HBM trips.
        h = fused_mlp_pallas(h, layers, out_dtype=jnp.float32)
    else:
        # Real widths (65536/32000/16000/...): stream weights layer by layer.
        for idx, (w, bias, r) in enumerate(layers):
            last = idx == len(layers) - 1
            h = linear_pallas(h, w, bias, relu=r,
                              out_dtype=jnp.float32 if last else jnp.bfloat16)
    h = h[:B]
    return h.reshape(B, 64, -1)                   # decoded.view(B, 64, D/64)


# ------------------------------ reference ------------------------------------

def autoencoder_ref(x, params):
    # Plain-JAX reference with the same mixed-precision policy as the kernels
    # (bf16 matmul operands & inter-layer activations, f32 accumulation/bias/ReLU).
    B = x.shape[0]
    h = x.reshape(B, -1).astype(jnp.bfloat16)
    n = len(_LAYERS)
    for idx, (name, relu) in enumerate(_LAYERS):
        y = jnp.dot(h, params[name + "_w"], preferred_element_type=jnp.float32)
        y = y + params[name + "_b"]
        if relu:
            y = jnp.maximum(y, 0.0)
        h = y.astype(jnp.bfloat16) if idx + 1 < n else y
    return h.reshape(B, 64, -1)


def init_params(key, dims):
    # Deterministic synthetic weights mirroring nn.Linear init scale.
    # Stored already transposed ((in, out)) vs PyTorch's (out, in), bf16 on HBM.
    names = [n for n, _ in _LAYERS]
    keys = jax.random.split(key, 2 * len(names))
    params = {}
    for i, name in enumerate(names):
        fan_in, fan_out = dims[i], dims[i + 1]
        bound = 1.0 / math.sqrt(fan_in)
        w = jax.random.uniform(keys[2 * i], (fan_in, fan_out), jnp.float32, -bound, bound)
        b = jax.random.uniform(keys[2 * i + 1], (1, fan_out), jnp.float32, -bound, bound)
        params[name + "_w"] = w.astype(jnp.bfloat16)
        params[name + "_b"] = b
    return params


# --------------------------------- main --------------------------------------

if __name__ == "__main__":
    # Small stand-in widths for 64*1024 -> 32000 -> 16000 -> 1024 -> ... -> 64*1024
    # (all multiples of 128 so every tile is lane-dense).
    B, S, Cin = 8, 64, 16                        # x: (B, 64, 16) -> flattened D0 = 1024
    dims = (S * Cin, 512, 256, 128, 256, 512, S * Cin)

    key = jax.random.PRNGKey(0)
    kx, kp = jax.random.split(key)
    x = jax.random.normal(kx, (B, S, Cin), jnp.float32)
    params = init_params(kp, dims)

    ref = autoencoder_ref(x, params)

    # Fused path (what these smoke-test widths actually use).
    out_fused = jax.block_until_ready(autoencoder_pallas(x, params))
    assert out_fused.shape == (B, S, Cin)

    # Streaming path (what the real 65536/32000/16000 widths would use).
    out_stream = jax.block_until_ready(
        autoencoder_pallas(x, params, force_streaming=True))
    assert out_stream.shape == (B, S, Cin)

    for tag, out in (("fused", out_fused), ("streaming", out_stream)):
        err = float(jnp.max(jnp.abs(out - ref)))
        if not jnp.allclose(out, ref, atol=1e-2, rtol=1e-2):
            raise AssertionError(f"{tag} Pallas/ref mismatch, max abs err = {err:e}")
    print("KERNEL_OK")
</pallas_src>

<mosaic_0001>
module attributes {stable_mosaic.version = 11 : i64} {
  func.func @_fused_mlp_kernel(%arg0: i32, %arg1: memref<8x1024xbf16, #tpu.memory_space<vmem>>, %arg2: memref<1024x512xbf16, #tpu.memory_space<vmem>>, %arg3: memref<1x512xf32, #tpu.memory_space<vmem>>, %arg4: memref<512x256xbf16, #tpu.memory_space<vmem>>, %arg5: memref<1x256xf32, #tpu.memory_space<vmem>>, %arg6: memref<256x128xbf16, #tpu.memory_space<vmem>>, %arg7: memref<1x128xf32, #tpu.memory_space<vmem>>, %arg8: memref<128x256xbf16, #tpu.memory_space<vmem>>, %arg9: memref<1x256xf32, #tpu.memory_space<vmem>>, %arg10: memref<256x512xbf16, #tpu.memory_space<vmem>>, %arg11: memref<1x512xf32, #tpu.memory_space<vmem>>, %arg12: memref<512x1024xbf16, #tpu.memory_space<vmem>>, %arg13: memref<1x1024xf32, #tpu.memory_space<vmem>>, %arg14: memref<8x1024xf32, #tpu.memory_space<vmem>>) attributes {dimension_semantics = [#tpu.dimension_semantics<parallel>], iteration_bounds = array<i64: 1>, scalar_prefetch = 0 : i64, scratch_operands = 0 : i64, tpu.core_type = #tpu.core_type<tc>, window_params = [{transform_indices = @transform_0, window_bounds = array<i64: 8, 1024>}, {pipeline_mode = #tpu.pipeline_mode<synchronous>, transform_indices = @transform_1, window_bounds = array<i64: 1024, 512>}, {pipeline_mode = #tpu.pipeline_mode<synchronous>, transform_indices = @transform_2, window_bounds = array<i64: 1, 512>}, {pipeline_mode = #tpu.pipeline_mode<synchronous>, transform_indices = @transform_3, window_bounds = array<i64: 512, 256>}, {pipeline_mode = #tpu.pipeline_mode<synchronous>, transform_indices = @transform_4, window_bounds = array<i64: 1, 256>}, {pipeline_mode = #tpu.pipeline_mode<synchronous>, transform_indices = @transform_5, window_bounds = array<i64: 256, 128>}, {pipeline_mode = #tpu.pipeline_mode<synchronous>, transform_indices = @transform_6, window_bounds = array<i64: 1, 128>}, {pipeline_mode = #tpu.pipeline_mode<synchronous>, transform_indices = @transform_7, window_bounds = array<i64: 128, 256>}, {pipeline_mode = #tpu.pipeline_mode<synchronous>, transform_indices = @transform_8, window_bounds = array<i64: 1, 256>}, {pipeline_mode = #tpu.pipeline_mode<synchronous>, transform_indices = @transform_9, window_bounds = array<i64: 256, 512>}, {pipeline_mode = #tpu.pipeline_mode<synchronous>, transform_indices = @transform_10, window_bounds = array<i64: 1, 512>}, {pipeline_mode = #tpu.pipeline_mode<synchronous>, transform_indices = @transform_11, window_bounds = array<i64: 512, 1024>}, {pipeline_mode = #tpu.pipeline_mode<synchronous>, transform_indices = @transform_12, window_bounds = array<i64: 1, 1024>}, {transform_indices = @transform_13, window_bounds = array<i64: 8, 1024>}]} {
    %c0 = arith.constant 0 : index
    %c0_0 = arith.constant 0 : index
    %0 = vector.load %arg1[%c0, %c0_0] : memref<8x1024xbf16, #tpu.memory_space<vmem>>, vector<8x1024xbf16>
    %c0_1 = arith.constant 0 : index
    %c0_2 = arith.constant 0 : index
    %1 = vector.load %arg2[%c0_1, %c0_2] : memref<1024x512xbf16, #tpu.memory_space<vmem>>, vector<1024x512xbf16>
    %cst = arith.constant dense<0.000000e+00> : vector<8x512xf32>
    %2 = tpu.matmul %0, %1, %cst {dimension_numbers = #tpu.dot_dimension_numbers<[1], [0], [0], [1], [0, 0, 1, 1], [], []>} : vector<8x1024xbf16>, vector<1024x512xbf16>, vector<8x512xf32> -> vector<8x512xf32>
    %c0_3 = arith.constant 0 : index
    %c0_4 = arith.constant 0 : index
    %3 = vector.load %arg3[%c0_3, %c0_4] : memref<1x512xf32, #tpu.memory_space<vmem>>, vector<1x512xf32>
    %4 = vector.broadcast %3 : vector<1x512xf32> to vector<8x512xf32>
    %5 = arith.addf %2, %4 : vector<8x512xf32>
    %cst_5 = arith.constant 0.000000e+00 : f32
    %6 = vector.broadcast %cst_5 : f32 to vector<8x512xf32>
    %7 = arith.maximumf %5, %6 : vector<8x512xf32>
    %8 = arith.truncf %7 : vector<8x512xf32> to vector<8x512xbf16>
    %c0_6 = arith.constant 0 : index
    %c0_7 = arith.constant 0 : index
    %9 = vector.load %arg4[%c0_6, %c0_7] : memref<512x256xbf16, #tpu.memory_space<vmem>>, vector<512x256xbf16>
    %cst_8 = arith.constant dense<0.000000e+00> : vector<8x256xf32>
    %10 = tpu.matmul %8, %9, %cst_8 {dimension_numbers = #tpu.dot_dimension_numbers<[1], [0], [0], [1], [0, 0, 1, 1], [], []>} : vector<8x512xbf16>, vector<512x256xbf16>, vector<8x256xf32> -> vector<8x256xf32>
    %c0_9 = arith.constant 0 : index
    %c0_10 = arith.constant 0 : index
    %11 = vector.load %arg5[%c0_9, %c0_10] : memref<1x256xf32, #tpu.memory_space<vmem>>, vector<1x256xf32>
    %12 = vector.broadcast %11 : vector<1x256xf32> to vector<8x256xf32>
    %13 = arith.addf %10, %12 : vector<8x256xf32>
    %cst_11 = arith.constant 0.000000e+00 : f32
    %14 = vector.broadcast %cst_11 : f32 to vector<8x256xf32>
    %15 = arith.maximumf %13, %14 : vector<8x256xf32>
    %16 = arith.truncf %15 : vector<8x256xf32> to vector<8x256xbf16>
    %c0_12 = arith.constant 0 : index
    %c0_13 = arith.constant 0 : index
    %17 = vector.load %arg6[%c0_12, %c0_13] : memref<256x128xbf16, #tpu.memory_space<vmem>>, vector<256x128xbf16>
    %cst_14 = arith.constant dense<0.000000e+00> : vector<8x128xf32>
    %18 = tpu.matmul %16, %17, %cst_14 {dimension_numbers = #tpu.dot_dimension_numbers<[1], [0], [0], [1], [0, 0, 1, 1], [], []>} : vector<8x256xbf16>, vector<256x128xbf16>, vector<8x128xf32> -> vector<8x128xf32>
    %c0_15 = arith.constant 0 : index
    %c0_16 = arith.constant 0 : index
    %19 = vector.load %arg7[%c0_15, %c0_16] : memref<1x128xf32, #tpu.memory_space<vmem>>, vector<1x128xf32>
    %20 = vector.broadcast %19 : vector<1x128xf32> to vector<8x128xf32>
    %21 = arith.addf %18, %20 : vector<8x128xf32>
    %22 = arith.truncf %21 : vector<8x128xf32> to vector<8x128xbf16>
    %c0_17 = arith.constant 0 : index
    %c0_18 = arith.constant 0 : index
    %23 = vector.load %arg8[%c0_17, %c0_18] : memref<128x256xbf16, #tpu.memory_space<vmem>>, vector<128x256xbf16>
    %cst_19 = arith.constant dense<0.000000e+00> : vector<8x256xf32>
    %24 = tpu.matmul %22, %23, %cst_19 {dimension_numbers = #tpu.dot_dimension_numbers<[1], [0], [0], [1], [0, 0, 1, 1], [], []>} : vector<8x128xbf16>, vector<128x256xbf16>, vector<8x256xf32> -> vector<8x256xf32>
    %c0_20 = arith.constant 0 : index
    %c0_21 = arith.constant 0 : index
    %25 = vector.load %arg9[%c0_20, %c0_21] : memref<1x256xf32, #tpu.memory_space<vmem>>, vector<1x256xf32>
    %26 = vector.broadcast %25 : vector<1x256xf32> to vector<8x256xf32>
    %27 = arith.addf %24, %26 : vector<8x256xf32>
    %cst_22 = arith.constant 0.000000e+00 : f32
    %28 = vector.broadcast %cst_22 : f32 to vector<8x256xf32>
    %29 = arith.maximumf %27, %28 : vector<8x256xf32>
    %30 = arith.truncf %29 : vector<8x256xf32> to vector<8x256xbf16>
    %c0_23 = arith.constant 0 : index
    %c0_24 = arith.constant 0 : index
    %31 = vector.load %arg10[%c0_23, %c0_24] : memref<256x512xbf16, #tpu.memory_space<vmem>>, vector<256x512xbf16>
    %cst_25 = arith.constant dense<0.000000e+00> : vector<8x512xf32>
    %32 = tpu.matmul %30, %31, %cst_25 {dimension_numbers = #tpu.dot_dimension_numbers<[1], [0], [0], [1], [0, 0, 1, 1], [], []>} : vector<8x256xbf16>, vector<256x512xbf16>, vector<8x512xf32> -> vector<8x512xf32>
    %c0_26 = arith.constant 0 : index
    %c0_27 = arith.constant 0 : index
    %33 = vector.load %arg11[%c0_26, %c0_27] : memref<1x512xf32, #tpu.memory_space<vmem>>, vector<1x512xf32>
    %34 = vector.broadcast %33 : vector<1x512xf32> to vector<8x512xf32>
    %35 = arith.addf %32, %34 : vector<8x512xf32>
    %cst_28 = arith.constant 0.000000e+00 : f32
    %36 = vector.broadcast %cst_28 : f32 to vector<8x512xf32>
    %37 = arith.maximumf %35, %36 : vector<8x512xf32>
    %38 = arith.truncf %37 : vector<8x512xf32> to vector<8x512xbf16>
    %c0_29 = arith.constant 0 : index
    %c0_30 = arith.constant 0 : index
    %39 = vector.load %arg12[%c0_29, %c0_30] : memref<512x1024xbf16, #tpu.memory_space<vmem>>, vector<512x1024xbf16>
    %cst_31 = arith.constant dense<0.000000e+00> : vector<8x1024xf32>
    %40 = tpu.matmul %38, %39, %cst_31 {dimension_numbers = #tpu.dot_dimension_numbers<[1], [0], [0], [1], [0, 0, 1, 1], [], []>} : vector<8x512xbf16>, vector<512x1024xbf16>, vector<8x1024xf32> -> vector<8x1024xf32>
    %c0_32 = arith.constant 0 : index
    %c0_33 = arith.constant 0 : index
    %41 = vector.load %arg13[%c0_32, %c0_33] : memref<1x1024xf32, #tpu.memory_space<vmem>>, vector<1x1024xf32>
    %42 = vector.broadcast %41 : vector<1x1024xf32> to vector<8x1024xf32>
    %43 = arith.addf %40, %42 : vector<8x1024xf32>
    %c0_34 = arith.constant 0 : index
    %c0_35 = arith.constant 0 : index
    %44 = vector.load %arg14[%c0_34, %c0_35] : memref<8x1024xf32, #tpu.memory_space<vmem>>, vector<8x1024xf32>
    tpu.vector_store %arg14[%c0_34, %c0_35], %43 {strides = array<i32>} : memref<8x1024xf32, #tpu.memory_space<vmem>>, vector<8x1024xf32>,
    return
  }
  func.func @transform_0(%arg0: i32) -> (i32, i32) {
    %c0_i32 = arith.constant 0 : i32
    %c0_i32_0 = arith.constant 0 : i32
    return %arg0, %c0_i32 : i32, i32
  }
  func.func @transform_1(%arg0: i32) -> (i32, i32) {
    %c0_i32 = arith.constant 0 : i32
    %c0_i32_0 = arith.constant 0 : i32
    %c0_i32_1 = arith.constant 0 : i32
    return %c0_i32, %c0_i32_0 : i32, i32
  }
  func.func @transform_2(%arg0: i32) -> (i32, i32) {
    %c0_i32 = arith.constant 0 : i32
    %c0_i32_0 = arith.constant 0 : i32
    %c0_i32_1 = arith.constant 0 : i32
    return %c0_i32, %c0_i32_0 : i32, i32
  }
  func.func @transform_3(%arg0: i32) -> (i32, i32) {
    %c0_i32 = arith.constant 0 : i32
    %c0_i32_0 = arith.constant 0 : i32
    %c0_i32_1 = arith.constant 0 : i32
    return %c0_i32, %c0_i32_0 : i32, i32
  }
  func.func @transform_4(%arg0: i32) -> (i32, i32) {
    %c0_i32 = arith.constant 0 : i32
    %c0_i32_0 = arith.constant 0 : i32
    %c0_i32_1 = arith.constant 0 : i32
    return %c0_i32, %c0_i32_0 : i32, i32
  }
  func.func @transform_5(%arg0: i32) -> (i32, i32) {
    %c0_i32 = arith.constant 0 : i32
    %c0_i32_0 = arith.constant 0 : i32
    %c0_i32_1 = arith.constant 0 : i32
    return %c0_i32, %c0_i32_0 : i32, i32
  }
  func.func @transform_6(%arg0: i32) -> (i32, i32) {
    %c0_i32 = arith.constant 0 : i32
    %c0_i32_0 = arith.constant 0 : i32
    %c0_i32_1 = arith.constant 0 : i32
    return %c0_i32, %c0_i32_0 : i32, i32
  }
  func.func @transform_7(%arg0: i32) -> (i32, i32) {
    %c0_i32 = arith.constant 0 : i32
    %c0_i32_0 = arith.constant 0 : i32
    %c0_i32_1 = arith.constant 0 : i32
    return %c0_i32, %c0_i32_0 : i32, i32
  }
  func.func @transform_8(%arg0: i32) -> (i32, i32) {
    %c0_i32 = arith.constant 0 : i32
    %c0_i32_0 = arith.constant 0 : i32
    %c0_i32_1 = arith.constant 0 : i32
    return %c0_i32, %c0_i32_0 : i32, i32
  }
  func.func @transform_9(%arg0: i32) -> (i32, i32) {
    %c0_i32 = arith.constant 0 : i32
    %c0_i32_0 = arith.constant 0 : i32
    %c0_i32_1 = arith.constant 0 : i32
    return %c0_i32, %c0_i32_0 : i32, i32
  }
  func.func @transform_10(%arg0: i32) -> (i32, i32) {
    %c0_i32 = arith.constant 0 : i32
    %c0_i32_0 = arith.constant 0 : i32
    %c0_i32_1 = arith.constant 0 : i32
    return %c0_i32, %c0_i32_0 : i32, i32
  }
  func.func @transform_11(%arg0: i32) -> (i32, i32) {
    %c0_i32 = arith.constant 0 : i32
    %c0_i32_0 = arith.constant 0 : i32
    %c0_i32_1 = arith.constant 0 : i32
    return %c0_i32, %c0_i32_0 : i32, i32
  }
  func.func @transform_12(%arg0: i32) -> (i32, i32) {
    %c0_i32 = arith.constant 0 : i32
    %c0_i32_0 = arith.constant 0 : i32
    %c0_i32_1 = arith.constant 0 : i32
    return %c0_i32, %c0_i32_0 : i32, i32
  }
  func.func @transform_13(%arg0: i32) -> (i32, i32) {
    %c0_i32 = arith.constant 0 : i32
    %c0_i32_0 = arith.constant 0 : i32
    return %arg0, %c0_i32 : i32, i32
  }
}

</mosaic_0001>

<llo_original>
// kernel: tpu_custom_call.1
$region0: #{tpu_custom_call.1}
  #allocation0 [shape = 'u32[]', space=smem, size = 0x4, offset = 0x4, fixed_abs, tag = 'smem constant byte address 0x4 - core index']
  #allocation1 [shape = 'u32[144,128]{1,0:T(1,128)}', space=vmem, size = 0x12000, scoped, tag = 'internal scratch']
  %s0 = inlined_call_operand.hbm [shape: bf16[8,1024], index: 0, kind: input, shape index: {}]
  %s1 = inlined_call_operand.hbm [shape: bf16[1024,512], index: 1, kind: input, shape index: {}]
  %s2 = inlined_call_operand.vmem [shape: f32[1,512], index: 2, kind: input, shape index: {}]
  %s3 = inlined_call_operand.hbm [shape: bf16[512,256], index: 3, kind: input, shape index: {}]
  %s4 = inlined_call_operand.vmem [shape: f32[1,256], index: 4, kind: input, shape index: {}]
  %s5 = inlined_call_operand.hbm [shape: bf16[256,128], index: 5, kind: input, shape index: {}]
  %s6 = inlined_call_operand.vmem [shape: f32[1,128], index: 6, kind: input, shape index: {}]
  %s7 = inlined_call_operand.hbm [shape: bf16[128,256], index: 7, kind: input, shape index: {}]
  %s8 = inlined_call_operand.vmem [shape: f32[1,256], index: 8, kind: input, shape index: {}]
  %s9 = inlined_call_operand.hbm [shape: bf16[256,512], index: 9, kind: input, shape index: {}]
  %s10 = inlined_call_operand.vmem [shape: f32[1,512], index: 10, kind: input, shape index: {}]
  %s11 = inlined_call_operand.hbm [shape: bf16[512,1024], index: 11, kind: input, shape index: {}]
  %s12 = inlined_call_operand.vmem [shape: f32[1,1024], index: 12, kind: input, shape index: {}]
  %s13 = inlined_call_operand.hbm [shape: f32[8,1024], index: 13, kind: output, shape index: {}]
  %s14 = sld [smem:[#allocation0]]
  $region90: #{tpu_custom_call.1} parent=0
    _
  %s16 = ssub.s32 1, %s14
  %s17 = scalar_select 0, %s16, %s14
  $region1: #{tpu_custom_call.1} parent=0
    #allocation2 [shape = 'u8[16384]{0}', space=vmem, size = 0x4000, scoped, tag = 'input window, operand 0, single buffered']
    #allocation3 [shape = 's32[1]{0}', space=sflag, size = 0x4, scoped, tag = 'scoped memory for tpu_custom_call.1']
    #allocation4 [shape = 's32[1]{0}', space=sflag, size = 0x4, scoped, tag = 'scoped memory for tpu_custom_call.1']
    #allocation5 [shape = 'u8[1048576]{0}', space=vmem, size = 0x100000, scoped, tag = 'input window, operand 1, single buffered']
    #allocation6 [shape = 's32[1]{0}', space=sflag, size = 0x4, scoped, tag = 'scoped memory for tpu_custom_call.1']
    #allocation7 [shape = 'u8[262144]{0}', space=vmem, size = 0x40000, scoped, tag = 'input window, operand 3, single buffered']
    #allocation8 [shape = 'u8[65536]{0}', space=vmem, size = 0x10000, scoped, tag = 'input window, operand 5, single buffered']
    #allocation9 [shape = 's32[1]{0}', space=sflag, size = 0x4, scoped, tag = 'scoped memory for tpu_custom_call.1']
    #allocation10 [shape = 'u8[65536]{0}', space=vmem, size = 0x10000, scoped, tag = 'input window, operand 7, single buffered']
    #allocation11 [shape = 'u8[262144]{0}', space=vmem, size = 0x40000, scoped, tag = 'input window, operand 9, single buffered']
    #allocation12 [shape = 's32[1]{0}', space=sflag, size = 0x4, scoped, tag = 'scoped memory for tpu_custom_call.1']
    #allocation13 [shape = 'u8[1048576]{0}', space=vmem, size = 0x100000, scoped, tag = 'input window, operand 11, single buffered']
    #allocation14 [shape = 'u8[32768]{0}', space=vmem, size = 0x8000, scoped, tag = 'output window, operand 0, single buffered']
    %18 = vsyncpa [#allocation3], 0
    %19 = vsyncpa [#allocation6], 0
    %20 = vsyncpa [#allocation9], 0
    %21 = vsyncpa [#allocation12], 0
    %22 = vsyncpa [#allocation4], 0
    // Predicated region
    $region2: #{tpu_custom_call.1} parent=1 // pred_check
      _
    $region3: #{tpu_custom_call.1} parent=1 // pred_check_branch
      %24 = sbr.rel (0) target = $region5
    $region4: #{tpu_custom_call.1} parent=1 // pred_region
      %s26 = ssub.s32 512, 512
      %27 = vsyncadd [#allocation3], %s26
      %s29 = sshll.u32 [#allocation2], 4
      %s30 = int_to_ptr.vmem [resolvable:$true] %s29
      %32 = dma.hbm_to_vmem [thread:$0]  %s0, 512, %s30, [#allocation3]
    $region5: #{tpu_custom_call.1} parent=1 // pred_fallthru
      _
    // Predicated region
    $region6: #{tpu_custom_call.1} parent=1 // pred_check
      _
    $region7: #{tpu_custom_call.1} parent=1 // pred_check_branch
      %34 = sbr.rel (0) target = $region9
    $region8: #{tpu_custom_call.1} parent=1 // pred_region
      %s36 = ssub.s32 32768, 32768
      %37 = vsyncadd [#allocation6], %s36
      %s38 = sshll.u32 [#allocation5], 4
      %s39 = int_to_ptr.vmem [resolvable:$true] %s38
      %44 = dma.hbm_to_vmem [thread:$0]  %s1, 32768, %s39, [#allocation6], 256, 256, 16
    $region9: #{tpu_custom_call.1} parent=1 // pred_fallthru
      _
    // Predicated region
    $region10: #{tpu_custom_call.1} parent=1 // pred_check
      _
    $region11: #{tpu_custom_call.1} parent=1 // pred_check_branch
      %46 = sbr.rel (0) target = $region13
    $region12: #{tpu_custom_call.1} parent=1 // pred_region
      _
    $region13: #{tpu_custom_call.1} parent=1 // pred_fallthru
      _
    // Predicated region
    $region14: #{tpu_custom_call.1} parent=1 // pred_check
      _
    $region15: #{tpu_custom_call.1} parent=1 // pred_check_branch
      %48 = sbr.rel (0) target = $region17
    $region16: #{tpu_custom_call.1} parent=1 // pred_region
      %s50 = ssub.s32 8192, 8192
      %51 = vsyncadd [#allocation6], %s50
      %s52 = sshll.u32 [#allocation7], 4
      %s53 = int_to_ptr.vmem [resolvable:$true] %s52
      %58 = dma.hbm_to_vmem [thread:$0]  %s3, 8192, %s53, [#allocation6], 128, 128, 8
    $region17: #{tpu_custom_call.1} parent=1 // pred_fallthru
      _
    // Predicated region
    $region18: #{tpu_custom_call.1} parent=1 // pred_check
      _
    $region19: #{tpu_custom_call.1} parent=1 // pred_check_branch
      %60 = sbr.rel (0) target = $region21
    $region20: #{tpu_custom_call.1} parent=1 // pred_region
      _
    $region21: #{tpu_custom_call.1} parent=1 // pred_fallthru
      _
    // Predicated region
    $region22: #{tpu_custom_call.1} parent=1 // pred_check
      _
    $region23: #{tpu_custom_call.1} parent=1 // pred_check_branch
      %62 = sbr.rel (0) target = $region25
    $region24: #{tpu_custom_call.1} parent=1 // pred_region
      %s64 = ssub.s32 2048, 2048
      %65 = vsyncadd [#allocation9], %s64
      %s66 = sshll.u32 [#allocation8], 4
      %s67 = int_to_ptr.vmem [resolvable:$true] %s66
      %72 = dma.hbm_to_vmem [thread:$0]  %s5, 2048, %s67, [#allocation9], 64, 64, 4
    $region25: #{tpu_custom_call.1} parent=1 // pred_fallthru
      _
    // Predicated region
    $region26: #{tpu_custom_call.1} parent=1 // pred_check
      _
    $region27: #{tpu_custom_call.1} parent=1 // pred_check_branch
      %74 = sbr.rel (0) target = $region29
    $region28: #{tpu_custom_call.1} parent=1 // pred_region
      _
    $region29: #{tpu_custom_call.1} parent=1 // pred_fallthru
      _
    // Predicated region
    $region30: #{tpu_custom_call.1} parent=1 // pred_check
      _
    $region31: #{tpu_custom_call.1} parent=1 // pred_check_branch
      %76 = sbr.rel (0) target = $region33
    $region32: #{tpu_custom_call.1} parent=1 // pred_region
      %s78 = ssub.s32 2048, 2048
      %79 = vsyncadd [#allocation9], %s78
      %s80 = sshll.u32 [#allocation10], 4
      %s81 = int_to_ptr.vmem [resolvable:$true] %s80
      %86 = dma.hbm_to_vmem [thread:$0]  %s7, 2048, %s81, [#allocation9], 128, 128, 8
    $region33: #{tpu_custom_call.1} parent=1 // pred_fallthru
      _
    // Predicated region
    $region34: #{tpu_custom_call.1} parent=1 // pred_check
      _
    $region35: #{tpu_custom_call.1} parent=1 // pred_check_branch
      %88 = sbr.rel (0) target = $region37
    $region36: #{tpu_custom_call.1} parent=1 // pred_region
      _
    $region37: #{tpu_custom_call.1} parent=1 // pred_fallthru
      _
    // Predicated region
    $region38: #{tpu_custom_call.1} parent=1 // pred_check
      _
    $region39: #{tpu_custom_call.1} parent=1 // pred_check_branch
      %90 = sbr.rel (0) target = $region41
    $region40: #{tpu_custom_call.1} parent=1 // pred_region
      %s92 = ssub.s32 8192, 8192
      %93 = vsyncadd [#allocation12], %s92
      %s94 = sshll.u32 [#allocation11], 4
      %s95 = int_to_ptr.vmem [resolvable:$true] %s94
      %100 = dma.hbm_to_vmem [thread:$0]  %s9, 8192, %s95, [#allocation12], 256, 256, 16
    $region41: #{tpu_custom_call.1} parent=1 // pred_fallthru
      _
    // Predicated region
    $region42: #{tpu_custom_call.1} parent=1 // pred_check
      _
    $region43: #{tpu_custom_call.1} parent=1 // pred_check_branch
      %102 = sbr.rel (0) target = $region45
    $region44: #{tpu_custom_call.1} parent=1 // pred_region
      _
    $region45: #{tpu_custom_call.1} parent=1 // pred_fallthru
      _
    // Predicated region
    $region46: #{tpu_custom_call.1} parent=1 // pred_check
      _
    $region47: #{tpu_custom_call.1} parent=1 // pred_check_branch
      %104 = sbr.rel (0) target = $region49
    $region48: #{tpu_custom_call.1} parent=1 // pred_region
      %s106 = ssub.s32 32768, 32768
      %107 = vsyncadd [#allocation12], %s106
      %s108 = sshll.u32 [#allocation13], 4
      %s109 = int_to_ptr.vmem [resolvable:$true] %s108
      %114 = dma.hbm_to_vmem [thread:$0]  %s11, 32768, %s109, [#allocation12], 512, 512, 32
    $region49: #{tpu_custom_call.1} parent=1 // pred_fallthru
      _
    // Predicated region
    $region50: #{tpu_custom_call.1} parent=1 // pred_check
      _
    $region51: #{tpu_custom_call.1} parent=1 // pred_check_branch
      %116 = sbr.rel (0) target = $region53
    $region52: #{tpu_custom_call.1} parent=1 // pred_region
      _
    $region53: #{tpu_custom_call.1} parent=1 // pred_fallthru
      _
    // Predicated region
    $region54: #{tpu_custom_call.1} parent=1 // pred_check
      _
    $region55: #{tpu_custom_call.1} parent=1 // pred_check_branch
      %118 = sbr.rel (0) target = $region57
    $region56: #{tpu_custom_call.1} parent=1 // pred_region
      %119 = dma.done [#allocation3], 512
    $region57: #{tpu_custom_call.1} parent=1 // pred_fallthru
      _
    // Predicated region
    $region58: #{tpu_custom_call.1} parent=1 // pred_check
      _
    $region59: #{tpu_custom_call.1} parent=1 // pred_check_branch
      %121 = sbr.rel (0) target = $region61
    $region60: #{tpu_custom_call.1} parent=1 // pred_region
      %122 = dma.done [#allocation6], 32768
    $region61: #{tpu_custom_call.1} parent=1 // pred_fallthru
      _
    // Predicated region
    $region62: #{tpu_custom_call.1} parent=1 // pred_check
      _
    $region63: #{tpu_custom_call.1} parent=1 // pred_check_branch
      %124 = sbr.rel (0) target = $region65
    $region64: #{tpu_custom_call.1} parent=1 // pred_region
      %125 = dma.done [#allocation6], 8192
    $region65: #{tpu_custom_call.1} parent=1 // pred_fallthru
      _
    // Predicated region
    $region66: #{tpu_custom_call.1} parent=1 // pred_check
      _
    $region67: #{tpu_custom_call.1} parent=1 // pred_check_branch
      %127 = sbr.rel (0) target = $region69
    $region68: #{tpu_custom_call.1} parent=1 // pred_region
      %128 = dma.done [#allocation9], 2048
    $region69: #{tpu_custom_call.1} parent=1 // pred_fallthru
      _
    // Predicated region
    $region70: #{tpu_custom_call.1} parent=1 // pred_check
      _
    $region71: #{tpu_custom_call.1} parent=1 // pred_check_branch
      %130 = sbr.rel (0) target = $region73
    $region72: #{tpu_custom_call.1} parent=1 // pred_region
      %131 = dma.done [#allocation9], 2048
    $region73: #{tpu_custom_call.1} parent=1 // pred_fallthru
      _
    // Predicated region
    $region74: #{tpu_custom_call.1} parent=1 // pred_check
      _
    $region75: #{tpu_custom_call.1} parent=1 // pred_check_branch
      %133 = sbr.rel (0) target = $region77
    $region76: #{tpu_custom_call.1} parent=1 // pred_region
      %134 = dma.done [#allocation12], 8192
    $region77: #{tpu_custom_call.1} parent=1 // pred_fallthru
      _
    // Predicated region
    $region78: #{tpu_custom_call.1} parent=1 // pred_check
      _
    $region79: #{tpu_custom_call.1} parent=1 // pred_check_branch
      %136 = sbr.rel (0) target = $region81
    $region80: #{tpu_custom_call.1} parent=1 // pred_region
      %137 = dma.done [#allocation12], 32768
    $region81: #{tpu_custom_call.1} parent=1 // pred_fallthru
      _
    %v139 = vld [vmem:[#allocation2] sm:$0xff]
    %v140 = vld [vmem:[#allocation2 + $0x8] sm:$0xff]
    %v141 = vld [vmem:[#allocation2 + $0x10] sm:$0xff]
    %v142 = vld [vmem:[#allocation2 + $0x18] sm:$0xff]
    %v143 = vld [vmem:[#allocation5] sm:$0xff]
    %v144 = vld [vmem:[#allocation5 + $0x8] sm:$0xff]
    %v145 = vld [vmem:[#allocation5 + $0x10] sm:$0xff]
    %v146 = vld [vmem:[#allocation5 + $0x18] sm:$0xff]
    %v147 = vld [vmem:[#allocation5 + $0x20] sm:$0xff]
    %v148 = vld [vmem:[#allocation5 + $0x28] sm:$0xff]
    %v149 = vld [vmem:[#allocation5 + $0x30] sm:$0xff]
    %v150 = vld [vmem:[#allocation5 + $0x38] sm:$0xff]
    %v151 = vld [vmem:[#allocation5 + $0x40] sm:$0xff]
    %v152 = vld [vmem:[#allocation5 + $0x48] sm:$0xff]
    %v153 = vld [vmem:[#allocation5 + $0x50] sm:$0xff]
    %v154 = vld [vmem:[#allocation5 + $0x58] sm:$0xff]
    %v155 = vld [vmem:[#allocation5 + $0x60] sm:$0xff]
    %v156 = vld [vmem:[#allocation5 + $0x68] sm:$0xff]
    %v157 = vld [vmem:[#allocation5 + $0x70] sm:$0xff]
    %v158 = vld [vmem:[#allocation5 + $0x78] sm:$0xff]
    %v159 = vld [vmem:[#allocation5 + $0x80] sm:$0xff]
    %v160 = vld [vmem:[#allocation5 + $0x88] sm:$0xff]
    %v161 = vld [vmem:[#allocation5 + $0x90] sm:$0xff]
    %v162 = vld [vmem:[#allocation5 + $0x98] sm:$0xff]
    %v163 = vld [vmem:[#allocation5 + $0xa0] sm:$0xff]
    %v164 = vld [vmem:[#allocation5 + $0xa8] sm:$0xff]
    %v165 = vld [vmem:[#allocation5 + $0xb0] sm:$0xff]
    %v166 = vld [vmem:[#allocation5 + $0xb8] sm:$0xff]
    %v167 = vld [vmem:[#allocation5 + $0xc0] sm:$0xff]
    %v168 = vld [vmem:[#allocation5 + $0xc8] sm:$0xff]
    %v169 = vld [vmem:[#allocation5 + $0xd0] sm:$0xff]
    %v170 = vld [vmem:[#allocation5 + $0xd8] sm:$0xff]
    %v171 = vld [vmem:[#allocation5 + $0xe0] sm:$0xff]
    %v172 = vld [vmem:[#allocation5 + $0xe8] sm:$0xff]
    %v173 = vld [vmem:[#allocation5 + $0xf0] sm:$0xff]
    %v174 = vld [vmem:[#allocation5 + $0xf8] sm:$0xff]
    %v175 = vld [vmem:[#allocation5 + $0x100] sm:$0xff]
    %v176 = vld [vmem:[#allocation5 + $0x108] sm:$0xff]
    %v177 = vld [vmem:[#allocation5 + $0x110] sm:$0xff]
    %v178 = vld [vmem:[#allocation5 + $0x118] sm:$0xff]
    %v179 = vld [vmem:[#allocation5 + $0x120] sm:$0xff]
    %v180 = vld [vmem:[#allocation5 + $0x128] sm:$0xff]
    %v181 = vld [vmem:[#allocation5 + $0x130] sm:$0xff]
    %v182 = vld [vmem:[#allocation5 + $0x138] sm:$0xff]
    %v183 = vld [vmem:[#allocation5 + $0x140] sm:$0xff]
    %v184 = vld [vmem:[#allocation5 + $0x148] sm:$0xff]
    %v185 = vld [vmem:[#allocation5 + $0x150] sm:$0xff]
    %v186 = vld [vmem:[#allocation5 + $0x158] sm:$0xff]
    %v187 = vld [vmem:[#allocation5 + $0x160] sm:$0xff]
    %v188 = vld [vmem:[#allocation5 + $0x168] sm:$0xff]
    %v189 = vld [vmem:[#allocation5 + $0x170] sm:$0xff]
    %v190 = vld [vmem:[#allocation5 + $0x178] sm:$0xff]
    %v191 = vld [vmem:[#allocation5 + $0x180] sm:$0xff]
    %v192 = vld [vmem:[#allocation5 + $0x188] sm:$0xff]
    %v193 = vld [vmem:[#allocation5 + $0x190] sm:$0xff]
    %v194 = vld [vmem:[#allocation5 + $0x198] sm:$0xff]
    %v195 = vld [vmem:[#allocation5 + $0x1a0] sm:$0xff]
    %v196 = vld [vmem:[#allocation5 + $0x1a8] sm:$0xff]
    %v197 = vld [vmem:[#allocation5 + $0x1b0] sm:$0xff]
    %v198 = vld [vmem:[#allocation5 + $0x1b8] sm:$0xff]
    %v199 = vld [vmem:[#allocation5 + $0x1c0] sm:$0xff]
    %v200 = vld [vmem:[#allocation5 + $0x1c8] sm:$0xff]
    %v201 = vld [vmem:[#allocation5 + $0x1d0] sm:$0xff]
    %v202 = vld [vmem:[#allocation5 + $0x1d8] sm:$0xff]
    %v203 = vld [vmem:[#allocation5 + $0x1e0] sm:$0xff]
    %v204 = vld [vmem:[#allocation5 + $0x1e8] sm:$0xff]
    %v205 = vld [vmem:[#allocation5 + $0x1f0] sm:$0xff]
    %v206 = vld [vmem:[#allocation5 + $0x1f8] sm:$0xff]
    %v207 = vld [vmem:[#allocation5 + $0x200] sm:$0xff]
    %v208 = vld [vmem:[#allocation5 + $0x208] sm:$0xff]
    %v209 = vld [vmem:[#allocation5 + $0x210] sm:$0xff]
    %v210 = vld [vmem:[#allocation5 + $0x218] sm:$0xff]
    %v211 = vld [vmem:[#allocation5 + $0x220] sm:$0xff]
    %v212 = vld [vmem:[#allocation5 + $0x228] sm:$0xff]
    %v213 = vld [vmem:[#allocation5 + $0x230] sm:$0xff]
    %v214 = vld [vmem:[#allocation5 + $0x238] sm:$0xff]
    %v215 = vld [vmem:[#allocation5 + $0x240] sm:$0xff]
    %v216 = vld [vmem:[#allocation5 + $0x248] sm:$0xff]
    %v217 = vld [vmem:[#allocation5 + $0x250] sm:$0xff]
    %v218 = vld [vmem:[#allocation5 + $0x258] sm:$0xff]
    %v219 = vld [vmem:[#allocation5 + $0x260] sm:$0xff]
    %v220 = vld [vmem:[#allocation5 + $0x268] sm:$0xff]
    %v221 = vld [vmem:[#allocation5 + $0x270] sm:$0xff]
    %v222 = vld [vmem:[#allocation5 + $0x278] sm:$0xff]
    %v223 = vld [vmem:[#allocation5 + $0x280] sm:$0xff]
    %v224 = vld [vmem:[#allocation5 + $0x288] sm:$0xff]
    %v225 = vld [vmem:[#allocation5 + $0x290] sm:$0xff]
    %v226 = vld [vmem:[#allocation5 + $0x298] sm:$0xff]
    %v227 = vld [vmem:[#allocation5 + $0x2a0] sm:$0xff]
    %v228 = vld [vmem:[#allocation5 + $0x2a8] sm:$0xff]
    %v229 = vld [vmem:[#allocation5 + $0x2b0] sm:$0xff]
    %v230 = vld [vmem:[#allocation5 + $0x2b8] sm:$0xff]
    %v231 = vld [vmem:[#allocation5 + $0x2c0] sm:$0xff]
    %v232 = vld [vmem:[#allocation5 + $0x2c8] sm:$0xff]
    %v233 = vld [vmem:[#allocation5 + $0x2d0] sm:$0xff]
    %v234 = vld [vmem:[#allocation5 + $0x2d8] sm:$0xff]
    %v235 = vld [vmem:[#allocation5 + $0x2e0] sm:$0xff]
    %v236 = vld [vmem:[#allocation5 + $0x2e8] sm:$0xff]
    %v237 = vld [vmem:[#allocation5 + $0x2f0] sm:$0xff]
    %v238 = vld [vmem:[#allocation5 + $0x2f8] sm:$0xff]
    %v239 = vld [vmem:[#allocation5 + $0x300] sm:$0xff]
    %v240 = vld [vmem:[#allocation5 + $0x308] sm:$0xff]
    %v241 = vld [vmem:[#allocation5 + $0x310] sm:$0xff]
    %v242 = vld [vmem:[#allocation5 + $0x318] sm:$0xff]
    %v243 = vld [vmem:[#allocation5 + $0x320] sm:$0xff]
    %v244 = vld [vmem:[#allocation5 + $0x328] sm:$0xff]
    %v245 = vld [vmem:[#allocation5 + $0x330] sm:$0xff]
    %v246 = vld [vmem:[#allocation5 + $0x338] sm:$0xff]
    %v247 = vld [vmem:[#allocation5 + $0x340] sm:$0xff]
    %v248 = vld [vmem:[#allocation5 + $0x348] sm:$0xff]
    %v249 = vld [vmem:[#allocation5 + $0x350] sm:$0xff]
    %v250 = vld [vmem:[#allocation5 + $0x358] sm:$0xff]
    %v251 = vld [vmem:[#allocation5 + $0x360] sm:$0xff]
    %v252 = vld [vmem:[#allocation5 + $0x368] sm:$0xff]
    %v253 = vld [vmem:[#allocation5 + $0x370] sm:$0xff]
    %v254 = vld [vmem:[#allocation5 + $0x378] sm:$0xff]
    %v255 = vld [vmem:[#allocation5 + $0x380] sm:$0xff]
    %v256 = vld [vmem:[#allocation5 + $0x388] sm:$0xff]
    %v257 = vld [vmem:[#allocation5 + $0x390] sm:$0xff]
    %v258 = vld [vmem:[#allocation5 + $0x398] sm:$0xff]
    %v259 = vld [vmem:[#allocation5 + $0x3a0] sm:$0xff]
    %v260 = vld [vmem:[#allocation5 + $0x3a8] sm:$0xff]
    %v261 = vld [vmem:[#allocation5 + $0x3b0] sm:$0xff]
    %v262 = vld [vmem:[#allocation5 + $0x3b8] sm:$0xff]
    %v263 = vld [vmem:[#allocation5 + $0x3c0] sm:$0xff]
    %v264 = vld [vmem:[#allocation5 + $0x3c8] sm:$0xff]
    %v265 = vld [vmem:[#allocation5 + $0x3d0] sm:$0xff]
    %v266 = vld [vmem:[#allocation5 + $0x3d8] sm:$0xff]
    %v267 = vld [vmem:[#allocation5 + $0x3e0] sm:$0xff]
    %v268 = vld [vmem:[#allocation5 + $0x3e8] sm:$0xff]
    %v269 = vld [vmem:[#allocation5 + $0x3f0] sm:$0xff]
    %v270 = vld [vmem:[#allocation5 + $0x3f8] sm:$0xff]
    %v271 = vld [vmem:[#allocation5 + $0x400] sm:$0xff]
    %v272 = vld [vmem:[#allocation5 + $0x408] sm:$0xff]
    %v273 = vld [vmem:[#allocation5 + $0x410] sm:$0xff]
    %v274 = vld [vmem:[#allocation5 + $0x418] sm:$0xff]
    %v275 = vld [vmem:[#allocation5 + $0x420] sm:$0xff]
    %v276 = vld [vmem:[#allocation5 + $0x428] sm:$0xff]
    %v277 = vld [vmem:[#allocation5 + $0x430] sm:$0xff]
    %v278 = vld [vmem:[#allocation5 + $0x438] sm:$0xff]
    %v279 = vld [vmem:[#allocation5 + $0x440] sm:$0xff]
    %v280 = vld [vmem:[#allocation5 + $0x448] sm:$0xff]
    %v281 = vld [vmem:[#allocation5 + $0x450] sm:$0xff]
    %v282 = vld [vmem:[#allocation5 + $0x458] sm:$0xff]
    %v283 = vld [vmem:[#allocation5 + $0x460] sm:$0xff]
    %v284 = vld [vmem:[#allocation5 + $0x468] sm:$0xff]
    %v285 = vld [vmem:[#allocation5 + $0x470] sm:$0xff]
    %v286 = vld [vmem:[#allocation5 + $0x478] sm:$0xff]
    %v287 = vld [vmem:[#allocation5 + $0x480] sm:$0xff]
    %v288 = vld [vmem:[#allocation5 + $0x488] sm:$0xff]
    %v289 = vld [vmem:[#allocation5 + $0x490] sm:$0xff]
    %v290 = vld [vmem:[#allocation5 + $0x498] sm:$0xff]
    %v291 = vld [vmem:[#allocation5 + $0x4a0] sm:$0xff]
    %v292 = vld [vmem:[#allocation5 + $0x4a8] sm:$0xff]
    %v293 = vld [vmem:[#allocation5 + $0x4b0] sm:$0xff]
    %v294 = vld [vmem:[#allocation5 + $0x4b8] sm:$0xff]
    %v295 = vld [vmem:[#allocation5 + $0x4c0] sm:$0xff]
    %v296 = vld [vmem:[#allocation5 + $0x4c8] sm:$0xff]
    %v297 = vld [vmem:[#allocation5 + $0x4d0] sm:$0xff]
    %v298 = vld [vmem:[#allocation5 + $0x4d8] sm:$0xff]
    %v299 = vld [vmem:[#allocation5 + $0x4e0] sm:$0xff]
    %v300 = vld [vmem:[#allocation5 + $0x4e8] sm:$0xff]
    %v301 = vld [vmem:[#allocation5 + $0x4f0] sm:$0xff]
    %v302 = vld [vmem:[#allocation5 + $0x4f8] sm:$0xff]
    %v303 = vld [vmem:[#allocation5 + $0x500] sm:$0xff]
    %v304 = vld [vmem:[#allocation5 + $0x508] sm:$0xff]
    %v305 = vld [vmem:[#allocation5 + $0x510] sm:$0xff]
    %v306 = vld [vmem:[#allocation5 + $0x518] sm:$0xff]
    %v307 = vld [vmem:[#allocation5 + $0x520] sm:$0xff]
    %v308 = vld [vmem:[#allocation5 + $0x528] sm:$0xff]
    %v309 = vld [vmem:[#allocation5 + $0x530] sm:$0xff]
    %v310 = vld [vmem:[#allocation5 + $0x538] sm:$0xff]
    %v311 = vld [vmem:[#allocation5 + $0x540] sm:$0xff]
    %v312 = vld [vmem:[#allocation5 + $0x548] sm:$0xff]
    %v313 = vld [vmem:[#allocation5 + $0x550] sm:$0xff]
    %v314 = vld [vmem:[#allocation5 + $0x558] sm:$0xff]
    %v315 = vld [vmem:[#allocation5 + $0x560] sm:$0xff]
    %v316 = vld [vmem:[#allocation5 + $0x568] sm:$0xff]
    %v317 = vld [vmem:[#allocation5 + $0x570] sm:$0xff]
    %v318 = vld [vmem:[#allocation5 + $0x578] sm:$0xff]
    %v319 = vld [vmem:[#allocation5 + $0x580] sm:$0xff]
    %v320 = vld [vmem:[#allocation5 + $0x588] sm:$0xff]
    %v321 = vld [vmem:[#allocation5 + $0x590] sm:$0xff]
    %v322 = vld [vmem:[#allocation5 + $0x598] sm:$0xff]
    %v323 = vld [vmem:[#allocation5 + $0x5a0] sm:$0xff]
    %v324 = vld [vmem:[#allocation5 + $0x5a8] sm:$0xff]
    %v325 = vld [vmem:[#allocation5 + $0x5b0] sm:$0xff]
    %v326 = vld [vmem:[#allocation5 + $0x5b8] sm:$0xff]
    %v327 = vld [vmem:[#allocation5 + $0x5c0] sm:$0xff]
    %v328 = vld [vmem:[#allocation5 + $0x5c8] sm:$0xff]
    %v329 = vld [vmem:[#allocation5 + $0x5d0] sm:$0xff]
    %v330 = vld [vmem:[#allocation5 + $0x5d8] sm:$0xff]
    %v331 = vld [vmem:[#allocation5 + $0x5e0] sm:$0xff]
    %v332 = vld [vmem:[#allocation5 + $0x5e8] sm:$0xff]
    %v333 = vld [vmem:[#allocation5 + $0x5f0] sm:$0xff]
    %v334 = vld [vmem:[#allocation5 + $0x5f8] sm:$0xff]
    %v335 = vld [vmem:[#allocation5 + $0x600] sm:$0xff]
    %v336 = vld [vmem:[#allocation5 + $0x608] sm:$0xff]
    %v337 = vld [vmem:[#allocation5 + $0x610] sm:$0xff]
    %v338 = vld [vmem:[#allocation5 + $0x618] sm:$0xff]
    %v339 = vld [vmem:[#allocation5 + $0x620] sm:$0xff]
    %v340 = vld [vmem:[#allocation5 + $0x628] sm:$0xff]
    %v341 = vld [vmem:[#allocation5 + $0x630] sm:$0xff]
    %v342 = vld [vmem:[#allocation5 + $0x638] sm:$0xff]
    %v343 = vld [vmem:[#allocation5 + $0x640] sm:$0xff]
    %v344 = vld [vmem:[#allocation5 + $0x648] sm:$0xff]
    %v345 = vld [vmem:[#allocation5 + $0x650] sm:$0xff]
    %v346 = vld [vmem:[#allocation5 + $0x658] sm:$0xff]
    %v347 = vld [vmem:[#allocation5 + $0x660] sm:$0xff]
    %v348 = vld [vmem:[#allocation5 + $0x668] sm:$0xff]
    %v349 = vld [vmem:[#allocation5 + $0x670] sm:$0xff]
    %v350 = vld [vmem:[#allocation5 + $0x678] sm:$0xff]
    %v351 = vld [vmem:[#allocation5 + $0x680] sm:$0xff]
    %v352 = vld [vmem:[#allocation5 + $0x688] sm:$0xff]
    %v353 = vld [vmem:[#allocation5 + $0x690] sm:$0xff]
    %v354 = vld [vmem:[#allocation5 + $0x698] sm:$0xff]
    %v355 = vld [vmem:[#allocation5 + $0x6a0] sm:$0xff]
    %v356 = vld [vmem:[#allocation5 + $0x6a8] sm:$0xff]
    %v357 = vld [vmem:[#allocation5 + $0x6b0] sm:$0xff]
    %v358 = vld [vmem:[#allocation5 + $0x6b8] sm:$0xff]
    %v359 = vld [vmem:[#allocation5 + $0x6c0] sm:$0xff]
    %v360 = vld [vmem:[#allocation5 + $0x6c8] sm:$0xff]
    %v361 = vld [vmem:[#allocation5 + $0x6d0] sm:$0xff]
    %v362 = vld [vmem:[#allocation5 + $0x6d8] sm:$0xff]
    %v363 = vld [vmem:[#allocation5 + $0x6e0] sm:$0xff]
    %v364 = vld [vmem:[#allocation5 + $0x6e8] sm:$0xff]
    %v365 = vld [vmem:[#allocation5 + $0x6f0] sm:$0xff]
    %v366 = vld [vmem:[#allocation5 + $0x6f8] sm:$0xff]
    %v367 = vld [vmem:[#allocation5 + $0x700] sm:$0xff]
    %v368 = vld [vmem:[#allocation5 + $0x708] sm:$0xff]
    %v369 = vld [vmem:[#allocation5 + $0x710] sm:$0xff]
    %v370 = vld [vmem:[#allocation5 + $0x718] sm:$0xff]
    %v371 = vld [vmem:[#allocation5 + $0x720] sm:$0xff]
    %v372 = vld [vmem:[#allocation5 + $0x728] sm:$0xff]
    %v373 = vld [vmem:[#allocation5 + $0x730] sm:$0xff]
    %v374 = vld [vmem:[#allocation5 + $0x738] sm:$0xff]
    %v375 = vld [vmem:[#allocation5 + $0x740] sm:$0xff]
    %v376 = vld [vmem:[#allocation5 + $0x748] sm:$0xff]
    %v377 = vld [vmem:[#allocation5 + $0x750] sm:$0xff]
    %v378 = vld [vmem:[#allocation5 + $0x758] sm:$0xff]
    %v379 = vld [vmem:[#allocation5 + $0x760] sm:$0xff]
    %v380 = vld [vmem:[#allocation5 + $0x768] sm:$0xff]
    %v381 = vld [vmem:[#allocation5 + $0x770] sm:$0xff]
    %v382 = vld [vmem:[#allocation5 + $0x778] sm:$0xff]
    %v383 = vld [vmem:[#allocation5 + $0x780] sm:$0xff]
    %v384 = vld [vmem:[#allocation5 + $0x788] sm:$0xff]
    %v385 = vld [vmem:[#allocation5 + $0x790] sm:$0xff]
    %v386 = vld [vmem:[#allocation5 + $0x798] sm:$0xff]
    %v387 = vld [vmem:[#allocation5 + $0x7a0] sm:$0xff]
    %v388 = vld [vmem:[#allocation5 + $0x7a8] sm:$0xff]
    %v389 = vld [vmem:[#allocation5 + $0x7b0] sm:$0xff]
    %v390 = vld [vmem:[#allocation5 + $0x7b8] sm:$0xff]
    %v391 = vld [vmem:[#allocation5 + $0x7c0] sm:$0xff]
    %v392 = vld [vmem:[#allocation5 + $0x7c8] sm:$0xff]
    %v393 = vld [vmem:[#allocation5 + $0x7d0] sm:$0xff]
    %v394 = vld [vmem:[#allocation5 + $0x7d8] sm:$0xff]
    %v395 = vld [vmem:[#allocation5 + $0x7e0] sm:$0xff]
    %v396 = vld [vmem:[#allocation5 + $0x7e8] sm:$0xff]
    %v397 = vld [vmem:[#allocation5 + $0x7f0] sm:$0xff]
    %v398 = vld [vmem:[#allocation5 + $0x7f8] sm:$0xff]
    %v399 = vld [vmem:[%s2] sm:$0xf]
    %v401 = vlaneseq
    %v402 = vshrl.u32 %v401, 7
    %v403 = vsub.s32 0, %v402
    %v404 = vrot.slane %v399, %v403
    %v405 = vlaneseq
    %v406 = vshrl.u32 %v405, 7
    %v407 = vsub.s32 1, %v406
    %v408 = vrot.slane %v399, %v407
    %v409 = vlaneseq
    %v410 = vshrl.u32 %v409, 7
    %v411 = vsub.s32 2, %v410
    %v412 = vrot.slane %v399, %v411
    %v413 = vlaneseq
    %v414 = vshrl.u32 %v413, 7
    %v415 = vsub.s32 3, %v414
    %v416 = vrot.slane %v399, %v415
    %v425 = vunpack.c.l.b16 %v139
    %v426 = vunpack.c.h.b16 %v139
    %v427 = vunpack.c.l.b16 %v140
    %v428 = vunpack.c.h.b16 %v140
    %v429 = vunpack.c.l.b16 %v141
    %v430 = vunpack.c.h.b16 %v141
    %v431 = vunpack.c.l.b16 %v142
    %v432 = vunpack.c.h.b16 %v142
    %v433 = vpack.c.b16 %v425, %v425
    %v434 = vpack.c.b16 %v426, %v426
    %v435 = vpack.c.b16 %v427, %v427
    %v436 = vpack.c.b16 %v428, %v428
    %v437 = vpack.c.b16 %v429, %v429
    %v438 = vpack.c.b16 %v430, %v430
    %v439 = vpack.c.b16 %v431, %v431
    %v440 = vpack.c.b16 %v432, %v432
    %v705 = vunpack.c.l.b16 %v143
    %v706 = vunpack.c.h.b16 %v143
    %v707 = vunpack.c.l.b16 %v144
    %v708 = vunpack.c.h.b16 %v144
    %v709 = vunpack.c.l.b16 %v145
    %v710 = vunpack.c.h.b16 %v145
    %v711 = vunpack.c.l.b16 %v146
    %v712 = vunpack.c.h.b16 %v146
    %v713 = vunpack.c.l.b16 %v147
    %v714 = vunpack.c.h.b16 %v147
    %v715 = vunpack.c.l.b16 %v148
    %v716 = vunpack.c.h.b16 %v148
    %v717 = vunpack.c.l.b16 %v149
    %v718 = vunpack.c.h.b16 %v149
    %v719 = vunpack.c.l.b16 %v150
    %v720 = vunpack.c.h.b16 %v150
    %v721 = vunpack.c.l.b16 %v151
    %v722 = vunpack.c.h.b16 %v151
    %v723 = vunpack.c.l.b16 %v152
    %v724 = vunpack.c.h.b16 %v152
    %v725 = vunpack.c.l.b16 %v153
    %v726 = vunpack.c.h.b16 %v153
    %v727 = vunpack.c.l.b16 %v154
    %v728 = vunpack.c.h.b16 %v154
    %v729 = vunpack.c.l.b16 %v155
    %v730 = vunpack.c.h.b16 %v155
    %v731 = vunpack.c.l.b16 %v156
    %v732 = vunpack.c.h.b16 %v156
    %v733 = vunpack.c.l.b16 %v157
    %v734 = vunpack.c.h.b16 %v157
    %v735 = vunpack.c.l.b16 %v158
    %v736 = vunpack.c.h.b16 %v158
    %v737 = vunpack.c.l.b16 %v159
    %v738 = vunpack.c.h.b16 %v159
    %v739 = vunpack.c.l.b16 %v160
    %v740 = vunpack.c.h.b16 %v160
    %v741 = vunpack.c.l.b16 %v161
    %v742 = vunpack.c.h.b16 %v161
    %v743 = vunpack.c.l.b16 %v162
    %v744 = vunpack.c.h.b16 %v162
    %v745 = vunpack.c.l.b16 %v163
    %v746 = vunpack.c.h.b16 %v163
    %v747 = vunpack.c.l.b16 %v164
    %v748 = vunpack.c.h.b16 %v164
    %v749 = vunpack.c.l.b16 %v165
    %v750 = vunpack.c.h.b16 %v165
    %v751 = vunpack.c.l.b16 %v166
    %v752 = vunpack.c.h.b16 %v166
    %v753 = vunpack.c.l.b16 %v167
    %v754 = vunpack.c.h.b16 %v167
    %v755 = vunpack.c.l.b16 %v168
    %v756 = vunpack.c.h.b16 %v168
    %v757 = vunpack.c.l.b16 %v169
    %v758 = vunpack.c.h.b16 %v169
    %v759 = vunpack.c.l.b16 %v170
    %v760 = vunpack.c.h.b16 %v170
    %v761 = vunpack.c.l.b16 %v171
    %v762 = vunpack.c.h.b16 %v171
    %v763 = vunpack.c.l.b16 %v172
    %v764 = vunpack.c.h.b16 %v172
    %v765 = vunpack.c.l.b16 %v173
    %v766 = vunpack.c.h.b16 %v173
    %v767 = vunpack.c.l.b16 %v174
    %v768 = vunpack.c.h.b16 %v174
    %v769 = vunpack.c.l.b16 %v175
    %v770 = vunpack.c.h.b16 %v175
    %v771 = vunpack.c.l.b16 %v176
    %v772 = vunpack.c.h.b16 %v176
    %v773 = vunpack.c.l.b16 %v177
    %v774 = vunpack.c.h.b16 %v177
    %v775 = vunpack.c.l.b16 %v178
    %v776 = vunpack.c.h.b16 %v178
    %v777 = vunpack.c.l.b16 %v179
    %v778 = vunpack.c.h.b16 %v179
    %v779 = vunpack.c.l.b16 %v180
    %v780 = vunpack.c.h.b16 %v180
    %v781 = vunpack.c.l.b16 %v181
    %v782 = vunpack.c.h.b16 %v181
    %v783 = vunpack.c.l.b16 %v182
    %v784 = vunpack.c.h.b16 %v182
    %v785 = vunpack.c.l.b16 %v183
    %v786 = vunpack.c.h.b16 %v183
    %v787 = vunpack.c.l.b16 %v184
    %v788 = vunpack.c.h.b16 %v184
    %v789 = vunpack.c.l.b16 %v185
    %v790 = vunpack.c.h.b16 %v185
    %v791 = vunpack.c.l.b16 %v186
    %v792 = vunpack.c.h.b16 %v186
    %v793 = vunpack.c.l.b16 %v187
    %v794 = vunpack.c.h.b16 %v187
    %v795 = vunpack.c.l.b16 %v188
    %v796 = vunpack.c.h.b16 %v188
    %v797 = vunpack.c.l.b16 %v189
    %v798 = vunpack.c.h.b16 %v189
    %v799 = vunpack.c.l.b16 %v190
    %v800 = vunpack.c.h.b16 %v190
    %v801 = vunpack.c.l.b16 %v191
    %v802 = vunpack.c.h.b16 %v191
    %v803 = vunpack.c.l.b16 %v192
    %v804 = vunpack.c.h.b16 %v192
    %v805 = vunpack.c.l.b16 %v193
    %v806 = vunpack.c.h.b16 %v193
    %v807 = vunpack.c.l.b16 %v194
    %v808 = vunpack.c.h.b16 %v194
    %v809 = vunpack.c.l.b16 %v195
    %v810 = vunpack.c.h.b16 %v195
    %v811 = vunpack.c.l.b16 %v196
    %v812 = vunpack.c.h.b16 %v196
    %v813 = vunpack.c.l.b16 %v197
    %v814 = vunpack.c.h.b16 %v197
    %v815 = vunpack.c.l.b16 %v198
    %v816 = vunpack.c.h.b16 %v198
    %v817 = vunpack.c.l.b16 %v199
    %v818 = vunpack.c.h.b16 %v199
    %v819 = vunpack.c.l.b16 %v200
    %v820 = vunpack.c.h.b16 %v200
    %v821 = vunpack.c.l.b16 %v201
    %v822 = vunpack.c.h.b16 %v201
    %v823 = vunpack.c.l.b16 %v202
    %v824 = vunpack.c.h.b16 %v202
    %v825 = vunpack.c.l.b16 %v203
    %v826 = vunpack.c.h.b16 %v203
    %v827 = vunpack.c.l.b16 %v204
    %v828 = vunpack.c.h.b16 %v204
    %v829 = vunpack.c.l.b16 %v205
    %v830 = vunpack.c.h.b16 %v205
    %v831 = vunpack.c.l.b16 %v206
    %v832 = vunpack.c.h.b16 %v206
    %v833 = vunpack.c.l.b16 %v207
    %v834 = vunpack.c.h.b16 %v207
    %v835 = vunpack.c.l.b16 %v208
    %v836 = vunpack.c.h.b16 %v208
    %v837 = vunpack.c.l.b16 %v209
    %v838 = vunpack.c.h.b16 %v209
    %v839 = vunpack.c.l.b16 %v210
    %v840 = vunpack.c.h.b16 %v210
    %v841 = vunpack.c.l.b16 %v211
    %v842 = vunpack.c.h.b16 %v211
    %v843 = vunpack.c.l.b16 %v212
    %v844 = vunpack.c.h.b16 %v212
    %v845 = vunpack.c.l.b16 %v213
    %v846 = vunpack.c.h.b16 %v213
    %v847 = vunpack.c.l.b16 %v214
    %v848 = vunpack.c.h.b16 %v214
    %v849 = vunpack.c.l.b16 %v215
    %v850 = vunpack.c.h.b16 %v215
    %v851 = vunpack.c.l.b16 %v216
    %v852 = vunpack.c.h.b16 %v216
    %v853 = vunpack.c.l.b16 %v217
    %v854 = vunpack.c.h.b16 %v217
    %v855 = vunpack.c.l.b16 %v218
    %v856 = vunpack.c.h.b16 %v218
    %v857 = vunpack.c.l.b16 %v219
    %v858 = vunpack.c.h.b16 %v219
    %v859 = vunpack.c.l.b16 %v220
    %v860 = vunpack.c.h.b16 %v220
    %v861 = vunpack.c.l.b16 %v221
    %v862 = vunpack.c.h.b16 %v221
    %v863 = vunpack.c.l.b16 %v222
    %v864 = vunpack.c.h.b16 %v222
    %v865 = vunpack.c.l.b16 %v223
    %v866 = vunpack.c.h.b16 %v223
    %v867 = vunpack.c.l.b16 %v224
    %v868 = vunpack.c.h.b16 %v224
    %v869 = vunpack.c.l.b16 %v225
    %v870 = vunpack.c.h.b16 %v225
    %v871 = vunpack.c.l.b16 %v226
    %v872 = vunpack.c.h.b16 %v226
    %v873 = vunpack.c.l.b16 %v227
    %v874 = vunpack.c.h.b16 %v227
    %v875 = vunpack.c.l.b16 %v228
    %v876 = vunpack.c.h.b16 %v228
    %v877 = vunpack.c.l.b16 %v229
    %v878 = vunpack.c.h.b16 %v229
    %v879 = vunpack.c.l.b16 %v230
    %v880 = vunpack.c.h.b16 %v230
    %v881 = vunpack.c.l.b16 %v231
    %v882 = vunpack.c.h.b16 %v231
    %v883 = vunpack.c.l.b16 %v232
    %v884 = vunpack.c.h.b16 %v232
    %v885 = vunpack.c.l.b16 %v233
    %v886 = vunpack.c.h.b16 %v233
    %v887 = vunpack.c.l.b16 %v234
    %v888 = vunpack.c.h.b16 %v234
    %v889 = vunpack.c.l.b16 %v235
    %v890 = vunpack.c.h.b16 %v235
    %v891 = vunpack.c.l.b16 %v236
    %v892 = vunpack.c.h.b16 %v236
    %v893 = vunpack.c.l.b16 %v237
    %v894 = vunpack.c.h.b16 %v237
    %v895 = vunpack.c.l.b16 %v238
    %v896 = vunpack.c.h.b16 %v238
    %v897 = vunpack.c.l.b16 %v239
    %v898 = vunpack.c.h.b16 %v239
    %v899 = vunpack.c.l.b16 %v240
    %v900 = vunpack.c.h.b16 %v240
    %v901 = vunpack.c.l.b16 %v241
    %v902 = vunpack.c.h.b16 %v241
    %v903 = vunpack.c.l.b16 %v242
    %v904 = vunpack.c.h.b16 %v242
    %v905 = vunpack.c.l.b16 %v243
    %v906 = vunpack.c.h.b16 %v243
    %v907 = vunpack.c.l.b16 %v244
    %v908 = vunpack.c.h.b16 %v244
    %v909 = vunpack.c.l.b16 %v245
    %v910 = vunpack.c.h.b16 %v245
    %v911 = vunpack.c.l.b16 %v246
    %v912 = vunpack.c.h.b16 %v246
    %v913 = vunpack.c.l.b16 %v247
    %v914 = vunpack.c.h.b16 %v247
    %v915 = vunpack.c.l.b16 %v248
    %v916 = vunpack.c.h.b16 %v248
    %v917 = vunpack.c.l.b16 %v249
    %v918 = vunpack.c.h.b16 %v249
    %v919 = vunpack.c.l.b16 %v250
    %v920 = vunpack.c.h.b16 %v250
    %v921 = vunpack.c.l.b16 %v251
    %v922 = vunpack.c.h.b16 %v251
    %v923 = vunpack.c.l.b16 %v252
    %v924 = vunpack.c.h.b16 %v252
    %v925 = vunpack.c.l.b16 %v253
    %v926 = vunpack.c.h.b16 %v253
    %v927 = vunpack.c.l.b16 %v254
    %v928 = vunpack.c.h.b16 %v254
    %v929 = vunpack.c.l.b16 %v255
    %v930 = vunpack.c.h.b16 %v255
    %v931 = vunpack.c.l.b16 %v256
    %v932 = vunpack.c.h.b16 %v256
    %v933 = vunpack.c.l.b16 %v257
    %v934 = vunpack.c.h.b16 %v257
    %v935 = vunpack.c.l.b16 %v258
    %v936 = vunpack.c.h.b16 %v258
    %v937 = vunpack.c.l.b16 %v259
    %v938 = vunpack.c.h.b16 %v259
    %v939 = vunpack.c.l.b16 %v260
    %v940 = vunpack.c.h.b16 %v260
    %v941 = vunpack.c.l.b16 %v261
    %v942 = vunpack.c.h.b16 %v261
    %v943 = vunpack.c.l.b16 %v262
    %v944 = vunpack.c.h.b16 %v262
    %v945 = vunpack.c.l.b16 %v263
    %v946 = vunpack.c.h.b16 %v263
    %v947 = vunpack.c.l.b16 %v264
    %v948 = vunpack.c.h.b16 %v264
    %v949 = vunpack.c.l.b16 %v265
    %v950 = vunpack.c.h.b16 %v265
    %v951 = vunpack.c.l.b16 %v266
    %v952 = vunpack.c.h.b16 %v266
    %v953 = vunpack.c.l.b16 %v267
    %v954 = vunpack.c.h.b16 %v267
    %v955 = vunpack.c.l.b16 %v268
    %v956 = vunpack.c.h.b16 %v268
    %v957 = vunpack.c.l.b16 %v269
    %v958 = vunpack.c.h.b16 %v269
    %v959 = vunpack.c.l.b16 %v270
    %v960 = vunpack.c.h.b16 %v270
    %v961 = vunpack.c.l.b16 %v271
    %v962 = vunpack.c.h.b16 %v271
    %v963 = vunpack.c.l.b16 %v272
    %v964 = vunpack.c.h.b16 %v272
    %v965 = vunpack.c.l.b16 %v273
    %v966 = vunpack.c.h.b16 %v273
    %v967 = vunpack.c.l.b16 %v274
    %v968 = vunpack.c.h.b16 %v274
    %v969 = vunpack.c.l.b16 %v275
    %v970 = vunpack.c.h.b16 %v275
    %v971 = vunpack.c.l.b16 %v276
    %v972 = vunpack.c.h.b16 %v276
    %v973 = vunpack.c.l.b16 %v277
    %v974 = vunpack.c.h.b16 %v277
    %v975 = vunpack.c.l.b16 %v278
    %v976 = vunpack.c.h.b16 %v278
    %v977 = vunpack.c.l.b16 %v279
    %v978 = vunpack.c.h.b16 %v279
    %v979 = vunpack.c.l.b16 %v280
    %v980 = vunpack.c.h.b16 %v280
    %v981 = vunpack.c.l.b16 %v281
    %v982 = vunpack.c.h.b16 %v281
    %v983 = vunpack.c.l.b16 %v282
    %v984 = vunpack.c.h.b16 %v282
    %v985 = vunpack.c.l.b16 %v283
    %v986 = vunpack.c.h.b16 %v283
    %v987 = vunpack.c.l.b16 %v284
    %v988 = vunpack.c.h.b16 %v284
    %v989 = vunpack.c.l.b16 %v285
    %v990 = vunpack.c.h.b16 %v285
    %v991 = vunpack.c.l.b16 %v286
    %v992 = vunpack.c.h.b16 %v286
    %v993 = vunpack.c.l.b16 %v287
    %v994 = vunpack.c.h.b16 %v287
    %v995 = vunpack.c.l.b16 %v288
    %v996 = vunpack.c.h.b16 %v288
    %v997 = vunpack.c.l.b16 %v289
    %v998 = vunpack.c.h.b16 %v289
    %v999 = vunpack.c.l.b16 %v290
    %v1000 = vunpack.c.h.b16 %v290
    %v1001 = vunpack.c.l.b16 %v291
    %v1002 = vunpack.c.h.b16 %v291
    %v1003 = vunpack.c.l.b16 %v292
    %v1004 = vunpack.c.h.b16 %v292
    %v1005 = vunpack.c.l.b16 %v293
    %v1006 = vunpack.c.h.b16 %v293
    %v1007 = vunpack.c.l.b16 %v294
    %v1008 = vunpack.c.h.b16 %v294
    %v1009 = vunpack.c.l.b16 %v295
    %v1010 = vunpack.c.h.b16 %v295
    %v1011 = vunpack.c.l.b16 %v296
    %v1012 = vunpack.c.h.b16 %v296
    %v1013 = vunpack.c.l.b16 %v297
    %v1014 = vunpack.c.h.b16 %v297
    %v1015 = vunpack.c.l.b16 %v298
    %v1016 = vunpack.c.h.b16 %v298
    %v1017 = vunpack.c.l.b16 %v299
    %v1018 = vunpack.c.h.b16 %v299
    %v1019 = vunpack.c.l.b16 %v300
    %v1020 = vunpack.c.h.b16 %v300
    %v1021 = vunpack.c.l.b16 %v301
    %v1022 = vunpack.c.h.b16 %v301
    %v1023 = vunpack.c.l.b16 %v302
    %v1024 = vunpack.c.h.b16 %v302
    %v1025 = vunpack.c.l.b16 %v303
    %v1026 = vunpack.c.h.b16 %v303
    %v1027 = vunpack.c.l.b16 %v304
    %v1028 = vunpack.c.h.b16 %v304
    %v1029 = vunpack.c.l.b16 %v305
    %v1030 = vunpack.c.h.b16 %v305
    %v1031 = vunpack.c.l.b16 %v306
    %v1032 = vunpack.c.h.b16 %v306
    %v1033 = vunpack.c.l.b16 %v307
    %v1034 = vunpack.c.h.b16 %v307
    %v1035 = vunpack.c.l.b16 %v308
    %v1036 = vunpack.c.h.b16 %v308
    %v1037 = vunpack.c.l.b16 %v309
    %v1038 = vunpack.c.h.b16 %v309
    %v1039 = vunpack.c.l.b16 %v310
    %v1040 = vunpack.c.h.b16 %v310
    %v1041 = vunpack.c.l.b16 %v311
    %v1042 = vunpack.c.h.b16 %v311
    %v1043 = vunpack.c.l.b16 %v312
    %v1044 = vunpack.c.h.b16 %v312
    %v1045 = vunpack.c.l.b16 %v313
    %v1046 = vunpack.c.h.b16 %v313
    %v1047 = vunpack.c.l.b16 %v314
    %v1048 = vunpack.c.h.b16 %v314
    %v1049 = vunpack.c.l.b16 %v315
    %v1050 = vunpack.c.h.b16 %v315
    %v1051 = vunpack.c.l.b16 %v316
    %v1052 = vunpack.c.h.b16 %v316
    %v1053 = vunpack.c.l.b16 %v317
    %v1054 = vunpack.c.h.b16 %v317
    %v1055 = vunpack.c.l.b16 %v318
    %v1056 = vunpack.c.h.b16 %v318
    %v1057 = vunpack.c.l.b16 %v319
    %v1058 = vunpack.c.h.b16 %v319
    %v1059 = vunpack.c.l.b16 %v320
    %v1060 = vunpack.c.h.b16 %v320
    %v1061 = vunpack.c.l.b16 %v321
    %v1062 = vunpack.c.h.b16 %v321
    %v1063 = vunpack.c.l.b16 %v322
    %v1064 = vunpack.c.h.b16 %v322
    %v1065 = vunpack.c.l.b16 %v323
    %v1066 = vunpack.c.h.b16 %v323
    %v1067 = vunpack.c.l.b16 %v324
    %v1068 = vunpack.c.h.b16 %v324
    %v1069 = vunpack.c.l.b16 %v325
    %v1070 = vunpack.c.h.b16 %v325
    %v1071 = vunpack.c.l.b16 %v326
    %v1072 = vunpack.c.h.b16 %v326
    %v1073 = vunpack.c.l.b16 %v327
    %v1074 = vunpack.c.h.b16 %v327
    %v1075 = vunpack.c.l.b16 %v328
    %v1076 = vunpack.c.h.b16 %v328
    %v1077 = vunpack.c.l.b16 %v329
    %v1078 = vunpack.c.h.b16 %v329
    %v1079 = vunpack.c.l.b16 %v330
    %v1080 = vunpack.c.h.b16 %v330
    %v1081 = vunpack.c.l.b16 %v331
    %v1082 = vunpack.c.h.b16 %v331
    %v1083 = vunpack.c.l.b16 %v332
    %v1084 = vunpack.c.h.b16 %v332
    %v1085 = vunpack.c.l.b16 %v333
    %v1086 = vunpack.c.h.b16 %v333
    %v1087 = vunpack.c.l.b16 %v334
    %v1088 = vunpack.c.h.b16 %v334
    %v1089 = vunpack.c.l.b16 %v335
    %v1090 = vunpack.c.h.b16 %v335
    %v1091 = vunpack.c.l.b16 %v336
    %v1092 = vunpack.c.h.b16 %v336
    %v1093 = vunpack.c.l.b16 %v337
    %v1094 = vunpack.c.h.b16 %v337
    %v1095 = vunpack.c.l.b16 %v338
    %v1096 = vunpack.c.h.b16 %v338
    %v1097 = vunpack.c.l.b16 %v339
    %v1098 = vunpack.c.h.b16 %v339
    %v1099 = vunpack.c.l.b16 %v340
    %v1100 = vunpack.c.h.b16 %v340
    %v1101 = vunpack.c.l.b16 %v341
    %v1102 = vunpack.c.h.b16 %v341
    %v1103 = vunpack.c.l.b16 %v342
    %v1104 = vunpack.c.h.b16 %v342
    %v1105 = vunpack.c.l.b16 %v343
    %v1106 = vunpack.c.h.b16 %v343
    %v1107 = vunpack.c.l.b16 %v344
    %v1108 = vunpack.c.h.b16 %v344
    %v1109 = vunpack.c.l.b16 %v345
    %v1110 = vunpack.c.h.b16 %v345
    %v1111 = vunpack.c.l.b16 %v346
    %v1112 = vunpack.c.h.b16 %v346
    %v1113 = vunpack.c.l.b16 %v347
    %v1114 = vunpack.c.h.b16 %v347
    %v1115 = vunpack.c.l.b16 %v348
    %v1116 = vunpack.c.h.b16 %v348
    %v1117 = vunpack.c.l.b16 %v349
    %v1118 = vunpack.c.h.b16 %v349
    %v1119 = vunpack.c.l.b16 %v350
    %v1120 = vunpack.c.h.b16 %v350
    %v1121 = vunpack.c.l.b16 %v351
    %v1122 = vunpack.c.h.b16 %v351
    %v1123 = vunpack.c.l.b16 %v352
    %v1124 = vunpack.c.h.b16 %v352
    %v1125 = vunpack.c.l.b16 %v353
    %v1126 = vunpack.c.h.b16 %v353
    %v1127 = vunpack.c.l.b16 %v354
    %v1128 = vunpack.c.h.b16 %v354
    %v1129 = vunpack.c.l.b16 %v355
    %v1130 = vunpack.c.h.b16 %v355
    %v1131 = vunpack.c.l.b16 %v356
    %v1132 = vunpack.c.h.b16 %v356
    %v1133 = vunpack.c.l.b16 %v357
    %v1134 = vunpack.c.h.b16 %v357
    %v1135 = vunpack.c.l.b16 %v358
    %v1136 = vunpack.c.h.b16 %v358
    %v1137 = vunpack.c.l.b16 %v359
    %v1138 = vunpack.c.h.b16 %v359
    %v1139 = vunpack.c.l.b16 %v360
    %v1140 = vunpack.c.h.b16 %v360
    %v1141 = vunpack.c.l.b16 %v361
    %v1142 = vunpack.c.h.b16 %v361
    %v1143 = vunpack.c.l.b16 %v362
    %v1144 = vunpack.c.h.b16 %v362
    %v1145 = vunpack.c.l.b16 %v363
    %v1146 = vunpack.c.h.b16 %v363
    %v1147 = vunpack.c.l.b16 %v364
    %v1148 = vunpack.c.h.b16 %v364
    %v1149 = vunpack.c.l.b16 %v365
    %v1150 = vunpack.c.h.b16 %v365
    %v1151 = vunpack.c.l.b16 %v366
    %v1152 = vunpack.c.h.b16 %v366
    %v1153 = vunpack.c.l.b16 %v367
    %v1154 = vunpack.c.h.b16 %v367
    %v1155 = vunpack.c.l.b16 %v368
    %v1156 = vunpack.c.h.b16 %v368
    %v1157 = vunpack.c.l.b16 %v369
    %v1158 = vunpack.c.h.b16 %v369
    %v1159 = vunpack.c.l.b16 %v370
    %v1160 = vunpack.c.h.b16 %v370
    %v1161 = vunpack.c.l.b16 %v371
    %v1162 = vunpack.c.h.b16 %v371
    %v1163 = vunpack.c.l.b16 %v372
    %v1164 = vunpack.c.h.b16 %v372
    %v1165 = vunpack.c.l.b16 %v373
    %v1166 = vunpack.c.h.b16 %v373
    %v1167 = vunpack.c.l.b16 %v374
    %v1168 = vunpack.c.h.b16 %v374
    %v1169 = vunpack.c.l.b16 %v375
    %v1170 = vunpack.c.h.b16 %v375
    %v1171 = vunpack.c.l.b16 %v376
    %v1172 = vunpack.c.h.b16 %v376
    %v1173 = vunpack.c.l.b16 %v377
    %v1174 = vunpack.c.h.b16 %v377
    %v1175 = vunpack.c.l.b16 %v378
    %v1176 = vunpack.c.h.b16 %v378
    %v1177 = vunpack.c.l.b16 %v379
    %v1178 = vunpack.c.h.b16 %v379
    %v1179 = vunpack.c.l.b16 %v380
    %v1180 = vunpack.c.h.b16 %v380
    %v1181 = vunpack.c.l.b16 %v381
    %v1182 = vunpack.c.h.b16 %v381
    %v1183 = vunpack.c.l.b16 %v382
    %v1184 = vunpack.c.h.b16 %v382
    %v1185 = vunpack.c.l.b16 %v383
    %v1186 = vunpack.c.h.b16 %v383
    %v1187 = vunpack.c.l.b16 %v384
    %v1188 = vunpack.c.h.b16 %v384
    %v1189 = vunpack.c.l.b16 %v385
    %v1190 = vunpack.c.h.b16 %v385
    %v1191 = vunpack.c.l.b16 %v386
    %v1192 = vunpack.c.h.b16 %v386
    %v1193 = vunpack.c.l.b16 %v387
    %v1194 = vunpack.c.h.b16 %v387
    %v1195 = vunpack.c.l.b16 %v388
    %v1196 = vunpack.c.h.b16 %v388
    %v1197 = vunpack.c.l.b16 %v389
    %v1198 = vunpack.c.h.b16 %v389
    %v1199 = vunpack.c.l.b16 %v390
    %v1200 = vunpack.c.h.b16 %v390
    %v1201 = vunpack.c.l.b16 %v391
    %v1202 = vunpack.c.h.b16 %v391
    %v1203 = vunpack.c.l.b16 %v392
    %v1204 = vunpack.c.h.b16 %v392
    %v1205 = vunpack.c.l.b16 %v393
    %v1206 = vunpack.c.h.b16 %v393
    %v1207 = vunpack.c.l.b16 %v394
    %v1208 = vunpack.c.h.b16 %v394
    %v1209 = vunpack.c.l.b16 %v395
    %v1210 = vunpack.c.h.b16 %v395
    %v1211 = vunpack.c.l.b16 %v396
    %v1212 = vunpack.c.h.b16 %v396
    %v1213 = vunpack.c.l.b16 %v397
    %v1214 = vunpack.c.h.b16 %v397
    %v1215 = vunpack.c.l.b16 %v398
    %v1216 = vunpack.c.h.b16 %v398
    %v1217 = vpack.c.b16 %v709, %v705
    %v1218 = vpack.c.b16 %v710, %v706
    %v1219 = vpack.c.b16 %v711, %v707
    %v1220 = vpack.c.b16 %v712, %v708
    %v1221 = vpack.c.b16 %v717, %v713
    %v1222 = vpack.c.b16 %v718, %v714
    %v1223 = vpack.c.b16 %v719, %v715
    %v1224 = vpack.c.b16 %v720, %v716
    %v1225 = vpack.c.b16 %v725, %v721
    %v1226 = vpack.c.b16 %v726, %v722
    %v1227 = vpack.c.b16 %v727, %v723
    %v1228 = vpack.c.b16 %v728, %v724
    %v1229 = vpack.c.b16 %v733, %v729
    %v1230 = vpack.c.b16 %v734, %v730
    %v1231 = vpack.c.b16 %v735, %v731
    %v1232 = vpack.c.b16 %v736, %v732
    %v1233 = vpack.c.b16 %v741, %v737
    %v1234 = vpack.c.b16 %v742, %v738
    %v1235 = vpack.c.b16 %v743, %v739
    %v1236 = vpack.c.b16 %v744, %v740
    %v1237 = vpack.c.b16 %v749, %v745
    %v1238 = vpack.c.b16 %v750, %v746
    %v1239 = vpack.c.b16 %v751, %v747
    %v1240 = vpack.c.b16 %v752, %v748
    %v1241 = vpack.c.b16 %v757, %v753
    %v1242 = vpack.c.b16 %v758, %v754
    %v1243 = vpack.c.b16 %v759, %v755
    %v1244 = vpack.c.b16 %v760, %v756
    %v1245 = vpack.c.b16 %v765, %v761
    %v1246 = vpack.c.b16 %v766, %v762
    %v1247 = vpack.c.b16 %v767, %v763
    %v1248 = vpack.c.b16 %v768, %v764
    %v1249 = vpack.c.b16 %v773, %v769
    %v1250 = vpack.c.b16 %v774, %v770
    %v1251 = vpack.c.b16 %v775, %v771
    %v1252 = vpack.c.b16 %v776, %v772
    %v1253 = vpack.c.b16 %v781, %v777
    %v1254 = vpack.c.b16 %v782, %v778
    %v1255 = vpack.c.b16 %v783, %v779
    %v1256 = vpack.c.b16 %v784, %v780
    %v1257 = vpack.c.b16 %v789, %v785
    %v1258 = vpack.c.b16 %v790, %v786
    %v1259 = vpack.c.b16 %v791, %v787
    %v1260 = vpack.c.b16 %v792, %v788
    %v1261 = vpack.c.b16 %v797, %v793
    %v1262 = vpack.c.b16 %v798, %v794
    %v1263 = vpack.c.b16 %v799, %v795
    %v1264 = vpack.c.b16 %v800, %v796
    %v1265 = vpack.c.b16 %v805, %v801
    %v1266 = vpack.c.b16 %v806, %v802
    %v1267 = vpack.c.b16 %v807, %v803
    %v1268 = vpack.c.b16 %v808, %v804
    %v1269 = vpack.c.b16 %v813, %v809
    %v1270 = vpack.c.b16 %v814, %v810
    %v1271 = vpack.c.b16 %v815, %v811
    %v1272 = vpack.c.b16 %v816, %v812
    %v1273 = vpack.c.b16 %v821, %v817
    %v1274 = vpack.c.b16 %v822, %v818
    %v1275 = vpack.c.b16 %v823, %v819
    %v1276 = vpack.c.b16 %v824, %v820
    %v1277 = vpack.c.b16 %v829, %v825
    %v1278 = vpack.c.b16 %v830, %v826
    %v1279 = vpack.c.b16 %v831, %v827
    %v1280 = vpack.c.b16 %v832, %v828
    %v1281 = vpack.c.b16 %v837, %v833
    %v1282 = vpack.c.b16 %v838, %v834
    %v1283 = vpack.c.b16 %v839, %v835
    %v1284 = vpack.c.b16 %v840, %v836
    %v1285 = vpack.c.b16 %v845, %v841
    %v1286 = vpack.c.b16 %v846, %v842
    %v1287 = vpack.c.b16 %v847, %v843
    %v1288 = vpack.c.b16 %v848, %v844
    %v1289 = vpack.c.b16 %v853, %v849
    %v1290 = vpack.c.b16 %v854, %v850
    %v1291 = vpack.c.b16 %v855, %v851
    %v1292 = vpack.c.b16 %v856, %v852
    %v1293 = vpack.c.b16 %v861, %v857
    %v1294 = vpack.c.b16 %v862, %v858
    %v1295 = vpack.c.b16 %v863, %v859
    %v1296 = vpack.c.b16 %v864, %v860
    %v1297 = vpack.c.b16 %v869, %v865
    %v1298 = vpack.c.b16 %v870, %v866
    %v1299 = vpack.c.b16 %v871, %v867
    %v1300 = vpack.c.b16 %v872, %v868
    %v1301 = vpack.c.b16 %v877, %v873
    %v1302 = vpack.c.b16 %v878, %v874
    %v1303 = vpack.c.b16 %v879, %v875
    %v1304 = vpack.c.b16 %v880, %v876
    %v1305 = vpack.c.b16 %v885, %v881
    %v1306 = vpack.c.b16 %v886, %v882
    %v1307 = vpack.c.b16 %v887, %v883
    %v1308 = vpack.c.b16 %v888, %v884
    %v1309 = vpack.c.b16 %v893, %v889
    %v1310 = vpack.c.b16 %v894, %v890
    %v1311 = vpack.c.b16 %v895, %v891
    %v1312 = vpack.c.b16 %v896, %v892
    %v1313 = vpack.c.b16 %v901, %v897
    %v1314 = vpack.c.b16 %v902, %v898
    %v1315 = vpack.c.b16 %v903, %v899
    %v1316 = vpack.c.b16 %v904, %v900
    %v1317 = vpack.c.b16 %v909, %v905
    %v1318 = vpack.c.b16 %v910, %v906
    %v1319 = vpack.c.b16 %v911, %v907
    %v1320 = vpack.c.b16 %v912, %v908
    %v1321 = vpack.c.b16 %v917, %v913
    %v1322 = vpack.c.b16 %v918, %v914
    %v1323 = vpack.c.b16 %v919, %v915
    %v1324 = vpack.c.b16 %v920, %v916
    %v1325 = vpack.c.b16 %v925, %v921
    %v1326 = vpack.c.b16 %v926, %v922
    %v1327 = vpack.c.b16 %v927, %v923
    %v1328 = vpack.c.b16 %v928, %v924
    %v1329 = vpack.c.b16 %v933, %v929
    %v1330 = vpack.c.b16 %v934, %v930
    %v1331 = vpack.c.b16 %v935, %v931
    %v1332 = vpack.c.b16 %v936, %v932
    %v1333 = vpack.c.b16 %v941, %v937
    %v1334 = vpack.c.b16 %v942, %v938
    %v1335 = vpack.c.b16 %v943, %v939
    %v1336 = vpack.c.b16 %v944, %v940
    %v1337 = vpack.c.b16 %v949, %v945
    %v1338 = vpack.c.b16 %v950, %v946
    %v1339 = vpack.c.b16 %v951, %v947
    %v1340 = vpack.c.b16 %v952, %v948
    %v1341 = vpack.c.b16 %v957, %v953
    %v1342 = vpack.c.b16 %v958, %v954
    %v1343 = vpack.c.b16 %v959, %v955
    %v1344 = vpack.c.b16 %v960, %v956
    %v1345 = vpack.c.b16 %v965, %v961
    %v1346 = vpack.c.b16 %v966, %v962
    %v1347 = vpack.c.b16 %v967, %v963
    %v1348 = vpack.c.b16 %v968, %v964
    %v1349 = vpack.c.b16 %v973, %v969
    %v1350 = vpack.c.b16 %v974, %v970
    %v1351 = vpack.c.b16 %v975, %v971
    %v1352 = vpack.c.b16 %v976, %v972
    %v1353 = vpack.c.b16 %v981, %v977
    %v1354 = vpack.c.b16 %v982, %v978
    %v1355 = vpack.c.b16 %v983, %v979
    %v1356 = vpack.c.b16 %v984, %v980
    %v1357 = vpack.c.b16 %v989, %v985
    %v1358 = vpack.c.b16 %v990, %v986
    %v1359 = vpack.c.b16 %v991, %v987
    %v1360 = vpack.c.b16 %v992, %v988
    %v1361 = vpack.c.b16 %v997, %v993
    %v1362 = vpack.c.b16 %v998, %v994
    %v1363 = vpack.c.b16 %v999, %v995
    %v1364 = vpack.c.b16 %v1000, %v996
    %v1365 = vpack.c.b16 %v1005, %v1001
    %v1366 = vpack.c.b16 %v1006, %v1002
    %v1367 = vpack.c.b16 %v1007, %v1003
    %v1368 = vpack.c.b16 %v1008, %v1004
    %v1369 = vpack.c.b16 %v1013, %v1009
    %v1370 = vpack.c.b16 %v1014, %v1010
    %v1371 = vpack.c.b16 %v1015, %v1011
    %v1372 = vpack.c.b16 %v1016, %v1012
    %v1373 = vpack.c.b16 %v1021, %v1017
    %v1374 = vpack.c.b16 %v1022, %v1018
    %v1375 = vpack.c.b16 %v1023, %v1019
    %v1376 = vpack.c.b16 %v1024, %v1020
    %v1377 = vpack.c.b16 %v1029, %v1025
    %v1378 = vpack.c.b16 %v1030, %v1026
    %v1379 = vpack.c.b16 %v1031, %v1027
    %v1380 = vpack.c.b16 %v1032, %v1028
    %v1381 = vpack.c.b16 %v1037, %v1033
    %v1382 = vpack.c.b16 %v1038, %v1034
    %v1383 = vpack.c.b16 %v1039, %v1035
    %v1384 = vpack.c.b16 %v1040, %v1036
    %v1385 = vpack.c.b16 %v1045, %v1041
    %v1386 = vpack.c.b16 %v1046, %v1042
    %v1387 = vpack.c.b16 %v1047, %v1043
    %v1388 = vpack.c.b16 %v1048, %v1044
    %v1389 = vpack.c.b16 %v1053, %v1049
    %v1390 = vpack.c.b16 %v1054, %v1050
    %v1391 = vpack.c.b16 %v1055, %v1051
    %v1392 = vpack.c.b16 %v1056, %v1052
    %v1393 = vpack.c.b16 %v1061, %v1057
    %v1394 = vpack.c.b16 %v1062, %v1058
    %v1395 = vpack.c.b16 %v1063, %v1059
    %v1396 = vpack.c.b16 %v1064, %v1060
    %v1397 = vpack.c.b16 %v1069, %v1065
    %v1398 = vpack.c.b16 %v1070, %v1066
    %v1399 = vpack.c.b16 %v1071, %v1067
    %v1400 = vpack.c.b16 %v1072, %v1068
    %v1401 = vpack.c.b16 %v1077, %v1073
    %v1402 = vpack.c.b16 %v1078, %v1074
    %v1403 = vpack.c.b16 %v1079, %v1075
    %v1404 = vpack.c.b16 %v1080, %v1076
    %v1405 = vpack.c.b16 %v1085, %v1081
    %v1406 = vpack.c.b16 %v1086, %v1082
    %v1407 = vpack.c.b16 %v1087, %v1083
    %v1408 = vpack.c.b16 %v1088, %v1084
    %v1409 = vpack.c.b16 %v1093, %v1089
    %v1410 = vpack.c.b16 %v1094, %v1090
    %v1411 = vpack.c.b16 %v1095, %v1091
    %v1412 = vpack.c.b16 %v1096, %v1092
    %v1413 = vpack.c.b16 %v1101, %v1097
    %v1414 = vpack.c.b16 %v1102, %v1098
    %v1415 = vpack.c.b16 %v1103, %v1099
    %v1416 = vpack.c.b16 %v1104, %v1100
    %v1417 = vpack.c.b16 %v1109, %v1105
    %v1418 = vpack.c.b16 %v1110, %v1106
    %v1419 = vpack.c.b16 %v1111, %v1107
    %v1420 = vpack.c.b16 %v1112, %v1108
    %v1421 = vpack.c.b16 %v1117, %v1113
    %v1422 = vpack.c.b16 %v1118, %v1114
    %v1423 = vpack.c.b16 %v1119, %v1115
    %v1424 = vpack.c.b16 %v1120, %v1116
    %v1425 = vpack.c.b16 %v1125, %v1121
    %v1426 = vpack.c.b16 %v1126, %v1122
    %v1427 = vpack.c.b16 %v1127, %v1123
    %v1428 = vpack.c.b16 %v1128, %v1124
    %v1429 = vpack.c.b16 %v1133, %v1129
    %v1430 = vpack.c.b16 %v1134, %v1130
    %v1431 = vpack.c.b16 %v1135, %v1131
    %v1432 = vpack.c.b16 %v1136, %v1132
    %v1433 = vpack.c.b16 %v1141, %v1137
    %v1434 = vpack.c.b16 %v1142, %v1138
    %v1435 = vpack.c.b16 %v1143, %v1139
    %v1436 = vpack.c.b16 %v1144, %v1140
    %v1437 = vpack.c.b16 %v1149, %v1145
    %v1438 = vpack.c.b16 %v1150, %v1146
    %v1439 = vpack.c.b16 %v1151, %v1147
    %v1440 = vpack.c.b16 %v1152, %v1148
    %v1441 = vpack.c.b16 %v1157, %v1153
    %v1442 = vpack.c.b16 %v1158, %v1154
    %v1443 = vpack.c.b16 %v1159, %v1155
    %v1444 = vpack.c.b16 %v1160, %v1156
    %v1445 = vpack.c.b16 %v1165, %v1161
    %v1446 = vpack.c.b16 %v1166, %v1162
    %v1447 = vpack.c.b16 %v1167, %v1163
    %v1448 = vpack.c.b16 %v1168, %v1164
    %v1449 = vpack.c.b16 %v1173, %v1169
    %v1450 = vpack.c.b16 %v1174, %v1170
    %v1451 = vpack.c.b16 %v1175, %v1171
    %v1452 = vpack.c.b16 %v1176, %v1172
    %v1453 = vpack.c.b16 %v1181, %v1177
    %v1454 = vpack.c.b16 %v1182, %v1178
    %v1455 = vpack.c.b16 %v1183, %v1179
    %v1456 = vpack.c.b16 %v1184, %v1180
    %v1457 = vpack.c.b16 %v1189, %v1185
    %v1458 = vpack.c.b16 %v1190, %v1186
    %v1459 = vpack.c.b16 %v1191, %v1187
    %v1460 = vpack.c.b16 %v1192, %v1188
    %v1461 = vpack.c.b16 %v1197, %v1193
    %v1462 = vpack.c.b16 %v1198, %v1194
    %v1463 = vpack.c.b16 %v1199, %v1195
    %v1464 = vpack.c.b16 %v1200, %v1196
    %v1465 = vpack.c.b16 %v1205, %v1201
    %v1466 = vpack.c.b16 %v1206, %v1202
    %v1467 = vpack.c.b16 %v1207, %v1203
    %v1468 = vpack.c.b16 %v1208, %v1204
    %v1469 = vpack.c.b16 %v1213, %v1209
    %v1470 = vpack.c.b16 %v1214, %v1210
    %v1471 = vpack.c.b16 %v1215, %v1211
    %v1472 = vpack.c.b16 %v1216, %v1212
    %1729 = vmatprep.subr.bf16.mxu0 %v1218
    %1730 = vmatpush1.bf16.msra.mxu0 %v1217
    %1731 = vmatprep.subr.bf16.mxu0 %v1222
    %1732 = vmatpush1.bf16.msra.mxu0 %v1221
    %1733 = vmatprep.subr.bf16.mxu0 %v1226
    %1734 = vmatpush1.bf16.msra.mxu0 %v1225
    %1735 = vmatprep.subr.bf16.mxu0 %v1230
    %1736 = vmatpush1.bf16.msra.mxu0 %v1229
    %1737 = vmatprep.subr.bf16.mxu0 %v1234
    %1738 = vmatpush1.bf16.msra.mxu0 %v1233
    %1739 = vmatprep.subr.bf16.mxu0 %v1238
    %1740 = vmatpush1.bf16.msra.mxu0 %v1237
    %1741 = vmatprep.subr.bf16.mxu0 %v1242
    %1742 = vmatpush1.bf16.msra.mxu0 %v1241
    %1743 = vmatprep.subr.bf16.mxu0 %v1246
    %1744 = vmatpush1.bf16.msra.mxu0 %v1245
    %1745 = vmatprep.subr.bf16.mxu0 %v1250
    %1746 = vmatpush1.bf16.msra.mxu0 %v1249
    %1747 = vmatprep.subr.bf16.mxu0 %v1254
    %1748 = vmatpush1.bf16.msra.mxu0 %v1253
    %1749 = vmatprep.subr.bf16.mxu0 %v1258
    %1750 = vmatpush1.bf16.msra.mxu0 %v1257
    %1751 = vmatprep.subr.bf16.mxu0 %v1262
    %1752 = vmatpush1.bf16.msra.mxu0 %v1261
    %1753 = vmatprep.subr.bf16.mxu0 %v1266
    %1754 = vmatpush1.bf16.msra.mxu0 %v1265
    %1755 = vmatprep.subr.bf16.mxu0 %v1270
    %1756 = vmatpush1.bf16.msra.mxu0 %v1269
    %1757 = vmatprep.subr.bf16.mxu0 %v1274
    %1758 = vmatpush1.bf16.msra.mxu0 %v1273
    %1759 = vmatprep.subr.bf16.mxu0 %v1278
    %1760 = vmatpush1.bf16.msra.mxu0 %v1277
    %1761 = vmatprep.mubr.bf16.mxu0 %v434
    %1762 = vmatmul.mubr.bf16.gmra.mrb[0].mxu0 %v433
    %v1763 = vpop.f32.mrb[0].mxu0
    %v1764 = vadd.f32 %v404, %v1763
    %v1765 = vpop.f32.mrb[0].mxu0
    %v1766 = vadd.f32 %v408, %v1765
    %v1767 = vpop.f32.mrb[0].mxu0
    %v1768 = vpop.f32.mrb[0].mxu0
    %1769 = vdwg.mxu0
    %1770 = vmatprep.subr.bf16.mxu0 %v1282
    %1771 = vmatpush1.bf16.msra.mxu0 %v1281
    %1772 = vmatprep.subr.bf16.mxu0 %v1286
    %1773 = vmatpush1.bf16.msra.mxu0 %v1285
    %1774 = vmatprep.subr.bf16.mxu0 %v1290
    %1775 = vmatpush1.bf16.msra.mxu0 %v1289
    %1776 = vmatprep.subr.bf16.mxu0 %v1294
    %1777 = vmatpush1.bf16.msra.mxu0 %v1293
    %1778 = vmatprep.subr.bf16.mxu0 %v1298
    %1779 = vmatpush1.bf16.msra.mxu0 %v1297
    %1780 = vmatprep.subr.bf16.mxu0 %v1302
    %1781 = vmatpush1.bf16.msra.mxu0 %v1301
    %1782 = vmatprep.subr.bf16.mxu0 %v1306
    %1783 = vmatpush1.bf16.msra.mxu0 %v1305
    %1784 = vmatprep.subr.bf16.mxu0 %v1310
    %1785 = vmatpush1.bf16.msra.mxu0 %v1309
    %1786 = vmatprep.subr.bf16.mxu0 %v1314
    %1787 = vmatpush1.bf16.msra.mxu0 %v1313
    %1788 = vmatprep.subr.bf16.mxu0 %v1318
    %1789 = vmatpush1.bf16.msra.mxu0 %v1317
    %1790 = vmatprep.subr.bf16.mxu0 %v1322
    %1791 = vmatpush1.bf16.msra.mxu0 %v1321
    %1792 = vmatprep.subr.bf16.mxu0 %v1326
    %1793 = vmatpush1.bf16.msra.mxu0 %v1325
    %1794 = vmatprep.subr.bf16.mxu0 %v1330
    %1795 = vmatpush1.bf16.msra.mxu0 %v1329
    %1796 = vmatprep.subr.bf16.mxu0 %v1334
    %1797 = vmatpush1.bf16.msra.mxu0 %v1333
    %1798 = vmatprep.subr.bf16.mxu0 %v1338
    %1799 = vmatpush1.bf16.msra.mxu0 %v1337
    %1800 = vmatprep.subr.bf16.mxu0 %v1342
    %1801 = vmatpush1.bf16.msra.mxu0 %v1341
    %1802 = vmatprep.mubr.bf16.mxu0 %v436
    %1803 = vmatmul.mubr.bf16.gmra.mrb[0].mxu0 %v435
    %v1804 = vpop.f32.mrb[0].mxu0
    %v1805 = vadd.f32 %v1764, %v1804
    %v1806 = vpop.f32.mrb[0].mxu0
    %v1807 = vadd.f32 %v1766, %v1806
    %v1808 = vpop.f32.mrb[0].mxu0
    %v1809 = vpop.f32.mrb[0].mxu0
    %1810 = vdwg.mxu0
    %1811 = vmatprep.subr.bf16.mxu0 %v1346
    %1812 = vmatpush1.bf16.msra.mxu0 %v1345
    %1813 = vmatprep.subr.bf16.mxu0 %v1350
    %1814 = vmatpush1.bf16.msra.mxu0 %v1349
    %1815 = vmatprep.subr.bf16.mxu0 %v1354
    %1816 = vmatpush1.bf16.msra.mxu0 %v1353
    %1817 = vmatprep.subr.bf16.mxu0 %v1358
    %1818 = vmatpush1.bf16.msra.mxu0 %v1357
    %1819 = vmatprep.subr.bf16.mxu0 %v1362
    %1820 = vmatpush1.bf16.msra.mxu0 %v1361
    %1821 = vmatprep.subr.bf16.mxu0 %v1366
    %1822 = vmatpush1.bf16.msra.mxu0 %v1365
    %1823 = vmatprep.subr.bf16.mxu0 %v1370
    %1824 = vmatpush1.bf16.msra.mxu0 %v1369
    %1825 = vmatprep.subr.bf16.mxu0 %v1374
    %1826 = vmatpush1.bf16.msra.mxu0 %v1373
    %1827 = vmatprep.subr.bf16.mxu0 %v1378
    %1828 = vmatpush1.bf16.msra.mxu0 %v1377
    %1829 = vmatprep.subr.bf16.mxu0 %v1382
    %1830 = vmatpush1.bf16.msra.mxu0 %v1381
    %1831 = vmatprep.subr.bf16.mxu0 %v1386
    %1832 = vmatpush1.bf16.msra.mxu0 %v1385
    %1833 = vmatprep.subr.bf16.mxu0 %v1390
    %1834 = vmatpush1.bf16.msra.mxu0 %v1389
    %1835 = vmatprep.subr.bf16.mxu0 %v1394
    %1836 = vmatpush1.bf16.msra.mxu0 %v1393
    %1837 = vmatprep.subr.bf16.mxu0 %v1398
    %1838 = vmatpush1.bf16.msra.mxu0 %v1397
    %1839 = vmatprep.subr.bf16.mxu0 %v1402
    %1840 = vmatpush1.bf16.msra.mxu0 %v1401
    %1841 = vmatprep.subr.bf16.mxu0 %v1406
    %1842 = vmatpush1.bf16.msra.mxu0 %v1405
    %1843 = vmatprep.mubr.bf16.mxu0 %v438
    %1844 = vmatmul.mubr.bf16.gmra.mrb[0].mxu0 %v437
    %v1845 = vpop.f32.mrb[0].mxu0
    %v1846 = vadd.f32 %v1805, %v1845
    %v1847 = vpop.f32.mrb[0].mxu0
    %v1848 = vadd.f32 %v1807, %v1847
    %v1849 = vpop.f32.mrb[0].mxu0
    %v1850 = vpop.f32.mrb[0].mxu0
    %1851 = vdwg.mxu0
    %1852 = vmatprep.subr.bf16.mxu0 %v1410
    %1853 = vmatpush1.bf16.msra.mxu0 %v1409
    %1854 = vmatprep.subr.bf16.mxu0 %v1414
    %1855 = vmatpush1.bf16.msra.mxu0 %v1413
    %1856 = vmatprep.subr.bf16.mxu0 %v1418
    %1857 = vmatpush1.bf16.msra.mxu0 %v1417
    %1858 = vmatprep.subr.bf16.mxu0 %v1422
    %1859 = vmatpush1.bf16.msra.mxu0 %v1421
    %1860 = vmatprep.subr.bf16.mxu0 %v1426
    %1861 = vmatpush1.bf16.msra.mxu0 %v1425
    %1862 = vmatprep.subr.bf16.mxu0 %v1430
    %1863 = vmatpush1.bf16.msra.mxu0 %v1429
    %1864 = vmatprep.subr.bf16.mxu0 %v1434
    %1865 = vmatpush1.bf16.msra.mxu0 %v1433
    %1866 = vmatprep.subr.bf16.mxu0 %v1438
    %1867 = vmatpush1.bf16.msra.mxu0 %v1437
    %1868 = vmatprep.subr.bf16.mxu0 %v1442
    %1869 = vmatpush1.bf16.msra.mxu0 %v1441
    %1870 = vmatprep.subr.bf16.mxu0 %v1446
    %1871 = vmatpush1.bf16.msra.mxu0 %v1445
    %1872 = vmatprep.subr.bf16.mxu0 %v1450
    %1873 = vmatpush1.bf16.msra.mxu0 %v1449
    %1874 = vmatprep.subr.bf16.mxu0 %v1454
    %1875 = vmatpush1.bf16.msra.mxu0 %v1453
    %1876 = vmatprep.subr.bf16.mxu0 %v1458
    %1877 = vmatpush1.bf16.msra.mxu0 %v1457
    %1878 = vmatprep.subr.bf16.mxu0 %v1462
    %1879 = vmatpush1.bf16.msra.mxu0 %v1461
    %1880 = vmatprep.subr.bf16.mxu0 %v1466
    %1881 = vmatpush1.bf16.msra.mxu0 %v1465
    %1882 = vmatprep.subr.bf16.mxu0 %v1470
    %1883 = vmatpush1.bf16.msra.mxu0 %v1469
    %1884 = vmatprep.mubr.bf16.mxu0 %v440
    %1885 = vmatmul.mubr.bf16.gmra.mrb[0].mxu0 %v439
    %v1886 = vpop.f32.mrb[0].mxu0
    %v1887 = vadd.f32 %v1846, %v1886
    %v1888 = vpop.f32.mrb[0].mxu0
    %v1889 = vadd.f32 %v1848, %v1888
    %v1890 = vpop.f32.mrb[0].mxu0
    %v1891 = vpop.f32.mrb[0].mxu0
    %1892 = vdwg.mxu0
    %1893 = vmatprep.subr.bf16.mxu0 %v1220
    %1894 = vmatpush1.bf16.msra.mxu0 %v1219
    %1895 = vmatprep.subr.bf16.mxu0 %v1224
    %1896 = vmatpush1.bf16.msra.mxu0 %v1223
    %1897 = vmatprep.subr.bf16.mxu0 %v1228
    %1898 = vmatpush1.bf16.msra.mxu0 %v1227
    %1899 = vmatprep.subr.bf16.mxu0 %v1232
    %1900 = vmatpush1.bf16.msra.mxu0 %v1231
    %1901 = vmatprep.subr.bf16.mxu0 %v1236
    %1902 = vmatpush1.bf16.msra.mxu0 %v1235
    %1903 = vmatprep.subr.bf16.mxu0 %v1240
    %1904 = vmatpush1.bf16.msra.mxu0 %v1239
    %1905 = vmatprep.subr.bf16.mxu0 %v1244
    %1906 = vmatpush1.bf16.msra.mxu0 %v1243
    %1907 = vmatprep.subr.bf16.mxu0 %v1248
    %1908 = vmatpush1.bf16.msra.mxu0 %v1247
    %1909 = vmatprep.subr.bf16.mxu0 %v1252
    %1910 = vmatpush1.bf16.msra.mxu0 %v1251
    %1911 = vmatprep.subr.bf16.mxu0 %v1256
    %1912 = vmatpush1.bf16.msra.mxu0 %v1255
    %1913 = vmatprep.subr.bf16.mxu0 %v1260
    %1914 = vmatpush1.bf16.msra.mxu0 %v1259
    %1915 = vmatprep.subr.bf16.mxu0 %v1264
    %1916 = vmatpush1.bf16.msra.mxu0 %v1263
    %1917 = vmatprep.subr.bf16.mxu0 %v1268
    %1918 = vmatpush1.bf16.msra.mxu0 %v1267
    %1919 = vmatprep.subr.bf16.mxu0 %v1272
    %1920 = vmatpush1.bf16.msra.mxu0 %v1271
    %1921 = vmatprep.subr.bf16.mxu0 %v1276
    %1922 = vmatpush1.bf16.msra.mxu0 %v1275
    %1923 = vmatprep.subr.bf16.mxu0 %v1280
    %1924 = vmatpush1.bf16.msra.mxu0 %v1279
    %1925 = vmatprep.mubr.bf16.mxu0 %v434
    %1926 = vmatmul.mubr.bf16.gmra.mrb[0].mxu0 %v433
    %v1927 = vpop.f32.mrb[0].mxu0
    %v1928 = vadd.f32 %v412, %v1927
    %v1929 = vpop.f32.mrb[0].mxu0
    %v1930 = vadd.f32 %v416, %v1929
    %v1931 = vpop.f32.mrb[0].mxu0
    %v1932 = vpop.f32.mrb[0].mxu0
    %1933 = vdwg.mxu0
    %1934 = vmatprep.subr.bf16.mxu0 %v1284
    %1935 = vmatpush1.bf16.msra.mxu0 %v1283
    %1936 = vmatprep.subr.bf16.mxu0 %v1288
    %1937 = vmatpush1.bf16.msra.mxu0 %v1287
    %1938 = vmatprep.subr.bf16.mxu0 %v1292
    %1939 = vmatpush1.bf16.msra.mxu0 %v1291
    %1940 = vmatprep.subr.bf16.mxu0 %v1296
    %1941 = vmatpush1.bf16.msra.mxu0 %v1295
    %1942 = vmatprep.subr.bf16.mxu0 %v1300
    %1943 = vmatpush1.bf16.msra.mxu0 %v1299
    %1944 = vmatprep.subr.bf16.mxu0 %v1304
    %1945 = vmatpush1.bf16.msra.mxu0 %v1303
    %1946 = vmatprep.subr.bf16.mxu0 %v1308
    %1947 = vmatpush1.bf16.msra.mxu0 %v1307
    %1948 = vmatprep.subr.bf16.mxu0 %v1312
    %1949 = vmatpush1.bf16.msra.mxu0 %v1311
    %1950 = vmatprep.subr.bf16.mxu0 %v1316
    %1951 = vmatpush1.bf16.msra.mxu0 %v1315
    %1952 = vmatprep.subr.bf16.mxu0 %v1320
    %1953 = vmatpush1.bf16.msra.mxu0 %v1319
    %1954 = vmatprep.subr.bf16.mxu0 %v1324
    %1955 = vmatpush1.bf16.msra.mxu0 %v1323
    %1956 = vmatprep.subr.bf16.mxu0 %v1328
    %1957 = vmatpush1.bf16.msra.mxu0 %v1327
    %1958 = vmatprep.subr.bf16.mxu0 %v1332
    %1959 = vmatpush1.bf16.msra.mxu0 %v1331
    %1960 = vmatprep.subr.bf16.mxu0 %v1336
    %1961 = vmatpush1.bf16.msra.mxu0 %v1335
    %1962 = vmatprep.subr.bf16.mxu0 %v1340
    %1963 = vmatpush1.bf16.msra.mxu0 %v1339
    %1964 = vmatprep.subr.bf16.mxu0 %v1344
    %1965 = vmatpush1.bf16.msra.mxu0 %v1343
    %1966 = vmatprep.mubr.bf16.mxu0 %v436
    %1967 = vmatmul.mubr.bf16.gmra.mrb[0].mxu0 %v435
    %v1968 = vpop.f32.mrb[0].mxu0
    %v1969 = vadd.f32 %v1928, %v1968
    %v1970 = vpop.f32.mrb[0].mxu0
    %v1971 = vadd.f32 %v1930, %v1970
    %v1972 = vpop.f32.mrb[0].mxu0
    %v1973 = vpop.f32.mrb[0].mxu0
    %1974 = vdwg.mxu0
    %1975 = vmatprep.subr.bf16.mxu0 %v1348
    %1976 = vmatpush1.bf16.msra.mxu0 %v1347
    %1977 = vmatprep.subr.bf16.mxu0 %v1352
    %1978 = vmatpush1.bf16.msra.mxu0 %v1351
    %1979 = vmatprep.subr.bf16.mxu0 %v1356
    %1980 = vmatpush1.bf16.msra.mxu0 %v1355
    %1981 = vmatprep.subr.bf16.mxu0 %v1360
    %1982 = vmatpush1.bf16.msra.mxu0 %v1359
    %1983 = vmatprep.subr.bf16.mxu0 %v1364
    %1984 = vmatpush1.bf16.msra.mxu0 %v1363
    %1985 = vmatprep.subr.bf16.mxu0 %v1368
    %1986 = vmatpush1.bf16.msra.mxu0 %v1367
    %1987 = vmatprep.subr.bf16.mxu0 %v1372
    %1988 = vmatpush1.bf16.msra.mxu0 %v1371
    %1989 = vmatprep.subr.bf16.mxu0 %v1376
    %1990 = vmatpush1.bf16.msra.mxu0 %v1375
    %1991 = vmatprep.subr.bf16.mxu0 %v1380
    %1992 = vmatpush1.bf16.msra.mxu0 %v1379
    %1993 = vmatprep.subr.bf16.mxu0 %v1384
    %1994 = vmatpush1.bf16.msra.mxu0 %v1383
    %1995 = vmatprep.subr.bf16.mxu0 %v1388
    %1996 = vmatpush1.bf16.msra.mxu0 %v1387
    %1997 = vmatprep.subr.bf16.mxu0 %v1392
    %1998 = vmatpush1.bf16.msra.mxu0 %v1391
    %1999 = vmatprep.subr.bf16.mxu0 %v1396
    %2000 = vmatpush1.bf16.msra.mxu0 %v1395
    %2001 = vmatprep.subr.bf16.mxu0 %v1400
    %2002 = vmatpush1.bf16.msra.mxu0 %v1399
    %2003 = vmatprep.subr.bf16.mxu0 %v1404
    %2004 = vmatpush1.bf16.msra.mxu0 %v1403
    %2005 = vmatprep.subr.bf16.mxu0 %v1408
    %2006 = vmatpush1.bf16.msra.mxu0 %v1407
    %2007 = vmatprep.mubr.bf16.mxu0 %v438
    %2008 = vmatmul.mubr.bf16.gmra.mrb[0].mxu0 %v437
    %v2009 = vpop.f32.mrb[0].mxu0
    %v2010 = vadd.f32 %v1969, %v2009
    %v2011 = vpop.f32.mrb[0].mxu0
    %v2012 = vadd.f32 %v1971, %v2011
    %v2013 = vpop.f32.mrb[0].mxu0
    %v2014 = vpop.f32.mrb[0].mxu0
    %2015 = vdwg.mxu0
    %2016 = vmatprep.subr.bf16.mxu0 %v1412
    %2017 = vmatpush1.bf16.msra.mxu0 %v1411
    %2018 = vmatprep.subr.bf16.mxu0 %v1416
    %2019 = vmatpush1.bf16.msra.mxu0 %v1415
    %2020 = vmatprep.subr.bf16.mxu0 %v1420
    %2021 = vmatpush1.bf16.msra.mxu0 %v1419
    %2022 = vmatprep.subr.bf16.mxu0 %v1424
    %2023 = vmatpush1.bf16.msra.mxu0 %v1423
    %2024 = vmatprep.subr.bf16.mxu0 %v1428
    %2025 = vmatpush1.bf16.msra.mxu0 %v1427
    %2026 = vmatprep.subr.bf16.mxu0 %v1432
    %2027 = vmatpush1.bf16.msra.mxu0 %v1431
    %2028 = vmatprep.subr.bf16.mxu0 %v1436
    %2029 = vmatpush1.bf16.msra.mxu0 %v1435
    %2030 = vmatprep.subr.bf16.mxu0 %v1440
    %2031 = vmatpush1.bf16.msra.mxu0 %v1439
    %2032 = vmatprep.subr.bf16.mxu0 %v1444
    %2033 = vmatpush1.bf16.msra.mxu0 %v1443
    %2034 = vmatprep.subr.bf16.mxu0 %v1448
    %2035 = vmatpush1.bf16.msra.mxu0 %v1447
    %2036 = vmatprep.subr.bf16.mxu0 %v1452
    %2037 = vmatpush1.bf16.msra.mxu0 %v1451
    %2038 = vmatprep.subr.bf16.mxu0 %v1456
    %2039 = vmatpush1.bf16.msra.mxu0 %v1455
    %2040 = vmatprep.subr.bf16.mxu0 %v1460
    %2041 = vmatpush1.bf16.msra.mxu0 %v1459
    %2042 = vmatprep.subr.bf16.mxu0 %v1464
    %2043 = vmatpush1.bf16.msra.mxu0 %v1463
    %2044 = vmatprep.subr.bf16.mxu0 %v1468
    %2045 = vmatpush1.bf16.msra.mxu0 %v1467
    %2046 = vmatprep.subr.bf16.mxu0 %v1472
    %2047 = vmatpush1.bf16.msra.mxu0 %v1471
    %2048 = vmatprep.mubr.bf16.mxu0 %v440
    %2049 = vmatmul.mubr.bf16.gmra.mrb[0].mxu0 %v439
    %v2050 = vpop.f32.mrb[0].mxu0
    %v2051 = vadd.f32 %v2010, %v2050
    %v2052 = vpop.f32.mrb[0].mxu0
    %v2053 = vadd.f32 %v2012, %v2052
    %v2054 = vpop.f32.mrb[0].mxu0
    %v2055 = vpop.f32.mrb[0].mxu0
    %2056 = vdwg.mxu0
    %v2057 = vmax.f32 %v1887, 0.0
    %v2058 = vmax.f32 %v1889, 0.0
    %v2059 = vmax.f32 %v2051, 0.0
    %v2060 = vmax.f32 %v2053, 0.0
    %v2061 = vpack.c.bf16 %v2057, %v2057
    %v2062 = vpack.c.bf16 %v2058, %v2058
    %v2063 = vpack.c.bf16 %v2059, %v2059
    %v2064 = vpack.c.bf16 %v2060, %v2060
    %v2065 = vld [vmem:[#allocation7] sm:$0xff]
    %v2066 = vld [vmem:[#allocation7 + $0x8] sm:$0xff]
    %v2067 = vld [vmem:[#allocation7 + $0x10] sm:$0xff]
    %v2068 = vld [vmem:[#allocation7 + $0x18] sm:$0xff]
    %v2069 = vld [vmem:[#allocation7 + $0x20] sm:$0xff]
    %v2070 = vld [vmem:[#allocation7 + $0x28] sm:$0xff]
    %v2071 = vld [vmem:[#allocation7 + $0x30] sm:$0xff]
    %v2072 = vld [vmem:[#allocation7 + $0x38] sm:$0xff]
    %v2073 = vld [vmem:[#allocation7 + $0x40] sm:$0xff]
    %v2074 = vld [vmem:[#allocation7 + $0x48] sm:$0xff]
    %v2075 = vld [vmem:[#allocation7 + $0x50] sm:$0xff]
    %v2076 = vld [vmem:[#allocation7 + $0x58] sm:$0xff]
    %v2077 = vld [vmem:[#allocation7 + $0x60] sm:$0xff]
    %v2078 = vld [vmem:[#allocation7 + $0x68] sm:$0xff]
    %v2079 = vld [vmem:[#allocation7 + $0x70] sm:$0xff]
    %v2080 = vld [vmem:[#allocation7 + $0x78] sm:$0xff]
    %v2081 = vld [vmem:[#allocation7 + $0x80] sm:$0xff]
    %v2082 = vld [vmem:[#allocation7 + $0x88] sm:$0xff]
    %v2083 = vld [vmem:[#allocation7 + $0x90] sm:$0xff]
    %v2084 = vld [vmem:[#allocation7 + $0x98] sm:$0xff]
    %v2085 = vld [vmem:[#allocation7 + $0xa0] sm:$0xff]
    %v2086 = vld [vmem:[#allocation7 + $0xa8] sm:$0xff]
    %v2087 = vld [vmem:[#allocation7 + $0xb0] sm:$0xff]
    %v2088 = vld [vmem:[#allocation7 + $0xb8] sm:$0xff]
    %v2089 = vld [vmem:[#allocation7 + $0xc0] sm:$0xff]
    %v2090 = vld [vmem:[#allocation7 + $0xc8] sm:$0xff]
    %v2091 = vld [vmem:[#allocation7 + $0xd0] sm:$0xff]
    %v2092 = vld [vmem:[#allocation7 + $0xd8] sm:$0xff]
    %v2093 = vld [vmem:[#allocation7 + $0xe0] sm:$0xff]
    %v2094 = vld [vmem:[#allocation7 + $0xe8] sm:$0xff]
    %v2095 = vld [vmem:[#allocation7 + $0xf0] sm:$0xff]
    %v2096 = vld [vmem:[#allocation7 + $0xf8] sm:$0xff]
    %v2097 = vld [vmem:[#allocation7 + $0x100] sm:$0xff]
    %v2098 = vld [vmem:[#allocation7 + $0x108] sm:$0xff]
    %v2099 = vld [vmem:[#allocation7 + $0x110] sm:$0xff]
    %v2100 = vld [vmem:[#allocation7 + $0x118] sm:$0xff]
    %v2101 = vld [vmem:[#allocation7 + $0x120] sm:$0xff]
    %v2102 = vld [vmem:[#allocation7 + $0x128] sm:$0xff]
    %v2103 = vld [vmem:[#allocation7 + $0x130] sm:$0xff]
    %v2104 = vld [vmem:[#allocation7 + $0x138] sm:$0xff]
    %v2105 = vld [vmem:[#allocation7 + $0x140] sm:$0xff]
    %v2106 = vld [vmem:[#allocation7 + $0x148] sm:$0xff]
    %v2107 = vld [vmem:[#allocation7 + $0x150] sm:$0xff]
    %v2108 = vld [vmem:[#allocation7 + $0x158] sm:$0xff]
    %v2109 = vld [vmem:[#allocation7 + $0x160] sm:$0xff]
    %v2110 = vld [vmem:[#allocation7 + $0x168] sm:$0xff]
    %v2111 = vld [vmem:[#allocation7 + $0x170] sm:$0xff]
    %v2112 = vld [vmem:[#allocation7 + $0x178] sm:$0xff]
    %v2113 = vld [vmem:[#allocation7 + $0x180] sm:$0xff]
    %v2114 = vld [vmem:[#allocation7 + $0x188] sm:$0xff]
    %v2115 = vld [vmem:[#allocation7 + $0x190] sm:$0xff]
    %v2116 = vld [vmem:[#allocation7 + $0x198] sm:$0xff]
    %v2117 = vld [vmem:[#allocation7 + $0x1a0] sm:$0xff]
    %v2118 = vld [vmem:[#allocation7 + $0x1a8] sm:$0xff]
    %v2119 = vld [vmem:[#allocation7 + $0x1b0] sm:$0xff]
    %v2120 = vld [vmem:[#allocation7 + $0x1b8] sm:$0xff]
    %v2121 = vld [vmem:[#allocation7 + $0x1c0] sm:$0xff]
    %v2122 = vld [vmem:[#allocation7 + $0x1c8] sm:$0xff]
    %v2123 = vld [vmem:[#allocation7 + $0x1d0] sm:$0xff]
    %v2124 = vld [vmem:[#allocation7 + $0x1d8] sm:$0xff]
    %v2125 = vld [vmem:[#allocation7 + $0x1e0] sm:$0xff]
    %v2126 = vld [vmem:[#allocation7 + $0x1e8] sm:$0xff]
    %v2127 = vld [vmem:[#allocation7 + $0x1f0] sm:$0xff]
    %v2128 = vld [vmem:[#allocation7 + $0x1f8] sm:$0xff]
    %v2129 = vld [vmem:[%s4] sm:$0x3]
    %v2131 = vlaneseq
    %v2132 = vshrl.u32 %v2131, 7
    %v2133 = vsub.s32 0, %v2132
    %v2134 = vrot.slane %v2129, %v2133
    %v2135 = vlaneseq
    %v2136 = vshrl.u32 %v2135, 7
    %v2137 = vsub.s32 1, %v2136
    %v2138 = vrot.slane %v2129, %v2137
    %v2205 = vunpack.c.l.b16 %v2065
    %v2206 = vunpack.c.h.b16 %v2065
    %v2207 = vunpack.c.l.b16 %v2066
    %v2208 = vunpack.c.h.b16 %v2066
    %v2209 = vunpack.c.l.b16 %v2067
    %v2210 = vunpack.c.h.b16 %v2067
    %v2211 = vunpack.c.l.b16 %v2068
    %v2212 = vunpack.c.h.b16 %v2068
    %v2213 = vunpack.c.l.b16 %v2069
    %v2214 = vunpack.c.h.b16 %v2069
    %v2215 = vunpack.c.l.b16 %v2070
    %v2216 = vunpack.c.h.b16 %v2070
    %v2217 = vunpack.c.l.b16 %v2071
    %v2218 = vunpack.c.h.b16 %v2071
    %v2219 = vunpack.c.l.b16 %v2072
    %v2220 = vunpack.c.h.b16 %v2072
    %v2221 = vunpack.c.l.b16 %v2073
    %v2222 = vunpack.c.h.b16 %v2073
    %v2223 = vunpack.c.l.b16 %v2074
    %v2224 = vunpack.c.h.b16 %v2074
    %v2225 = vunpack.c.l.b16 %v2075
    %v2226 = vunpack.c.h.b16 %v2075
    %v2227 = vunpack.c.l.b16 %v2076
    %v2228 = vunpack.c.h.b16 %v2076
    %v2229 = vunpack.c.l.b16 %v2077
    %v2230 = vunpack.c.h.b16 %v2077
    %v2231 = vunpack.c.l.b16 %v2078
    %v2232 = vunpack.c.h.b16 %v2078
    %v2233 = vunpack.c.l.b16 %v2079
    %v2234 = vunpack.c.h.b16 %v2079
    %v2235 = vunpack.c.l.b16 %v2080
    %v2236 = vunpack.c.h.b16 %v2080
    %v2237 = vunpack.c.l.b16 %v2081
    %v2238 = vunpack.c.h.b16 %v2081
    %v2239 = vunpack.c.l.b16 %v2082
    %v2240 = vunpack.c.h.b16 %v2082
    %v2241 = vunpack.c.l.b16 %v2083
    %v2242 = vunpack.c.h.b16 %v2083
    %v2243 = vunpack.c.l.b16 %v2084
    %v2244 = vunpack.c.h.b16 %v2084
    %v2245 = vunpack.c.l.b16 %v2085
    %v2246 = vunpack.c.h.b16 %v2085
    %v2247 = vunpack.c.l.b16 %v2086
    %v2248 = vunpack.c.h.b16 %v2086
    %v2249 = vunpack.c.l.b16 %v2087
    %v2250 = vunpack.c.h.b16 %v2087
    %v2251 = vunpack.c.l.b16 %v2088
    %v2252 = vunpack.c.h.b16 %v2088
    %v2253 = vunpack.c.l.b16 %v2089
    %v2254 = vunpack.c.h.b16 %v2089
    %v2255 = vunpack.c.l.b16 %v2090
    %v2256 = vunpack.c.h.b16 %v2090
    %v2257 = vunpack.c.l.b16 %v2091
    %v2258 = vunpack.c.h.b16 %v2091
    %v2259 = vunpack.c.l.b16 %v2092
    %v2260 = vunpack.c.h.b16 %v2092
    %v2261 = vunpack.c.l.b16 %v2093
    %v2262 = vunpack.c.h.b16 %v2093
    %v2263 = vunpack.c.l.b16 %v2094
    %v2264 = vunpack.c.h.b16 %v2094
    %v2265 = vunpack.c.l.b16 %v2095
    %v2266 = vunpack.c.h.b16 %v2095
    %v2267 = vunpack.c.l.b16 %v2096
    %v2268 = vunpack.c.h.b16 %v2096
    %v2269 = vunpack.c.l.b16 %v2097
    %v2270 = vunpack.c.h.b16 %v2097
    %v2271 = vunpack.c.l.b16 %v2098
    %v2272 = vunpack.c.h.b16 %v2098
    %v2273 = vunpack.c.l.b16 %v2099
    %v2274 = vunpack.c.h.b16 %v2099
    %v2275 = vunpack.c.l.b16 %v2100
    %v2276 = vunpack.c.h.b16 %v2100
    %v2277 = vunpack.c.l.b16 %v2101
    %v2278 = vunpack.c.h.b16 %v2101
    %v2279 = vunpack.c.l.b16 %v2102
    %v2280 = vunpack.c.h.b16 %v2102
    %v2281 = vunpack.c.l.b16 %v2103
    %v2282 = vunpack.c.h.b16 %v2103
    %v2283 = vunpack.c.l.b16 %v2104
    %v2284 = vunpack.c.h.b16 %v2104
    %v2285 = vunpack.c.l.b16 %v2105
    %v2286 = vunpack.c.h.b16 %v2105
    %v2287 = vunpack.c.l.b16 %v2106
    %v2288 = vunpack.c.h.b16 %v2106
    %v2289 = vunpack.c.l.b16 %v2107
    %v2290 = vunpack.c.h.b16 %v2107
    %v2291 = vunpack.c.l.b16 %v2108
    %v2292 = vunpack.c.h.b16 %v2108
    %v2293 = vunpack.c.l.b16 %v2109
    %v2294 = vunpack.c.h.b16 %v2109
    %v2295 = vunpack.c.l.b16 %v2110
    %v2296 = vunpack.c.h.b16 %v2110
    %v2297 = vunpack.c.l.b16 %v2111
    %v2298 = vunpack.c.h.b16 %v2111
    %v2299 = vunpack.c.l.b16 %v2112
    %v2300 = vunpack.c.h.b16 %v2112
    %v2301 = vunpack.c.l.b16 %v2113
    %v2302 = vunpack.c.h.b16 %v2113
    %v2303 = vunpack.c.l.b16 %v2114
    %v2304 = vunpack.c.h.b16 %v2114
    %v2305 = vunpack.c.l.b16 %v2115
    %v2306 = vunpack.c.h.b16 %v2115
    %v2307 = vunpack.c.l.b16 %v2116
    %v2308 = vunpack.c.h.b16 %v2116
    %v2309 = vunpack.c.l.b16 %v2117
    %v2310 = vunpack.c.h.b16 %v2117
    %v2311 = vunpack.c.l.b16 %v2118
    %v2312 = vunpack.c.h.b16 %v2118
    %v2313 = vunpack.c.l.b16 %v2119
    %v2314 = vunpack.c.h.b16 %v2119
    %v2315 = vunpack.c.l.b16 %v2120
    %v2316 = vunpack.c.h.b16 %v2120
    %v2317 = vunpack.c.l.b16 %v2121
    %v2318 = vunpack.c.h.b16 %v2121
    %v2319 = vunpack.c.l.b16 %v2122
    %v2320 = vunpack.c.h.b16 %v2122
    %v2321 = vunpack.c.l.b16 %v2123
    %v2322 = vunpack.c.h.b16 %v2123
    %v2323 = vunpack.c.l.b16 %v2124
    %v2324 = vunpack.c.h.b16 %v2124
    %v2325 = vunpack.c.l.b16 %v2125
    %v2326 = vunpack.c.h.b16 %v2125
    %v2327 = vunpack.c.l.b16 %v2126
    %v2328 = vunpack.c.h.b16 %v2126
    %v2329 = vunpack.c.l.b16 %v2127
    %v2330 = vunpack.c.h.b16 %v2127
    %v2331 = vunpack.c.l.b16 %v2128
    %v2332 = vunpack.c.h.b16 %v2128
    %v2333 = vpack.c.b16 %v2207, %v2205
    %v2334 = vpack.c.b16 %v2208, %v2206
    %v2335 = vpack.c.b16 %v2211, %v2209
    %v2336 = vpack.c.b16 %v2212, %v2210
    %v2337 = vpack.c.b16 %v2215, %v2213
    %v2338 = vpack.c.b16 %v2216, %v2214
    %v2339 = vpack.c.b16 %v2219, %v2217
    %v2340 = vpack.c.b16 %v2220, %v2218
    %v2341 = vpack.c.b16 %v2223, %v2221
    %v2342 = vpack.c.b16 %v2224, %v2222
    %v2343 = vpack.c.b16 %v2227, %v2225
    %v2344 = vpack.c.b16 %v2228, %v2226
    %v2345 = vpack.c.b16 %v2231, %v2229
    %v2346 = vpack.c.b16 %v2232, %v2230
    %v2347 = vpack.c.b16 %v2235, %v2233
    %v2348 = vpack.c.b16 %v2236, %v2234
    %v2349 = vpack.c.b16 %v2239, %v2237
    %v2350 = vpack.c.b16 %v2240, %v2238
    %v2351 = vpack.c.b16 %v2243, %v2241
    %v2352 = vpack.c.b16 %v2244, %v2242
    %v2353 = vpack.c.b16 %v2247, %v2245
    %v2354 = vpack.c.b16 %v2248, %v2246
    %v2355 = vpack.c.b16 %v2251, %v2249
    %v2356 = vpack.c.b16 %v2252, %v2250
    %v2357 = vpack.c.b16 %v2255, %v2253
    %v2358 = vpack.c.b16 %v2256, %v2254
    %v2359 = vpack.c.b16 %v2259, %v2257
    %v2360 = vpack.c.b16 %v2260, %v2258
    %v2361 = vpack.c.b16 %v2263, %v2261
    %v2362 = vpack.c.b16 %v2264, %v2262
    %v2363 = vpack.c.b16 %v2267, %v2265
    %v2364 = vpack.c.b16 %v2268, %v2266
    %v2365 = vpack.c.b16 %v2271, %v2269
    %v2366 = vpack.c.b16 %v2272, %v2270
    %v2367 = vpack.c.b16 %v2275, %v2273
    %v2368 = vpack.c.b16 %v2276, %v2274
    %v2369 = vpack.c.b16 %v2279, %v2277
    %v2370 = vpack.c.b16 %v2280, %v2278
    %v2371 = vpack.c.b16 %v2283, %v2281
    %v2372 = vpack.c.b16 %v2284, %v2282
    %v2373 = vpack.c.b16 %v2287, %v2285
    %v2374 = vpack.c.b16 %v2288, %v2286
    %v2375 = vpack.c.b16 %v2291, %v2289
    %v2376 = vpack.c.b16 %v2292, %v2290
    %v2377 = vpack.c.b16 %v2295, %v2293
    %v2378 = vpack.c.b16 %v2296, %v2294
    %v2379 = vpack.c.b16 %v2299, %v2297
    %v2380 = vpack.c.b16 %v2300, %v2298
    %v2381 = vpack.c.b16 %v2303, %v2301
    %v2382 = vpack.c.b16 %v2304, %v2302
    %v2383 = vpack.c.b16 %v2307, %v2305
    %v2384 = vpack.c.b16 %v2308, %v2306
    %v2385 = vpack.c.b16 %v2311, %v2309
    %v2386 = vpack.c.b16 %v2312, %v2310
    %v2387 = vpack.c.b16 %v2315, %v2313
    %v2388 = vpack.c.b16 %v2316, %v2314
    %v2389 = vpack.c.b16 %v2319, %v2317
    %v2390 = vpack.c.b16 %v2320, %v2318
    %v2391 = vpack.c.b16 %v2323, %v2321
    %v2392 = vpack.c.b16 %v2324, %v2322
    %v2393 = vpack.c.b16 %v2327, %v2325
    %v2394 = vpack.c.b16 %v2328, %v2326
    %v2395 = vpack.c.b16 %v2331, %v2329
    %v2396 = vpack.c.b16 %v2332, %v2330
    %2461 = vmatprep.subr.bf16.mxu0 %v2334
    %2462 = vmatpush1.bf16.msra.mxu0 %v2333
    %2463 = vmatprep.subr.bf16.mxu0 %v2336
    %2464 = vmatpush1.bf16.msra.mxu0 %v2335
    %2465 = vmatprep.subr.bf16.mxu0 %v2338
    %2466 = vmatpush1.bf16.msra.mxu0 %v2337
    %2467 = vmatprep.subr.bf16.mxu0 %v2340
    %2468 = vmatpush1.bf16.msra.mxu0 %v2339
    %2469 = vmatprep.subr.bf16.mxu0 %v2342
    %2470 = vmatpush1.bf16.msra.mxu0 %v2341
    %2471 = vmatprep.subr.bf16.mxu0 %v2344
    %2472 = vmatpush1.bf16.msra.mxu0 %v2343
    %2473 = vmatprep.subr.bf16.mxu0 %v2346
    %2474 = vmatpush1.bf16.msra.mxu0 %v2345
    %2475 = vmatprep.subr.bf16.mxu0 %v2348
    %2476 = vmatpush1.bf16.msra.mxu0 %v2347
    %2477 = vmatprep.subr.bf16.mxu0 %v2350
    %2478 = vmatpush1.bf16.msra.mxu0 %v2349
    %2479 = vmatprep.subr.bf16.mxu0 %v2352
    %2480 = vmatpush1.bf16.msra.mxu0 %v2351
    %2481 = vmatprep.subr.bf16.mxu0 %v2354
    %2482 = vmatpush1.bf16.msra.mxu0 %v2353
    %2483 = vmatprep.subr.bf16.mxu0 %v2356
    %2484 = vmatpush1.bf16.msra.mxu0 %v2355
    %2485 = vmatprep.subr.bf16.mxu0 %v2358
    %2486 = vmatpush1.bf16.msra.mxu0 %v2357
    %2487 = vmatprep.subr.bf16.mxu0 %v2360
    %2488 = vmatpush1.bf16.msra.mxu0 %v2359
    %2489 = vmatprep.subr.bf16.mxu0 %v2362
    %2490 = vmatpush1.bf16.msra.mxu0 %v2361
    %2491 = vmatprep.subr.bf16.mxu0 %v2364
    %2492 = vmatpush1.bf16.msra.mxu0 %v2363
    %2493 = vmatprep.mubr.bf16.mxu0 %v2062
    %2494 = vmatmul.mubr.bf16.gmra.mrb[0].mxu0 %v2061
    %v2495 = vpop.f32.mrb[0].mxu0
    %v2496 = vadd.f32 %v2134, %v2495
    %v2497 = vpop.f32.mrb[0].mxu0
    %v2498 = vadd.f32 %v2138, %v2497
    %v2499 = vpop.f32.mrb[0].mxu0
    %v2500 = vpop.f32.mrb[0].mxu0
    %2501 = vdwg.mxu0
    %2502 = vmatprep.subr.bf16.mxu0 %v2366
    %2503 = vmatpush1.bf16.msra.mxu0 %v2365
    %2504 = vmatprep.subr.bf16.mxu0 %v2368
    %2505 = vmatpush1.bf16.msra.mxu0 %v2367
    %2506 = vmatprep.subr.bf16.mxu0 %v2370
    %2507 = vmatpush1.bf16.msra.mxu0 %v2369
    %2508 = vmatprep.subr.bf16.mxu0 %v2372
    %2509 = vmatpush1.bf16.msra.mxu0 %v2371
    %2510 = vmatprep.subr.bf16.mxu0 %v2374
    %2511 = vmatpush1.bf16.msra.mxu0 %v2373
    %2512 = vmatprep.subr.bf16.mxu0 %v2376
    %2513 = vmatpush1.bf16.msra.mxu0 %v2375
    %2514 = vmatprep.subr.bf16.mxu0 %v2378
    %2515 = vmatpush1.bf16.msra.mxu0 %v2377
    %2516 = vmatprep.subr.bf16.mxu0 %v2380
    %2517 = vmatpush1.bf16.msra.mxu0 %v2379
    %2518 = vmatprep.subr.bf16.mxu0 %v2382
    %2519 = vmatpush1.bf16.msra.mxu0 %v2381
    %2520 = vmatprep.subr.bf16.mxu0 %v2384
    %2521 = vmatpush1.bf16.msra.mxu0 %v2383
    %2522 = vmatprep.subr.bf16.mxu0 %v2386
    %2523 = vmatpush1.bf16.msra.mxu0 %v2385
    %2524 = vmatprep.subr.bf16.mxu0 %v2388
    %2525 = vmatpush1.bf16.msra.mxu0 %v2387
    %2526 = vmatprep.subr.bf16.mxu0 %v2390
    %2527 = vmatpush1.bf16.msra.mxu0 %v2389
    %2528 = vmatprep.subr.bf16.mxu0 %v2392
    %2529 = vmatpush1.bf16.msra.mxu0 %v2391
    %2530 = vmatprep.subr.bf16.mxu0 %v2394
    %2531 = vmatpush1.bf16.msra.mxu0 %v2393
    %2532 = vmatprep.subr.bf16.mxu0 %v2396
    %2533 = vmatpush1.bf16.msra.mxu0 %v2395
    %2534 = vmatprep.mubr.bf16.mxu0 %v2064
    %2535 = vmatmul.mubr.bf16.gmra.mrb[0].mxu0 %v2063
    %v2536 = vpop.f32.mrb[0].mxu0
    %v2537 = vadd.f32 %v2496, %v2536
    %v2538 = vpop.f32.mrb[0].mxu0
    %v2539 = vadd.f32 %v2498, %v2538
    %v2540 = vpop.f32.mrb[0].mxu0
    %v2541 = vpop.f32.mrb[0].mxu0
    %2542 = vdwg.mxu0
    %v2543 = vmax.f32 %v2537, 0.0
    %v2544 = vmax.f32 %v2539, 0.0
    %v2545 = vpack.c.bf16 %v2543, %v2543
    %v2546 = vpack.c.bf16 %v2544, %v2544
    %v2547 = vld [vmem:[#allocation8] sm:$0xf]
    %v2548 = vld [vmem:[#allocation8 + $0x4] sm:$0xf]
    %v2549 = vld [vmem:[#allocation8 + $0x8] sm:$0xf]
    %v2550 = vld [vmem:[#allocation8 + $0xc] sm:$0xf]
    %v2551 = vld [vmem:[#allocation8 + $0x10] sm:$0xf]
    %v2552 = vld [vmem:[#allocation8 + $0x14] sm:$0xf]
    %v2553 = vld [vmem:[#allocation8 + $0x18] sm:$0xf]
    %v2554 = vld [vmem:[#allocation8 + $0x1c] sm:$0xf]
    %v2555 = vld [vmem:[#allocation8 + $0x20] sm:$0xf]
    %v2556 = vld [vmem:[#allocation8 + $0x24] sm:$0xf]
    %v2557 = vld [vmem:[#allocation8 + $0x28] sm:$0xf]
    %v2558 = vld [vmem:[#allocation8 + $0x2c] sm:$0xf]
    %v2559 = vld [vmem:[#allocation8 + $0x30] sm:$0xf]
    %v2560 = vld [vmem:[#allocation8 + $0x34] sm:$0xf]
    %v2561 = vld [vmem:[#allocation8 + $0x38] sm:$0xf]
    %v2562 = vld [vmem:[#allocation8 + $0x3c] sm:$0xf]
    %v2563 = vld [vmem:[#allocation8 + $0x40] sm:$0xf]
    %v2564 = vld [vmem:[#allocation8 + $0x44] sm:$0xf]
    %v2565 = vld [vmem:[#allocation8 + $0x48] sm:$0xf]
    %v2566 = vld [vmem:[#allocation8 + $0x4c] sm:$0xf]
    %v2567 = vld [vmem:[#allocation8 + $0x50] sm:$0xf]
    %v2568 = vld [vmem:[#allocation8 + $0x54] sm:$0xf]
    %v2569 = vld [vmem:[#allocation8 + $0x58] sm:$0xf]
    %v2570 = vld [vmem:[#allocation8 + $0x5c] sm:$0xf]
    %v2571 = vld [vmem:[#allocation8 + $0x60] sm:$0xf]
    %v2572 = vld [vmem:[#allocation8 + $0x64] sm:$0xf]
    %v2573 = vld [vmem:[#allocation8 + $0x68] sm:$0xf]
    %v2574 = vld [vmem:[#allocation8 + $0x6c] sm:$0xf]
    %v2575 = vld [vmem:[#allocation8 + $0x70] sm:$0xf]
    %v2576 = vld [vmem:[#allocation8 + $0x74] sm:$0xf]
    %v2577 = vld [vmem:[#allocation8 + $0x78] sm:$0xf]
    %v2578 = vld [vmem:[#allocation8 + $0x7c] sm:$0xf]
    %v2579 = vld [vmem:[%s6] sm:$0x1]
    %v2581 = vlaneseq
    %v2582 = vshrl.u32 %v2581, 7
    %v2583 = vsub.s32 0, %v2582
    %v2584 = vrot.slane %v2579, %v2583
    %v2618 = vunpack.c.l.b16 %v2547
    %v2619 = vunpack.c.l.b16 %v2548
    %v2620 = vunpack.c.l.b16 %v2549
    %v2621 = vunpack.c.l.b16 %v2550
    %v2622 = vunpack.c.l.b16 %v2551
    %v2623 = vunpack.c.l.b16 %v2552
    %v2624 = vunpack.c.l.b16 %v2553
    %v2625 = vunpack.c.l.b16 %v2554
    %v2626 = vunpack.c.l.b16 %v2555
    %v2627 = vunpack.c.l.b16 %v2556
    %v2628 = vunpack.c.l.b16 %v2557
    %v2629 = vunpack.c.l.b16 %v2558
    %v2630 = vunpack.c.l.b16 %v2559
    %v2631 = vunpack.c.l.b16 %v2560
    %v2632 = vunpack.c.l.b16 %v2561
    %v2633 = vunpack.c.l.b16 %v2562
    %v2634 = vunpack.c.l.b16 %v2563
    %v2635 = vunpack.c.l.b16 %v2564
    %v2636 = vunpack.c.l.b16 %v2565
    %v2637 = vunpack.c.l.b16 %v2566
    %v2638 = vunpack.c.l.b16 %v2567
    %v2639 = vunpack.c.l.b16 %v2568
    %v2640 = vunpack.c.l.b16 %v2569
    %v2641 = vunpack.c.l.b16 %v2570
    %v2642 = vunpack.c.l.b16 %v2571
    %v2643 = vunpack.c.l.b16 %v2572
    %v2644 = vunpack.c.l.b16 %v2573
    %v2645 = vunpack.c.l.b16 %v2574
    %v2646 = vunpack.c.l.b16 %v2575
    %v2647 = vunpack.c.l.b16 %v2576
    %v2648 = vunpack.c.l.b16 %v2577
    %v2649 = vunpack.c.l.b16 %v2578
    %v2650 = vpack.c.b16 %v2619, %v2618
    %v2651 = vpack.c.b16 %v2621, %v2620
    %v2652 = vpack.c.b16 %v2623, %v2622
    %v2653 = vpack.c.b16 %v2625, %v2624
    %v2654 = vpack.c.b16 %v2627, %v2626
    %v2655 = vpack.c.b16 %v2629, %v2628
    %v2656 = vpack.c.b16 %v2631, %v2630
    %v2657 = vpack.c.b16 %v2633, %v2632
    %v2658 = vpack.c.b16 %v2635, %v2634
    %v2659 = vpack.c.b16 %v2637, %v2636
    %v2660 = vpack.c.b16 %v2639, %v2638
    %v2661 = vpack.c.b16 %v2641, %v2640
    %v2662 = vpack.c.b16 %v2643, %v2642
    %v2663 = vpack.c.b16 %v2645, %v2644
    %v2664 = vpack.c.b16 %v2647, %v2646
    %v2665 = vpack.c.b16 %v2649, %v2648
    %2682 = vmatprep.subr.bf16.mxu0 0
    %2683 = vmatpush1.bf16.msra.mxu0 %v2650
    %2684 = vmatprep.subr.bf16.mxu0 0
    %2685 = vmatpush1.bf16.msra.mxu0 %v2651
    %2686 = vmatprep.subr.bf16.mxu0 0
    %2687 = vmatpush1.bf16.msra.mxu0 %v2652
    %2688 = vmatprep.subr.bf16.mxu0 0
    %2689 = vmatpush1.bf16.msra.mxu0 %v2653
    %2690 = vmatprep.subr.bf16.mxu0 0
    %2691 = vmatpush1.bf16.msra.mxu0 %v2654
    %2692 = vmatprep.subr.bf16.mxu0 0
    %2693 = vmatpush1.bf16.msra.mxu0 %v2655
    %2694 = vmatprep.subr.bf16.mxu0 0
    %2695 = vmatpush1.bf16.msra.mxu0 %v2656
    %2696 = vmatprep.subr.bf16.mxu0 0
    %2697 = vmatpush1.bf16.msra.mxu0 %v2657
    %2698 = vmatprep.subr.bf16.mxu0 0
    %2699 = vmatpush1.bf16.msra.mxu0 %v2658
    %2700 = vmatprep.subr.bf16.mxu0 0
    %2701 = vmatpush1.bf16.msra.mxu0 %v2659
    %2702 = vmatprep.subr.bf16.mxu0 0
    %2703 = vmatpush1.bf16.msra.mxu0 %v2660
    %2704 = vmatprep.subr.bf16.mxu0 0
    %2705 = vmatpush1.bf16.msra.mxu0 %v2661
    %2706 = vmatprep.subr.bf16.mxu0 0
    %2707 = vmatpush1.bf16.msra.mxu0 %v2662
    %2708 = vmatprep.subr.bf16.mxu0 0
    %2709 = vmatpush1.bf16.msra.mxu0 %v2663
    %2710 = vmatprep.subr.bf16.mxu0 0
    %2711 = vmatpush1.bf16.msra.mxu0 %v2664
    %2712 = vmatprep.subr.bf16.mxu0 0
    %2713 = vmatpush1.bf16.msra.mxu0 %v2665
    %2714 = vmatprep.mubr.bf16.mxu0 %v2546
    %2715 = vmatmul.mubr.bf16.gmra.mrb[0].mxu0 %v2545
    %v2716 = vpop.f32.mrb[0].mxu0
    %v2717 = vadd.f32 %v2584, %v2716
    %v2718 = vpop.f32.mrb[0].mxu0
    %v2719 = vpop.f32.mrb[0].mxu0
    %v2720 = vpop.f32.mrb[0].mxu0
    %2721 = vdwg.mxu0
    %v2722 = vpack.c.bf16 %v2717, %v2717
    %v2723 = vld [vmem:[#allocation10] sm:$0xff]
    %v2724 = vld [vmem:[#allocation10 + $0x8] sm:$0xff]
    %v2725 = vld [vmem:[#allocation10 + $0x10] sm:$0xff]
    %v2726 = vld [vmem:[#allocation10 + $0x18] sm:$0xff]
    %v2727 = vld [vmem:[#allocation10 + $0x20] sm:$0xff]
    %v2728 = vld [vmem:[#allocation10 + $0x28] sm:$0xff]
    %v2729 = vld [vmem:[#allocation10 + $0x30] sm:$0xff]
    %v2730 = vld [vmem:[#allocation10 + $0x38] sm:$0xff]
    %v2731 = vld [vmem:[#allocation10 + $0x40] sm:$0xff]
    %v2732 = vld [vmem:[#allocation10 + $0x48] sm:$0xff]
    %v2733 = vld [vmem:[#allocation10 + $0x50] sm:$0xff]
    %v2734 = vld [vmem:[#allocation10 + $0x58] sm:$0xff]
    %v2735 = vld [vmem:[#allocation10 + $0x60] sm:$0xff]
    %v2736 = vld [vmem:[#allocation10 + $0x68] sm:$0xff]
    %v2737 = vld [vmem:[#allocation10 + $0x70] sm:$0xff]
    %v2738 = vld [vmem:[#allocation10 + $0x78] sm:$0xff]
    %v2739 = vld [vmem:[%s8] sm:$0x3]
    %v2741 = vlaneseq
    %v2742 = vshrl.u32 %v2741, 7
    %v2743 = vsub.s32 0, %v2742
    %v2744 = vrot.slane %v2739, %v2743
    %v2745 = vlaneseq
    %v2746 = vshrl.u32 %v2745, 7
    %v2747 = vsub.s32 1, %v2746
    %v2748 = vrot.slane %v2739, %v2747
    %v2767 = vunpack.c.l.b16 %v2723
    %v2768 = vunpack.c.h.b16 %v2723
    %v2769 = vunpack.c.l.b16 %v2724
    %v2770 = vunpack.c.h.b16 %v2724
    %v2771 = vunpack.c.l.b16 %v2725
    %v2772 = vunpack.c.h.b16 %v2725
    %v2773 = vunpack.c.l.b16 %v2726
    %v2774 = vunpack.c.h.b16 %v2726
    %v2775 = vunpack.c.l.b16 %v2727
    %v2776 = vunpack.c.h.b16 %v2727
    %v2777 = vunpack.c.l.b16 %v2728
    %v2778 = vunpack.c.h.b16 %v2728
    %v2779 = vunpack.c.l.b16 %v2729
    %v2780 = vunpack.c.h.b16 %v2729
    %v2781 = vunpack.c.l.b16 %v2730
    %v2782 = vunpack.c.h.b16 %v2730
    %v2783 = vunpack.c.l.b16 %v2731
    %v2784 = vunpack.c.h.b16 %v2731
    %v2785 = vunpack.c.l.b16 %v2732
    %v2786 = vunpack.c.h.b16 %v2732
    %v2787 = vunpack.c.l.b16 %v2733
    %v2788 = vunpack.c.h.b16 %v2733
    %v2789 = vunpack.c.l.b16 %v2734
    %v2790 = vunpack.c.h.b16 %v2734
    %v2791 = vunpack.c.l.b16 %v2735
    %v2792 = vunpack.c.h.b16 %v2735
    %v2793 = vunpack.c.l.b16 %v2736
    %v2794 = vunpack.c.h.b16 %v2736
    %v2795 = vunpack.c.l.b16 %v2737
    %v2796 = vunpack.c.h.b16 %v2737
    %v2797 = vunpack.c.l.b16 %v2738
    %v2798 = vunpack.c.h.b16 %v2738
    %v2799 = vpack.c.b16 %v2769, %v2767
    %v2800 = vpack.c.b16 %v2770, %v2768
    %v2801 = vpack.c.b16 %v2773, %v2771
    %v2802 = vpack.c.b16 %v2774, %v2772
    %v2803 = vpack.c.b16 %v2777, %v2775
    %v2804 = vpack.c.b16 %v2778, %v2776
    %v2805 = vpack.c.b16 %v2781, %v2779
    %v2806 = vpack.c.b16 %v2782, %v2780
    %v2807 = vpack.c.b16 %v2785, %v2783
    %v2808 = vpack.c.b16 %v2786, %v2784
    %v2809 = vpack.c.b16 %v2789, %v2787
    %v2810 = vpack.c.b16 %v2790, %v2788
    %v2811 = vpack.c.b16 %v2793, %v2791
    %v2812 = vpack.c.b16 %v2794, %v2792
    %v2813 = vpack.c.b16 %v2797, %v2795
    %v2814 = vpack.c.b16 %v2798, %v2796
    %2831 = vmatprep.subr.bf16.mxu0 %v2800
    %2832 = vmatpush1.bf16.msra.mxu0 %v2799
    %2833 = vmatprep.subr.bf16.mxu0 %v2802
    %2834 = vmatpush1.bf16.msra.mxu0 %v2801
    %2835 = vmatprep.subr.bf16.mxu0 %v2804
    %2836 = vmatpush1.bf16.msra.mxu0 %v2803
    %2837 = vmatprep.subr.bf16.mxu0 %v2806
    %2838 = vmatpush1.bf16.msra.mxu0 %v2805
    %2839 = vmatprep.subr.bf16.mxu0 %v2808
    %2840 = vmatpush1.bf16.msra.mxu0 %v2807
    %2841 = vmatprep.subr.bf16.mxu0 %v2810
    %2842 = vmatpush1.bf16.msra.mxu0 %v2809
    %2843 = vmatprep.subr.bf16.mxu0 %v2812
    %2844 = vmatpush1.bf16.msra.mxu0 %v2811
    %2845 = vmatprep.subr.bf16.mxu0 %v2814
    %2846 = vmatpush1.bf16.msra.mxu0 %v2813
    %2847 = vmatprep.subr.bf16.mxu0 0
    %2848 = vmatpush1.bf16.msra.mxu0 0
    %2849 = vmatprep.subr.bf16.mxu0 0
    %2850 = vmatpush1.bf16.msra.mxu0 0
    %2851 = vmatprep.subr.bf16.mxu0 0
    %2852 = vmatpush1.bf16.msra.mxu0 0
    %2853 = vmatprep.subr.bf16.mxu0 0
    %2854 = vmatpush1.bf16.msra.mxu0 0
    %2855 = vmatprep.subr.bf16.mxu0 0
    %2856 = vmatpush1.bf16.msra.mxu0 0
    %2857 = vmatprep.subr.bf16.mxu0 0
    %2858 = vmatpush1.bf16.msra.mxu0 0
    %2859 = vmatprep.subr.bf16.mxu0 0
    %2860 = vmatpush1.bf16.msra.mxu0 0
    %2861 = vmatprep.subr.bf16.mxu0 0
    %2862 = vmatpush1.bf16.msra.mxu0 0
    %2863 = vmatprep.mubr.bf16.mxu0 0
    %2864 = vmatmul.mubr.bf16.gmra.mrb[0].mxu0 %v2722
    %v2865 = vpop.f32.mrb[0].mxu0
    %v2866 = vadd.f32 %v2744, %v2865
    %v2867 = vpop.f32.mrb[0].mxu0
    %v2868 = vadd.f32 %v2748, %v2867
    %v2869 = vpop.f32.mrb[0].mxu0
    %v2870 = vpop.f32.mrb[0].mxu0
    %2871 = vdwg.mxu0
    %v2872 = vmax.f32 %v2866, 0.0
    %v2873 = vmax.f32 %v2868, 0.0
    %v2874 = vpack.c.bf16 %v2872, %v2872
    %v2875 = vpack.c.bf16 %v2873, %v2873
    %v2876 = vld [vmem:[#allocation11] sm:$0xff]
    %v2877 = vld [vmem:[#allocation11 + $0x8] sm:$0xff]
    %v2878 = vld [vmem:[#allocation11 + $0x10] sm:$0xff]
    %v2879 = vld [vmem:[#allocation11 + $0x18] sm:$0xff]
    %v2880 = vld [vmem:[#allocation11 + $0x20] sm:$0xff]
    %v2881 = vld [vmem:[#allocation11 + $0x28] sm:$0xff]
    %v2882 = vld [vmem:[#allocation11 + $0x30] sm:$0xff]
    %v2883 = vld [vmem:[#allocation11 + $0x38] sm:$0xff]
    %v2884 = vld [vmem:[#allocation11 + $0x40] sm:$0xff]
    %v2885 = vld [vmem:[#allocation11 + $0x48] sm:$0xff]
    %v2886 = vld [vmem:[#allocation11 + $0x50] sm:$0xff]
    %v2887 = vld [vmem:[#allocation11 + $0x58] sm:$0xff]
    %v2888 = vld [vmem:[#allocation11 + $0x60] sm:$0xff]
    %v2889 = vld [vmem:[#allocation11 + $0x68] sm:$0xff]
    %v2890 = vld [vmem:[#allocation11 + $0x70] sm:$0xff]
    %v2891 = vld [vmem:[#allocation11 + $0x78] sm:$0xff]
    %v2892 = vld [vmem:[#allocation11 + $0x80] sm:$0xff]
    %v2893 = vld [vmem:[#allocation11 + $0x88] sm:$0xff]
    %v2894 = vld [vmem:[#allocation11 + $0x90] sm:$0xff]
    %v2895 = vld [vmem:[#allocation11 + $0x98] sm:$0xff]
    %v2896 = vld [vmem:[#allocation11 + $0xa0] sm:$0xff]
    %v2897 = vld [vmem:[#allocation11 + $0xa8] sm:$0xff]
    %v2898 = vld [vmem:[#allocation11 + $0xb0] sm:$0xff]
    %v2899 = vld [vmem:[#allocation11 + $0xb8] sm:$0xff]
    %v2900 = vld [vmem:[#allocation11 + $0xc0] sm:$0xff]
    %v2901 = vld [vmem:[#allocation11 + $0xc8] sm:$0xff]
    %v2902 = vld [vmem:[#allocation11 + $0xd0] sm:$0xff]
    %v2903 = vld [vmem:[#allocation11 + $0xd8] sm:$0xff]
    %v2904 = vld [vmem:[#allocation11 + $0xe0] sm:$0xff]
    %v2905 = vld [vmem:[#allocation11 + $0xe8] sm:$0xff]
    %v2906 = vld [vmem:[#allocation11 + $0xf0] sm:$0xff]
    %v2907 = vld [vmem:[#allocation11 + $0xf8] sm:$0xff]
    %v2908 = vld [vmem:[#allocation11 + $0x100] sm:$0xff]
    %v2909 = vld [vmem:[#allocation11 + $0x108] sm:$0xff]
    %v2910 = vld [vmem:[#allocation11 + $0x110] sm:$0xff]
    %v2911 = vld [vmem:[#allocation11 + $0x118] sm:$0xff]
    %v2912 = vld [vmem:[#allocation11 + $0x120] sm:$0xff]
    %v2913 = vld [vmem:[#allocation11 + $0x128] sm:$0xff]
    %v2914 = vld [vmem:[#allocation11 + $0x130] sm:$0xff]
    %v2915 = vld [vmem:[#allocation11 + $0x138] sm:$0xff]
    %v2916 = vld [vmem:[#allocation11 + $0x140] sm:$0xff]
    %v2917 = vld [vmem:[#allocation11 + $0x148] sm:$0xff]
    %v2918 = vld [vmem:[#allocation11 + $0x150] sm:$0xff]
    %v2919 = vld [vmem:[#allocation11 + $0x158] sm:$0xff]
    %v2920 = vld [vmem:[#allocation11 + $0x160] sm:$0xff]
    %v2921 = vld [vmem:[#allocation11 + $0x168] sm:$0xff]
    %v2922 = vld [vmem:[#allocation11 + $0x170] sm:$0xff]
    %v2923 = vld [vmem:[#allocation11 + $0x178] sm:$0xff]
    %v2924 = vld [vmem:[#allocation11 + $0x180] sm:$0xff]
    %v2925 = vld [vmem:[#allocation11 + $0x188] sm:$0xff]
    %v2926 = vld [vmem:[#allocation11 + $0x190] sm:$0xff]
    %v2927 = vld [vmem:[#allocation11 + $0x198] sm:$0xff]
    %v2928 = vld [vmem:[#allocation11 + $0x1a0] sm:$0xff]
    %v2929 = vld [vmem:[#allocation11 + $0x1a8] sm:$0xff]
    %v2930 = vld [vmem:[#allocation11 + $0x1b0] sm:$0xff]
    %v2931 = vld [vmem:[#allocation11 + $0x1b8] sm:$0xff]
    %v2932 = vld [vmem:[#allocation11 + $0x1c0] sm:$0xff]
    %v2933 = vld [vmem:[#allocation11 + $0x1c8] sm:$0xff]
    %v2934 = vld [vmem:[#allocation11 + $0x1d0] sm:$0xff]
    %v2935 = vld [vmem:[#allocation11 + $0x1d8] sm:$0xff]
    %v2936 = vld [vmem:[#allocation11 + $0x1e0] sm:$0xff]
    %v2937 = vld [vmem:[#allocation11 + $0x1e8] sm:$0xff]
    %v2938 = vld [vmem:[#allocation11 + $0x1f0] sm:$0xff]
    %v2939 = vld [vmem:[#allocation11 + $0x1f8] sm:$0xff]
    %v2940 = vld [vmem:[%s10] sm:$0xf]
    %v2942 = vlaneseq
    %v2943 = vshrl.u32 %v2942, 7
    %v2944 = vsub.s32 0, %v2943
    %v2945 = vrot.slane %v2940, %v2944
    %v2946 = vlaneseq
    %v2947 = vshrl.u32 %v2946, 7
    %v2948 = vsub.s32 1, %v2947
    %v2949 = vrot.slane %v2940, %v2948
    %v2950 = vlaneseq
    %v2951 = vshrl.u32 %v2950, 7
    %v2952 = vsub.s32 2, %v2951
    %v2953 = vrot.slane %v2940, %v2952
    %v2954 = vlaneseq
    %v2955 = vshrl.u32 %v2954, 7
    %v2956 = vsub.s32 3, %v2955
    %v2957 = vrot.slane %v2940, %v2956
    %v3026 = vunpack.c.l.b16 %v2876
    %v3027 = vunpack.c.h.b16 %v2876
    %v3028 = vunpack.c.l.b16 %v2877
    %v3029 = vunpack.c.h.b16 %v2877
    %v3030 = vunpack.c.l.b16 %v2878
    %v3031 = vunpack.c.h.b16 %v2878
    %v3032 = vunpack.c.l.b16 %v2879
    %v3033 = vunpack.c.h.b16 %v2879
    %v3034 = vunpack.c.l.b16 %v2880
    %v3035 = vunpack.c.h.b16 %v2880
    %v3036 = vunpack.c.l.b16 %v2881
    %v3037 = vunpack.c.h.b16 %v2881
    %v3038 = vunpack.c.l.b16 %v2882
    %v3039 = vunpack.c.h.b16 %v2882
    %v3040 = vunpack.c.l.b16 %v2883
    %v3041 = vunpack.c.h.b16 %v2883
    %v3042 = vunpack.c.l.b16 %v2884
    %v3043 = vunpack.c.h.b16 %v2884
    %v3044 = vunpack.c.l.b16 %v2885
    %v3045 = vunpack.c.h.b16 %v2885
    %v3046 = vunpack.c.l.b16 %v2886
    %v3047 = vunpack.c.h.b16 %v2886
    %v3048 = vunpack.c.l.b16 %v2887
    %v3049 = vunpack.c.h.b16 %v2887
    %v3050 = vunpack.c.l.b16 %v2888
    %v3051 = vunpack.c.h.b16 %v2888
    %v3052 = vunpack.c.l.b16 %v2889
    %v3053 = vunpack.c.h.b16 %v2889
    %v3054 = vunpack.c.l.b16 %v2890
    %v3055 = vunpack.c.h.b16 %v2890
    %v3056 = vunpack.c.l.b16 %v2891
    %v3057 = vunpack.c.h.b16 %v2891
    %v3058 = vunpack.c.l.b16 %v2892
    %v3059 = vunpack.c.h.b16 %v2892
    %v3060 = vunpack.c.l.b16 %v2893
    %v3061 = vunpack.c.h.b16 %v2893
    %v3062 = vunpack.c.l.b16 %v2894
    %v3063 = vunpack.c.h.b16 %v2894
    %v3064 = vunpack.c.l.b16 %v2895
    %v3065 = vunpack.c.h.b16 %v2895
    %v3066 = vunpack.c.l.b16 %v2896
    %v3067 = vunpack.c.h.b16 %v2896
    %v3068 = vunpack.c.l.b16 %v2897
    %v3069 = vunpack.c.h.b16 %v2897
    %v3070 = vunpack.c.l.b16 %v2898
    %v3071 = vunpack.c.h.b16 %v2898
    %v3072 = vunpack.c.l.b16 %v2899
    %v3073 = vunpack.c.h.b16 %v2899
    %v3074 = vunpack.c.l.b16 %v2900
    %v3075 = vunpack.c.h.b16 %v2900
    %v3076 = vunpack.c.l.b16 %v2901
    %v3077 = vunpack.c.h.b16 %v2901
    %v3078 = vunpack.c.l.b16 %v2902
    %v3079 = vunpack.c.h.b16 %v2902
    %v3080 = vunpack.c.l.b16 %v2903
    %v3081 = vunpack.c.h.b16 %v2903
    %v3082 = vunpack.c.l.b16 %v2904
    %v3083 = vunpack.c.h.b16 %v2904
    %v3084 = vunpack.c.l.b16 %v2905
    %v3085 = vunpack.c.h.b16 %v2905
    %v3086 = vunpack.c.l.b16 %v2906
    %v3087 = vunpack.c.h.b16 %v2906
    %v3088 = vunpack.c.l.b16 %v2907
    %v3089 = vunpack.c.h.b16 %v2907
    %v3090 = vunpack.c.l.b16 %v2908
    %v3091 = vunpack.c.h.b16 %v2908
    %v3092 = vunpack.c.l.b16 %v2909
    %v3093 = vunpack.c.h.b16 %v2909
    %v3094 = vunpack.c.l.b16 %v2910
    %v3095 = vunpack.c.h.b16 %v2910
    %v3096 = vunpack.c.l.b16 %v2911
    %v3097 = vunpack.c.h.b16 %v2911
    %v3098 = vunpack.c.l.b16 %v2912
    %v3099 = vunpack.c.h.b16 %v2912
    %v3100 = vunpack.c.l.b16 %v2913
    %v3101 = vunpack.c.h.b16 %v2913
    %v3102 = vunpack.c.l.b16 %v2914
    %v3103 = vunpack.c.h.b16 %v2914
    %v3104 = vunpack.c.l.b16 %v2915
    %v3105 = vunpack.c.h.b16 %v2915
    %v3106 = vunpack.c.l.b16 %v2916
    %v3107 = vunpack.c.h.b16 %v2916
    %v3108 = vunpack.c.l.b16 %v2917
    %v3109 = vunpack.c.h.b16 %v2917
    %v3110 = vunpack.c.l.b16 %v2918
    %v3111 = vunpack.c.h.b16 %v2918
    %v3112 = vunpack.c.l.b16 %v2919
    %v3113 = vunpack.c.h.b16 %v2919
    %v3114 = vunpack.c.l.b16 %v2920
    %v3115 = vunpack.c.h.b16 %v2920
    %v3116 = vunpack.c.l.b16 %v2921
    %v3117 = vunpack.c.h.b16 %v2921
    %v3118 = vunpack.c.l.b16 %v2922
    %v3119 = vunpack.c.h.b16 %v2922
    %v3120 = vunpack.c.l.b16 %v2923
    %v3121 = vunpack.c.h.b16 %v2923
    %v3122 = vunpack.c.l.b16 %v2924
    %v3123 = vunpack.c.h.b16 %v2924
    %v3124 = vunpack.c.l.b16 %v2925
    %v3125 = vunpack.c.h.b16 %v2925
    %v3126 = vunpack.c.l.b16 %v2926
    %v3127 = vunpack.c.h.b16 %v2926
    %v3128 = vunpack.c.l.b16 %v2927
    %v3129 = vunpack.c.h.b16 %v2927
    %v3130 = vunpack.c.l.b16 %v2928
    %v3131 = vunpack.c.h.b16 %v2928
    %v3132 = vunpack.c.l.b16 %v2929
    %v3133 = vunpack.c.h.b16 %v2929
    %v3134 = vunpack.c.l.b16 %v2930
    %v3135 = vunpack.c.h.b16 %v2930
    %v3136 = vunpack.c.l.b16 %v2931
    %v3137 = vunpack.c.h.b16 %v2931
    %v3138 = vunpack.c.l.b16 %v2932
    %v3139 = vunpack.c.h.b16 %v2932
    %v3140 = vunpack.c.l.b16 %v2933
    %v3141 = vunpack.c.h.b16 %v2933
    %v3142 = vunpack.c.l.b16 %v2934
    %v3143 = vunpack.c.h.b16 %v2934
    %v3144 = vunpack.c.l.b16 %v2935
    %v3145 = vunpack.c.h.b16 %v2935
    %v3146 = vunpack.c.l.b16 %v2936
    %v3147 = vunpack.c.h.b16 %v2936
    %v3148 = vunpack.c.l.b16 %v2937
    %v3149 = vunpack.c.h.b16 %v2937
    %v3150 = vunpack.c.l.b16 %v2938
    %v3151 = vunpack.c.h.b16 %v2938
    %v3152 = vunpack.c.l.b16 %v2939
    %v3153 = vunpack.c.h.b16 %v2939
    %v3154 = vpack.c.b16 %v3030, %v3026
    %v3155 = vpack.c.b16 %v3031, %v3027
    %v3156 = vpack.c.b16 %v3032, %v3028
    %v3157 = vpack.c.b16 %v3033, %v3029
    %v3158 = vpack.c.b16 %v3038, %v3034
    %v3159 = vpack.c.b16 %v3039, %v3035
    %v3160 = vpack.c.b16 %v3040, %v3036
    %v3161 = vpack.c.b16 %v3041, %v3037
    %v3162 = vpack.c.b16 %v3046, %v3042
    %v3163 = vpack.c.b16 %v3047, %v3043
    %v3164 = vpack.c.b16 %v3048, %v3044
    %v3165 = vpack.c.b16 %v3049, %v3045
    %v3166 = vpack.c.b16 %v3054, %v3050
    %v3167 = vpack.c.b16 %v3055, %v3051
    %v3168 = vpack.c.b16 %v3056, %v3052
    %v3169 = vpack.c.b16 %v3057, %v3053
    %v3170 = vpack.c.b16 %v3062, %v3058
    %v3171 = vpack.c.b16 %v3063, %v3059
    %v3172 = vpack.c.b16 %v3064, %v3060
    %v3173 = vpack.c.b16 %v3065, %v3061
    %v3174 = vpack.c.b16 %v3070, %v3066
    %v3175 = vpack.c.b16 %v3071, %v3067
    %v3176 = vpack.c.b16 %v3072, %v3068
    %v3177 = vpack.c.b16 %v3073, %v3069
    %v3178 = vpack.c.b16 %v3078, %v3074
    %v3179 = vpack.c.b16 %v3079, %v3075
    %v3180 = vpack.c.b16 %v3080, %v3076
    %v3181 = vpack.c.b16 %v3081, %v3077
    %v3182 = vpack.c.b16 %v3086, %v3082
    %v3183 = vpack.c.b16 %v3087, %v3083
    %v3184 = vpack.c.b16 %v3088, %v3084
    %v3185 = vpack.c.b16 %v3089, %v3085
    %v3186 = vpack.c.b16 %v3094, %v3090
    %v3187 = vpack.c.b16 %v3095, %v3091
    %v3188 = vpack.c.b16 %v3096, %v3092
    %v3189 = vpack.c.b16 %v3097, %v3093
    %v3190 = vpack.c.b16 %v3102, %v3098
    %v3191 = vpack.c.b16 %v3103, %v3099
    %v3192 = vpack.c.b16 %v3104, %v3100
    %v3193 = vpack.c.b16 %v3105, %v3101
    %v3194 = vpack.c.b16 %v3110, %v3106
    %v3195 = vpack.c.b16 %v3111, %v3107
    %v3196 = vpack.c.b16 %v3112, %v3108
    %v3197 = vpack.c.b16 %v3113, %v3109
    %v3198 = vpack.c.b16 %v3118, %v3114
    %v3199 = vpack.c.b16 %v3119, %v3115
    %v3200 = vpack.c.b16 %v3120, %v3116
    %v3201 = vpack.c.b16 %v3121, %v3117
    %v3202 = vpack.c.b16 %v3126, %v3122
    %v3203 = vpack.c.b16 %v3127, %v3123
    %v3204 = vpack.c.b16 %v3128, %v3124
    %v3205 = vpack.c.b16 %v3129, %v3125
    %v3206 = vpack.c.b16 %v3134, %v3130
    %v3207 = vpack.c.b16 %v3135, %v3131
    %v3208 = vpack.c.b16 %v3136, %v3132
    %v3209 = vpack.c.b16 %v3137, %v3133
    %v3210 = vpack.c.b16 %v3142, %v3138
    %v3211 = vpack.c.b16 %v3143, %v3139
    %v3212 = vpack.c.b16 %v3144, %v3140
    %v3213 = vpack.c.b16 %v3145, %v3141
    %v3214 = vpack.c.b16 %v3150, %v3146
    %v3215 = vpack.c.b16 %v3151, %v3147
    %v3216 = vpack.c.b16 %v3152, %v3148
    %v3217 = vpack.c.b16 %v3153, %v3149
    %3282 = vmatprep.subr.bf16.mxu0 %v3155
    %3283 = vmatpush1.bf16.msra.mxu0 %v3154
    %3284 = vmatprep.subr.bf16.mxu0 %v3159
    %3285 = vmatpush1.bf16.msra.mxu0 %v3158
    %3286 = vmatprep.subr.bf16.mxu0 %v3163
    %3287 = vmatpush1.bf16.msra.mxu0 %v3162
    %3288 = vmatprep.subr.bf16.mxu0 %v3167
    %3289 = vmatpush1.bf16.msra.mxu0 %v3166
    %3290 = vmatprep.subr.bf16.mxu0 %v3171
    %3291 = vmatpush1.bf16.msra.mxu0 %v3170
    %3292 = vmatprep.subr.bf16.mxu0 %v3175
    %3293 = vmatpush1.bf16.msra.mxu0 %v3174
    %3294 = vmatprep.subr.bf16.mxu0 %v3179
    %3295 = vmatpush1.bf16.msra.mxu0 %v3178
    %3296 = vmatprep.subr.bf16.mxu0 %v3183
    %3297 = vmatpush1.bf16.msra.mxu0 %v3182
    %3298 = vmatprep.subr.bf16.mxu0 %v3187
    %3299 = vmatpush1.bf16.msra.mxu0 %v3186
    %3300 = vmatprep.subr.bf16.mxu0 %v3191
    %3301 = vmatpush1.bf16.msra.mxu0 %v3190
    %3302 = vmatprep.subr.bf16.mxu0 %v3195
    %3303 = vmatpush1.bf16.msra.mxu0 %v3194
    %3304 = vmatprep.subr.bf16.mxu0 %v3199
    %3305 = vmatpush1.bf16.msra.mxu0 %v3198
    %3306 = vmatprep.subr.bf16.mxu0 %v3203
    %3307 = vmatpush1.bf16.msra.mxu0 %v3202
    %3308 = vmatprep.subr.bf16.mxu0 %v3207
    %3309 = vmatpush1.bf16.msra.mxu0 %v3206
    %3310 = vmatprep.subr.bf16.mxu0 %v3211
    %3311 = vmatpush1.bf16.msra.mxu0 %v3210
    %3312 = vmatprep.subr.bf16.mxu0 %v3215
    %3313 = vmatpush1.bf16.msra.mxu0 %v3214
    %3314 = vmatprep.mubr.bf16.mxu0 %v2875
    %3315 = vmatmul.mubr.bf16.gmra.mrb[0].mxu0 %v2874
    %v3316 = vpop.f32.mrb[0].mxu0
    %v3317 = vadd.f32 %v2945, %v3316
    %v3318 = vpop.f32.mrb[0].mxu0
    %v3319 = vadd.f32 %v2949, %v3318
    %v3320 = vpop.f32.mrb[0].mxu0
    %v3321 = vpop.f32.mrb[0].mxu0
    %3322 = vdwg.mxu0
    %3323 = vmatprep.subr.bf16.mxu0 %v3157
    %3324 = vmatpush1.bf16.msra.mxu0 %v3156
    %3325 = vmatprep.subr.bf16.mxu0 %v3161
    %3326 = vmatpush1.bf16.msra.mxu0 %v3160
    %3327 = vmatprep.subr.bf16.mxu0 %v3165
    %3328 = vmatpush1.bf16.msra.mxu0 %v3164
    %3329 = vmatprep.subr.bf16.mxu0 %v3169
    %3330 = vmatpush1.bf16.msra.mxu0 %v3168
    %3331 = vmatprep.subr.bf16.mxu0 %v3173
    %3332 = vmatpush1.bf16.msra.mxu0 %v3172
    %3333 = vmatprep.subr.bf16.mxu0 %v3177
    %3334 = vmatpush1.bf16.msra.mxu0 %v3176
    %3335 = vmatprep.subr.bf16.mxu0 %v3181
    %3336 = vmatpush1.bf16.msra.mxu0 %v3180
    %3337 = vmatprep.subr.bf16.mxu0 %v3185
    %3338 = vmatpush1.bf16.msra.mxu0 %v3184
    %3339 = vmatprep.subr.bf16.mxu0 %v3189
    %3340 = vmatpush1.bf16.msra.mxu0 %v3188
    %3341 = vmatprep.subr.bf16.mxu0 %v3193
    %3342 = vmatpush1.bf16.msra.mxu0 %v3192
    %3343 = vmatprep.subr.bf16.mxu0 %v3197
    %3344 = vmatpush1.bf16.msra.mxu0 %v3196
    %3345 = vmatprep.subr.bf16.mxu0 %v3201
    %3346 = vmatpush1.bf16.msra.mxu0 %v3200
    %3347 = vmatprep.subr.bf16.mxu0 %v3205
    %3348 = vmatpush1.bf16.msra.mxu0 %v3204
    %3349 = vmatprep.subr.bf16.mxu0 %v3209
    %3350 = vmatpush1.bf16.msra.mxu0 %v3208
    %3351 = vmatprep.subr.bf16.mxu0 %v3213
    %3352 = vmatpush1.bf16.msra.mxu0 %v3212
    %3353 = vmatprep.subr.bf16.mxu0 %v3217
    %3354 = vmatpush1.bf16.msra.mxu0 %v3216
    %3355 = vmatprep.mubr.bf16.mxu0 %v2875
    %3356 = vmatmul.mubr.bf16.gmra.mrb[0].mxu0 %v2874
    %v3357 = vpop.f32.mrb[0].mxu0
    %v3358 = vadd.f32 %v2953, %v3357
    %v3359 = vpop.f32.mrb[0].mxu0
    %v3360 = vadd.f32 %v2957, %v3359
    %v3361 = vpop.f32.mrb[0].mxu0
    %v3362 = vpop.f32.mrb[0].mxu0
    %3363 = vdwg.mxu0
    %v3364 = vmax.f32 %v3317, 0.0
    %v3365 = vmax.f32 %v3319, 0.0
    %v3366 = vmax.f32 %v3358, 0.0
    %v3367 = vmax.f32 %v3360, 0.0
    %v3368 = vpack.c.bf16 %v3364, %v3364
    %v3369 = vpack.c.bf16 %v3365, %v3365
    %v3370 = vpack.c.bf16 %v3366, %v3366
    %v3371 = vpack.c.bf16 %v3367, %v3367
    %v3372 = vld [vmem:[#allocation13] sm:$0xff]
    %v3373 = vld [vmem:[#allocation13 + $0x8] sm:$0xff]
    %v3374 = vld [vmem:[#allocation13 + $0x10] sm:$0xff]
    %v3375 = vld [vmem:[#allocation13 + $0x18] sm:$0xff]
    %v3376 = vld [vmem:[#allocation13 + $0x20] sm:$0xff]
    %v3377 = vld [vmem:[#allocation13 + $0x28] sm:$0xff]
    %v3378 = vld [vmem:[#allocation13 + $0x30] sm:$0xff]
    %v3379 = vld [vmem:[#allocation13 + $0x38] sm:$0xff]
    %v3380 = vld [vmem:[#allocation13 + $0x40] sm:$0xff]
    %v3381 = vld [vmem:[#allocation13 + $0x48] sm:$0xff]
    %v3382 = vld [vmem:[#allocation13 + $0x50] sm:$0xff]
    %v3383 = vld [vmem:[#allocation13 + $0x58] sm:$0xff]
    %v3384 = vld [vmem:[#allocation13 + $0x60] sm:$0xff]
    %v3385 = vld [vmem:[#allocation13 + $0x68] sm:$0xff]
    %v3386 = vld [vmem:[#allocation13 + $0x70] sm:$0xff]
    %v3387 = vld [vmem:[#allocation13 + $0x78] sm:$0xff]
    %v3388 = vld [vmem:[#allocation13 + $0x80] sm:$0xff]
    %v3389 = vld [vmem:[#allocation13 + $0x88] sm:$0xff]
    %v3390 = vld [vmem:[#allocation13 + $0x90] sm:$0xff]
    %v3391 = vld [vmem:[#allocation13 + $0x98] sm:$0xff]
    %v3392 = vld [vmem:[#allocation13 + $0xa0] sm:$0xff]
    %v3393 = vld [vmem:[#allocation13 + $0xa8] sm:$0xff]
    %v3394 = vld [vmem:[#allocation13 + $0xb0] sm:$0xff]
    %v3395 = vld [vmem:[#allocation13 + $0xb8] sm:$0xff]
    %v3396 = vld [vmem:[#allocation13 + $0xc0] sm:$0xff]
    %v3397 = vld [vmem:[#allocation13 + $0xc8] sm:$0xff]
    %v3398 = vld [vmem:[#allocation13 + $0xd0] sm:$0xff]
    %v3399 = vld [vmem:[#allocation13 + $0xd8] sm:$0xff]
    %v3400 = vld [vmem:[#allocation13 + $0xe0] sm:$0xff]
    %v3401 = vld [vmem:[#allocation13 + $0xe8] sm:$0xff]
    %v3402 = vld [vmem:[#allocation13 + $0xf0] sm:$0xff]
    %v3403 = vld [vmem:[#allocation13 + $0xf8] sm:$0xff]
    %v3404 = vld [vmem:[#allocation13 + $0x100] sm:$0xff]
    %v3405 = vld [vmem:[#allocation13 + $0x108] sm:$0xff]
    %v3406 = vld [vmem:[#allocation13 + $0x110] sm:$0xff]
    %v3407 = vld [vmem:[#allocation13 + $0x118] sm:$0xff]
    %v3408 = vld [vmem:[#allocation13 + $0x120] sm:$0xff]
    %v3409 = vld [vmem:[#allocation13 + $0x128] sm:$0xff]
    %v3410 = vld [vmem:[#allocation13 + $0x130] sm:$0xff]
    %v3411 = vld [vmem:[#allocation13 + $0x138] sm:$0xff]
    %v3412 = vld [vmem:[#allocation13 + $0x140] sm:$0xff]
    %v3413 = vld [vmem:[#allocation13 + $0x148] sm:$0xff]
    %v3414 = vld [vmem:[#allocation13 + $0x150] sm:$0xff]
    %v3415 = vld [vmem:[#allocation13 + $0x158] sm:$0xff]
    %v3416 = vld [vmem:[#allocation13 + $0x160] sm:$0xff]
    %v3417 = vld [vmem:[#allocation13 + $0x168] sm:$0xff]
    %v3418 = vld [vmem:[#allocation13 + $0x170] sm:$0xff]
    %v3419 = vld [vmem:[#allocation13 + $0x178] sm:$0xff]
    %v3420 = vld [vmem:[#allocation13 + $0x180] sm:$0xff]
    %v3421 = vld [vmem:[#allocation13 + $0x188] sm:$0xff]
    %v3422 = vld [vmem:[#allocation13 + $0x190] sm:$0xff]
    %v3423 = vld [vmem:[#allocation13 + $0x198] sm:$0xff]
    %v3424 = vld [vmem:[#allocation13 + $0x1a0] sm:$0xff]
    %v3425 = vld [vmem:[#allocation13 + $0x1a8] sm:$0xff]
    %v3426 = vld [vmem:[#allocation13 + $0x1b0] sm:$0xff]
    %v3427 = vld [vmem:[#allocation13 + $0x1b8] sm:$0xff]
    %v3428 = vld [vmem:[#allocation13 + $0x1c0] sm:$0xff]
    %v3429 = vld [vmem:[#allocation13 + $0x1c8] sm:$0xff]
    %v3430 = vld [vmem:[#allocation13 + $0x1d0] sm:$0xff]
    %v3431 = vld [vmem:[#allocation13 + $0x1d8] sm:$0xff]
    %v3432 = vld [vmem:[#allocation13 + $0x1e0] sm:$0xff]
    %v3433 = vld [vmem:[#allocation13 + $0x1e8] sm:$0xff]
    %v3434 = vld [vmem:[#allocation13 + $0x1f0] sm:$0xff]
    %v3435 = vld [vmem:[#allocation13 + $0x1f8] sm:$0xff]
    %v3436 = vld [vmem:[#allocation13 + $0x200] sm:$0xff]
    %v3437 = vld [vmem:[#allocation13 + $0x208] sm:$0xff]
    %v3438 = vld [vmem:[#allocation13 + $0x210] sm:$0xff]
    %v3439 = vld [vmem:[#allocation13 + $0x218] sm:$0xff]
    %v3440 = vld [vmem:[#allocation13 + $0x220] sm:$0xff]
    %v3441 = vld [vmem:[#allocation13 + $0x228] sm:$0xff]
    %v3442 = vld [vmem:[#allocation13 + $0x230] sm:$0xff]
    %v3443 = vld [vmem:[#allocation13 + $0x238] sm:$0xff]
    %v3444 = vld [vmem:[#allocation13 + $0x240] sm:$0xff]
    %v3445 = vld [vmem:[#allocation13 + $0x248] sm:$0xff]
    %v3446 = vld [vmem:[#allocation13 + $0x250] sm:$0xff]
    %v3447 = vld [vmem:[#allocation13 + $0x258] sm:$0xff]
    %v3448 = vld [vmem:[#allocation13 + $0x260] sm:$0xff]
    %v3449 = vld [vmem:[#allocation13 + $0x268] sm:$0xff]
    %v3450 = vld [vmem:[#allocation13 + $0x270] sm:$0xff]
    %v3451 = vld [vmem:[#allocation13 + $0x278] sm:$0xff]
    %v3452 = vld [vmem:[#allocation13 + $0x280] sm:$0xff]
    %v3453 = vld [vmem:[#allocation13 + $0x288] sm:$0xff]
    %v3454 = vld [vmem:[#allocation13 + $0x290] sm:$0xff]
    %v3455 = vld [vmem:[#allocation13 + $0x298] sm:$0xff]
    %v3456 = vld [vmem:[#allocation13 + $0x2a0] sm:$0xff]
    %v3457 = vld [vmem:[#allocation13 + $0x2a8] sm:$0xff]
    %v3458 = vld [vmem:[#allocation13 + $0x2b0] sm:$0xff]
    %v3459 = vld [vmem:[#allocation13 + $0x2b8] sm:$0xff]
    %v3460 = vld [vmem:[#allocation13 + $0x2c0] sm:$0xff]
    %v3461 = vld [vmem:[#allocation13 + $0x2c8] sm:$0xff]
    %v3462 = vld [vmem:[#allocation13 + $0x2d0] sm:$0xff]
    %v3463 = vld [vmem:[#allocation13 + $0x2d8] sm:$0xff]
    %v3464 = vld [vmem:[#allocation13 + $0x2e0] sm:$0xff]
    %v3465 = vld [vmem:[#allocation13 + $0x2e8] sm:$0xff]
    %v3466 = vld [vmem:[#allocation13 + $0x2f0] sm:$0xff]
    %v3467 = vld [vmem:[#allocation13 + $0x2f8] sm:$0xff]
    %v3468 = vld [vmem:[#allocation13 + $0x300] sm:$0xff]
    %v3469 = vld [vmem:[#allocation13 + $0x308] sm:$0xff]
    %v3470 = vld [vmem:[#allocation13 + $0x310] sm:$0xff]
    %v3471 = vld [vmem:[#allocation13 + $0x318] sm:$0xff]
    %v3472 = vld [vmem:[#allocation13 + $0x320] sm:$0xff]
    %v3473 = vld [vmem:[#allocation13 + $0x328] sm:$0xff]
    %v3474 = vld [vmem:[#allocation13 + $0x330] sm:$0xff]
    %v3475 = vld [vmem:[#allocation13 + $0x338] sm:$0xff]
    %v3476 = vld [vmem:[#allocation13 + $0x340] sm:$0xff]
    %v3477 = vld [vmem:[#allocation13 + $0x348] sm:$0xff]
    %v3478 = vld [vmem:[#allocation13 + $0x350] sm:$0xff]
    %v3479 = vld [vmem:[#allocation13 + $0x358] sm:$0xff]
    %v3480 = vld [vmem:[#allocation13 + $0x360] sm:$0xff]
    %v3481 = vld [vmem:[#allocation13 + $0x368] sm:$0xff]
    %v3482 = vld [vmem:[#allocation13 + $0x370] sm:$0xff]
    %v3483 = vld [vmem:[#allocation13 + $0x378] sm:$0xff]
    %v3484 = vld [vmem:[#allocation13 + $0x380] sm:$0xff]
    %v3485 = vld [vmem:[#allocation13 + $0x388] sm:$0xff]
    %v3486 = vld [vmem:[#allocation13 + $0x390] sm:$0xff]
    %v3487 = vld [vmem:[#allocation13 + $0x398] sm:$0xff]
    %v3488 = vld [vmem:[#allocation13 + $0x3a0] sm:$0xff]
    %v3489 = vld [vmem:[#allocation13 + $0x3a8] sm:$0xff]
    %v3490 = vld [vmem:[#allocation13 + $0x3b0] sm:$0xff]
    %v3491 = vld [vmem:[#allocation13 + $0x3b8] sm:$0xff]
    %v3492 = vld [vmem:[#allocation13 + $0x3c0] sm:$0xff]
    %v3493 = vld [vmem:[#allocation13 + $0x3c8] sm:$0xff]
    %v3494 = vld [vmem:[#allocation13 + $0x3d0] sm:$0xff]
    %v3495 = vld [vmem:[#allocation13 + $0x3d8] sm:$0xff]
    %v3496 = vld [vmem:[#allocation13 + $0x3e0] sm:$0xff]
    %v3497 = vld [vmem:[#allocation13 + $0x3e8] sm:$0xff]
    %v3498 = vld [vmem:[#allocation13 + $0x3f0] sm:$0xff]
    %v3499 = vld [vmem:[#allocation13 + $0x3f8] sm:$0xff]
    %v3500 = vld [vmem:[#allocation13 + $0x400] sm:$0xff]
    %v3501 = vld [vmem:[#allocation13 + $0x408] sm:$0xff]
    %v3502 = vld [vmem:[#allocation13 + $0x410] sm:$0xff]
    %v3503 = vld [vmem:[#allocation13 + $0x418] sm:$0xff]
    %v3504 = vld [vmem:[#allocation13 + $0x420] sm:$0xff]
    %v3505 = vld [vmem:[#allocation13 + $0x428] sm:$0xff]
    %v3506 = vld [vmem:[#allocation13 + $0x430] sm:$0xff]
    %v3507 = vld [vmem:[#allocation13 + $0x438] sm:$0xff]
    %v3508 = vld [vmem:[#allocation13 + $0x440] sm:$0xff]
    %v3509 = vld [vmem:[#allocation13 + $0x448] sm:$0xff]
    %v3510 = vld [vmem:[#allocation13 + $0x450] sm:$0xff]
    %v3511 = vld [vmem:[#allocation13 + $0x458] sm:$0xff]
    %v3512 = vld [vmem:[#allocation13 + $0x460] sm:$0xff]
    %v3513 = vld [vmem:[#allocation13 + $0x468] sm:$0xff]
    %v3514 = vld [vmem:[#allocation13 + $0x470] sm:$0xff]
    %v3515 = vld [vmem:[#allocation13 + $0x478] sm:$0xff]
    %v3516 = vld [vmem:[#allocation13 + $0x480] sm:$0xff]
    %v3517 = vld [vmem:[#allocation13 + $0x488] sm:$0xff]
    %v3518 = vld [vmem:[#allocation13 + $0x490] sm:$0xff]
    %v3519 = vld [vmem:[#allocation13 + $0x498] sm:$0xff]
    %v3520 = vld [vmem:[#allocation13 + $0x4a0] sm:$0xff]
    %v3521 = vld [vmem:[#allocation13 + $0x4a8] sm:$0xff]
    %v3522 = vld [vmem:[#allocation13 + $0x4b0] sm:$0xff]
    %v3523 = vld [vmem:[#allocation13 + $0x4b8] sm:$0xff]
    %v3524 = vld [vmem:[#allocation13 + $0x4c0] sm:$0xff]
    %v3525 = vld [vmem:[#allocation13 + $0x4c8] sm:$0xff]
    %v3526 = vld [vmem:[#allocation13 + $0x4d0] sm:$0xff]
    %v3527 = vld [vmem:[#allocation13 + $0x4d8] sm:$0xff]
    %v3528 = vld [vmem:[#allocation13 + $0x4e0] sm:$0xff]
    %v3529 = vld [vmem:[#allocation13 + $0x4e8] sm:$0xff]
    %v3530 = vld [vmem:[#allocation13 + $0x4f0] sm:$0xff]
    %v3531 = vld [vmem:[#allocation13 + $0x4f8] sm:$0xff]
    %v3532 = vld [vmem:[#allocation13 + $0x500] sm:$0xff]
    %v3533 = vld [vmem:[#allocation13 + $0x508] sm:$0xff]
    %v3534 = vld [vmem:[#allocation13 + $0x510] sm:$0xff]
    %v3535 = vld [vmem:[#allocation13 + $0x518] sm:$0xff]
    %v3536 = vld [vmem:[#allocation13 + $0x520] sm:$0xff]
    %v3537 = vld [vmem:[#allocation13 + $0x528] sm:$0xff]
    %v3538 = vld [vmem:[#allocation13 + $0x530] sm:$0xff]
    %v3539 = vld [vmem:[#allocation13 + $0x538] sm:$0xff]
    %v3540 = vld [vmem:[#allocation13 + $0x540] sm:$0xff]
    %v3541 = vld [vmem:[#allocation13 + $0x548] sm:$0xff]
    %v3542 = vld [vmem:[#allocation13 + $0x550] sm:$0xff]
    %v3543 = vld [vmem:[#allocation13 + $0x558] sm:$0xff]
    %v3544 = vld [vmem:[#allocation13 + $0x560] sm:$0xff]
    %v3545 = vld [vmem:[#allocation13 + $0x568] sm:$0xff]
    %v3546 = vld [vmem:[#allocation13 + $0x570] sm:$0xff]
    %v3547 = vld [vmem:[#allocation13 + $0x578] sm:$0xff]
    %v3548 = vld [vmem:[#allocation13 + $0x580] sm:$0xff]
    %v3549 = vld [vmem:[#allocation13 + $0x588] sm:$0xff]
    %v3550 = vld [vmem:[#allocation13 + $0x590] sm:$0xff]
    %v3551 = vld [vmem:[#allocation13 + $0x598] sm:$0xff]
    %v3552 = vld [vmem:[#allocation13 + $0x5a0] sm:$0xff]
    %v3553 = vld [vmem:[#allocation13 + $0x5a8] sm:$0xff]
    %v3554 = vld [vmem:[#allocation13 + $0x5b0] sm:$0xff]
    %v3555 = vld [vmem:[#allocation13 + $0x5b8] sm:$0xff]
    %v3556 = vld [vmem:[#allocation13 + $0x5c0] sm:$0xff]
    %v3557 = vld [vmem:[#allocation13 + $0x5c8] sm:$0xff]
    %v3558 = vld [vmem:[#allocation13 + $0x5d0] sm:$0xff]
    %v3559 = vld [vmem:[#allocation13 + $0x5d8] sm:$0xff]
    %v3560 = vld [vmem:[#allocation13 + $0x5e0] sm:$0xff]
    %v3561 = vld [vmem:[#allocation13 + $0x5e8] sm:$0xff]
    %v3562 = vld [vmem:[#allocation13 + $0x5f0] sm:$0xff]
    %v3563 = vld [vmem:[#allocation13 + $0x5f8] sm:$0xff]
    %v3564 = vld [vmem:[#allocation13 + $0x600] sm:$0xff]
    %v3565 = vld [vmem:[#allocation13 + $0x608] sm:$0xff]
    %v3566 = vld [vmem:[#allocation13 + $0x610] sm:$0xff]
    %v3567 = vld [vmem:[#allocation13 + $0x618] sm:$0xff]
    %v3568 = vld [vmem:[#allocation13 + $0x620] sm:$0xff]
    %v3569 = vld [vmem:[#allocation13 + $0x628] sm:$0xff]
    %v3570 = vld [vmem:[#allocation13 + $0x630] sm:$0xff]
    %v3571 = vld [vmem:[#allocation13 + $0x638] sm:$0xff]
    %v3572 = vld [vmem:[#allocation13 + $0x640] sm:$0xff]
    %v3573 = vld [vmem:[#allocation13 + $0x648] sm:$0xff]
    %v3574 = vld [vmem:[#allocation13 + $0x650] sm:$0xff]
    %v3575 = vld [vmem:[#allocation13 + $0x658] sm:$0xff]
    %v3576 = vld [vmem:[#allocation13 + $0x660] sm:$0xff]
    %v3577 = vld [vmem:[#allocation13 + $0x668] sm:$0xff]
    %v3578 = vld [vmem:[#allocation13 + $0x670] sm:$0xff]
    %v3579 = vld [vmem:[#allocation13 + $0x678] sm:$0xff]
    %v3580 = vld [vmem:[#allocation13 + $0x680] sm:$0xff]
    %v3581 = vld [vmem:[#allocation13 + $0x688] sm:$0xff]
    %v3582 = vld [vmem:[#allocation13 + $0x690] sm:$0xff]
    %v3583 = vld [vmem:[#allocation13 + $0x698] sm:$0xff]
    %v3584 = vld [vmem:[#allocation13 + $0x6a0] sm:$0xff]
    %v3585 = vld [vmem:[#allocation13 + $0x6a8] sm:$0xff]
    %v3586 = vld [vmem:[#allocation13 + $0x6b0] sm:$0xff]
    %v3587 = vld [vmem:[#allocation13 + $0x6b8] sm:$0xff]
    %v3588 = vld [vmem:[#allocation13 + $0x6c0] sm:$0xff]
    %v3589 = vld [vmem:[#allocation13 + $0x6c8] sm:$0xff]
    %v3590 = vld [vmem:[#allocation13 + $0x6d0] sm:$0xff]
    %v3591 = vld [vmem:[#allocation13 + $0x6d8] sm:$0xff]
    %v3592 = vld [vmem:[#allocation13 + $0x6e0] sm:$0xff]
    %v3593 = vld [vmem:[#allocation13 + $0x6e8] sm:$0xff]
    %v3594 = vld [vmem:[#allocation13 + $0x6f0] sm:$0xff]
    %v3595 = vld [vmem:[#allocation13 + $0x6f8] sm:$0xff]
    %v3596 = vld [vmem:[#allocation13 + $0x700] sm:$0xff]
    %v3597 = vld [vmem:[#allocation13 + $0x708] sm:$0xff]
    %v3598 = vld [vmem:[#allocation13 + $0x710] sm:$0xff]
    %v3599 = vld [vmem:[#allocation13 + $0x718] sm:$0xff]
    %v3600 = vld [vmem:[#allocation13 + $0x720] sm:$0xff]
    %v3601 = vld [vmem:[#allocation13 + $0x728] sm:$0xff]
    %v3602 = vld [vmem:[#allocation13 + $0x730] sm:$0xff]
    %v3603 = vld [vmem:[#allocation13 + $0x738] sm:$0xff]
    %v3604 = vld [vmem:[#allocation13 + $0x740] sm:$0xff]
    %v3605 = vld [vmem:[#allocation13 + $0x748] sm:$0xff]
    %v3606 = vld [vmem:[#allocation13 + $0x750] sm:$0xff]
    %v3607 = vld [vmem:[#allocation13 + $0x758] sm:$0xff]
    %v3608 = vld [vmem:[#allocation13 + $0x760] sm:$0xff]
    %v3609 = vld [vmem:[#allocation13 + $0x768] sm:$0xff]
    %v3610 = vld [vmem:[#allocation13 + $0x770] sm:$0xff]
    %v3611 = vld [vmem:[#allocation13 + $0x778] sm:$0xff]
    %v3612 = vld [vmem:[#allocation13 + $0x780] sm:$0xff]
    %v3613 = vld [vmem:[#allocation13 + $0x788] sm:$0xff]
    %v3614 = vld [vmem:[#allocation13 + $0x790] sm:$0xff]
    %v3615 = vld [vmem:[#allocation13 + $0x798] sm:$0xff]
    %v3616 = vld [vmem:[#allocation13 + $0x7a0] sm:$0xff]
    %v3617 = vld [vmem:[#allocation13 + $0x7a8] sm:$0xff]
    %v3618 = vld [vmem:[#allocation13 + $0x7b0] sm:$0xff]
    %v3619 = vld [vmem:[#allocation13 + $0x7b8] sm:$0xff]
    %v3620 = vld [vmem:[#allocation13 + $0x7c0] sm:$0xff]
    %v3621 = vld [vmem:[#allocation13 + $0x7c8] sm:$0xff]
    %v3622 = vld [vmem:[#allocation13 + $0x7d0] sm:$0xff]
    %v3623 = vld [vmem:[#allocation13 + $0x7d8] sm:$0xff]
    %v3624 = vld [vmem:[#allocation13 + $0x7e0] sm:$0xff]
    %v3625 = vld [vmem:[#allocation13 + $0x7e8] sm:$0xff]
    %v3626 = vld [vmem:[#allocation13 + $0x7f0] sm:$0xff]
    %v3627 = vld [vmem:[#allocation13 + $0x7f8] sm:$0xff]
    %v3628 = vld [vmem:[%s12] sm:$0xff]
    %v3630 = vlaneseq
    %v3631 = vshrl.u32 %v3630, 7
    %v3632 = vsub.s32 0, %v3631
    %v3633 = vrot.slane %v3628, %v3632
    %v3634 = vlaneseq
    %v3635 = vshrl.u32 %v3634, 7
    %v3636 = vsub.s32 1, %v3635
    %v3637 = vrot.slane %v3628, %v3636
    %v3638 = vlaneseq
    %v3639 = vshrl.u32 %v3638, 7
    %v3640 = vsub.s32 2, %v3639
    %v3641 = vrot.slane %v3628, %v3640
    %v3642 = vlaneseq
    %v3643 = vshrl.u32 %v3642, 7
    %v3644 = vsub.s32 3, %v3643
    %v3645 = vrot.slane %v3628, %v3644
    %v3646 = vlaneseq
    %v3647 = vshrl.u32 %v3646, 7
    %v3648 = vsub.s32 4, %v3647
    %v3649 = vrot.slane %v3628, %v3648
    %v3650 = vlaneseq
    %v3651 = vshrl.u32 %v3650, 7
    %v3652 = vsub.s32 5, %v3651
    %v3653 = vrot.slane %v3628, %v3652
    %v3654 = vlaneseq
    %v3655 = vshrl.u32 %v3654, 7
    %v3656 = vsub.s32 6, %v3655
    %v3657 = vrot.slane %v3628, %v3656
    %v3658 = vlaneseq
    %v3659 = vshrl.u32 %v3658, 7
    %v3660 = vsub.s32 7, %v3659
    %v3661 = vrot.slane %v3628, %v3660
    %v3926 = vunpack.c.l.b16 %v3372
    %v3927 = vunpack.c.h.b16 %v3372
    %v3928 = vunpack.c.l.b16 %v3373
    %v3929 = vunpack.c.h.b16 %v3373
    %v3930 = vunpack.c.l.b16 %v3374
    %v3931 = vunpack.c.h.b16 %v3374
    %v3932 = vunpack.c.l.b16 %v3375
    %v3933 = vunpack.c.h.b16 %v3375
    %v3934 = vunpack.c.l.b16 %v3376
    %v3935 = vunpack.c.h.b16 %v3376
    %v3936 = vunpack.c.l.b16 %v3377
    %v3937 = vunpack.c.h.b16 %v3377
    %v3938 = vunpack.c.l.b16 %v3378
    %v3939 = vunpack.c.h.b16 %v3378
    %v3940 = vunpack.c.l.b16 %v3379
    %v3941 = vunpack.c.h.b16 %v3379
    %v3942 = vunpack.c.l.b16 %v3380
    %v3943 = vunpack.c.h.b16 %v3380
    %v3944 = vunpack.c.l.b16 %v3381
    %v3945 = vunpack.c.h.b16 %v3381
    %v3946 = vunpack.c.l.b16 %v3382
    %v3947 = vunpack.c.h.b16 %v3382
    %v3948 = vunpack.c.l.b16 %v3383
    %v3949 = vunpack.c.h.b16 %v3383
    %v3950 = vunpack.c.l.b16 %v3384
    %v3951 = vunpack.c.h.b16 %v3384
    %v3952 = vunpack.c.l.b16 %v3385
    %v3953 = vunpack.c.h.b16 %v3385
    %v3954 = vunpack.c.l.b16 %v3386
    %v3955 = vunpack.c.h.b16 %v3386
    %v3956 = vunpack.c.l.b16 %v3387
    %v3957 = vunpack.c.h.b16 %v3387
    %v3958 = vunpack.c.l.b16 %v3388
    %v3959 = vunpack.c.h.b16 %v3388
    %v3960 = vunpack.c.l.b16 %v3389
    %v3961 = vunpack.c.h.b16 %v3389
    %v3962 = vunpack.c.l.b16 %v3390
    %v3963 = vunpack.c.h.b16 %v3390
    %v3964 = vunpack.c.l.b16 %v3391
    %v3965 = vunpack.c.h.b16 %v3391
    %v3966 = vunpack.c.l.b16 %v3392
    %v3967 = vunpack.c.h.b16 %v3392
    %v3968 = vunpack.c.l.b16 %v3393
    %v3969 = vunpack.c.h.b16 %v3393
    %v3970 = vunpack.c.l.b16 %v3394
    %v3971 = vunpack.c.h.b16 %v3394
    %v3972 = vunpack.c.l.b16 %v3395
    %v3973 = vunpack.c.h.b16 %v3395
    %v3974 = vunpack.c.l.b16 %v3396
    %v3975 = vunpack.c.h.b16 %v3396
    %v3976 = vunpack.c.l.b16 %v3397
    %v3977 = vunpack.c.h.b16 %v3397
    %v3978 = vunpack.c.l.b16 %v3398
    %v3979 = vunpack.c.h.b16 %v3398
    %v3980 = vunpack.c.l.b16 %v3399
    %v3981 = vunpack.c.h.b16 %v3399
    %v3982 = vunpack.c.l.b16 %v3400
    %v3983 = vunpack.c.h.b16 %v3400
    %v3984 = vunpack.c.l.b16 %v3401
    %v3985 = vunpack.c.h.b16 %v3401
    %v3986 = vunpack.c.l.b16 %v3402
    %v3987 = vunpack.c.h.b16 %v3402
    %v3988 = vunpack.c.l.b16 %v3403
    %v3989 = vunpack.c.h.b16 %v3403
    %v3990 = vunpack.c.l.b16 %v3404
    %v3991 = vunpack.c.h.b16 %v3404
    %v3992 = vunpack.c.l.b16 %v3405
    %v3993 = vunpack.c.h.b16 %v3405
    %v3994 = vunpack.c.l.b16 %v3406
    %v3995 = vunpack.c.h.b16 %v3406
    %v3996 = vunpack.c.l.b16 %v3407
    %v3997 = vunpack.c.h.b16 %v3407
    %v3998 = vunpack.c.l.b16 %v3408
    %v3999 = vunpack.c.h.b16 %v3408
    %v4000 = vunpack.c.l.b16 %v3409
    %v4001 = vunpack.c.h.b16 %v3409
    %v4002 = vunpack.c.l.b16 %v3410
    %v4003 = vunpack.c.h.b16 %v3410
    %v4004 = vunpack.c.l.b16 %v3411
    %v4005 = vunpack.c.h.b16 %v3411
    %v4006 = vunpack.c.l.b16 %v3412
    %v4007 = vunpack.c.h.b16 %v3412
    %v4008 = vunpack.c.l.b16 %v3413
    %v4009 = vunpack.c.h.b16 %v3413
    %v4010 = vunpack.c.l.b16 %v3414
    %v4011 = vunpack.c.h.b16 %v3414
    %v4012 = vunpack.c.l.b16 %v3415
    %v4013 = vunpack.c.h.b16 %v3415
    %v4014 = vunpack.c.l.b16 %v3416
    %v4015 = vunpack.c.h.b16 %v3416
    %v4016 = vunpack.c.l.b16 %v3417
    %v4017 = vunpack.c.h.b16 %v3417
    %v4018 = vunpack.c.l.b16 %v3418
    %v4019 = vunpack.c.h.b16 %v3418
    %v4020 = vunpack.c.l.b16 %v3419
    %v4021 = vunpack.c.h.b16 %v3419
    %v4022 = vunpack.c.l.b16 %v3420
    %v4023 = vunpack.c.h.b16 %v3420
    %v4024 = vunpack.c.l.b16 %v3421
    %v4025 = vunpack.c.h.b16 %v3421
    %v4026 = vunpack.c.l.b16 %v3422
    %v4027 = vunpack.c.h.b16 %v3422
    %v4028 = vunpack.c.l.b16 %v3423
    %v4029 = vunpack.c.h.b16 %v3423
    %v4030 = vunpack.c.l.b16 %v3424
    %v4031 = vunpack.c.h.b16 %v3424
    %v4032 = vunpack.c.l.b16 %v3425
    %v4033 = vunpack.c.h.b16 %v3425
    %v4034 = vunpack.c.l.b16 %v3426
    %v4035 = vunpack.c.h.b16 %v3426
    %v4036 = vunpack.c.l.b16 %v3427
    %v4037 = vunpack.c.h.b16 %v3427
    %v4038 = vunpack.c.l.b16 %v3428
    %v4039 = vunpack.c.h.b16 %v3428
    %v4040 = vunpack.c.l.b16 %v3429
    %v4041 = vunpack.c.h.b16 %v3429
    %v4042 = vunpack.c.l.b16 %v3430
    %v4043 = vunpack.c.h.b16 %v3430
    %v4044 = vunpack.c.l.b16 %v3431
    %v4045 = vunpack.c.h.b16 %v3431
    %v4046 = vunpack.c.l.b16 %v3432
    %v4047 = vunpack.c.h.b16 %v3432
    %v4048 = vunpack.c.l.b16 %v3433
    %v4049 = vunpack.c.h.b16 %v3433
    %v4050 = vunpack.c.l.b16 %v3434
    %v4051 = vunpack.c.h.b16 %v3434
    %v4052 = vunpack.c.l.b16 %v3435
    %v4053 = vunpack.c.h.b16 %v3435
    %v4054 = vunpack.c.l.b16 %v3436
    %v4055 = vunpack.c.h.b16 %v3436
    %v4056 = vunpack.c.l.b16 %v3437
    %v4057 = vunpack.c.h.b16 %v3437
    %v4058 = vunpack.c.l.b16 %v3438
    %v4059 = vunpack.c.h.b16 %v3438
    %v4060 = vunpack.c.l.b16 %v3439
    %v4061 = vunpack.c.h.b16 %v3439
    %v4062 = vunpack.c.l.b16 %v3440
    %v4063 = vunpack.c.h.b16 %v3440
    %v4064 = vunpack.c.l.b16 %v3441
    %v4065 = vunpack.c.h.b16 %v3441
    %v4066 = vunpack.c.l.b16 %v3442
    %v4067 = vunpack.c.h.b16 %v3442
    %v4068 = vunpack.c.l.b16 %v3443
    %v4069 = vunpack.c.h.b16 %v3443
    %v4070 = vunpack.c.l.b16 %v3444
    %v4071 = vunpack.c.h.b16 %v3444
    %v4072 = vunpack.c.l.b16 %v3445
    %v4073 = vunpack.c.h.b16 %v3445
    %v4074 = vunpack.c.l.b16 %v3446
    %v4075 = vunpack.c.h.b16 %v3446
    %v4076 = vunpack.c.l.b16 %v3447
    %v4077 = vunpack.c.h.b16 %v3447
    %v4078 = vunpack.c.l.b16 %v3448
    %v4079 = vunpack.c.h.b16 %v3448
    %v4080 = vunpack.c.l.b16 %v3449
    %v4081 = vunpack.c.h.b16 %v3449
    %v4082 = vunpack.c.l.b16 %v3450
    %v4083 = vunpack.c.h.b16 %v3450
    %v4084 = vunpack.c.l.b16 %v3451
    %v4085 = vunpack.c.h.b16 %v3451
    %v4086 = vunpack.c.l.b16 %v3452
    %v4087 = vunpack.c.h.b16 %v3452
    %v4088 = vunpack.c.l.b16 %v3453
    %v4089 = vunpack.c.h.b16 %v3453
    %v4090 = vunpack.c.l.b16 %v3454
    %v4091 = vunpack.c.h.b16 %v3454
    %v4092 = vunpack.c.l.b16 %v3455
    %v4093 = vunpack.c.h.b16 %v3455
    %v4094 = vunpack.c.l.b16 %v3456
    %v4095 = vunpack.c.h.b16 %v3456
    %v4096 = vunpack.c.l.b16 %v3457
    %v4097 = vunpack.c.h.b16 %v3457
    %v4098 = vunpack.c.l.b16 %v3458
    %v4099 = vunpack.c.h.b16 %v3458
    %v4100 = vunpack.c.l.b16 %v3459
    %v4101 = vunpack.c.h.b16 %v3459
    %v4102 = vunpack.c.l.b16 %v3460
    %v4103 = vunpack.c.h.b16 %v3460
    %v4104 = vunpack.c.l.b16 %v3461
    %v4105 = vunpack.c.h.b16 %v3461
    %v4106 = vunpack.c.l.b16 %v3462
    %v4107 = vunpack.c.h.b16 %v3462
    %v4108 = vunpack.c.l.b16 %v3463
    %v4109 = vunpack.c.h.b16 %v3463
    %v4110 = vunpack.c.l.b16 %v3464
    %v4111 = vunpack.c.h.b16 %v3464
    %v4112 = vunpack.c.l.b16 %v3465
    %v4113 = vunpack.c.h.b16 %v3465
    %v4114 = vunpack.c.l.b16 %v3466
    %v4115 = vunpack.c.h.b16 %v3466
    %v4116 = vunpack.c.l.b16 %v3467
    %v4117 = vunpack.c.h.b16 %v3467
    %v4118 = vunpack.c.l.b16 %v3468
    %v4119 = vunpack.c.h.b16 %v3468
    %v4120 = vunpack.c.l.b16 %v3469
    %v4121 = vunpack.c.h.b16 %v3469
    %v4122 = vunpack.c.l.b16 %v3470
    %v4123 = vunpack.c.h.b16 %v3470
    %v4124 = vunpack.c.l.b16 %v3471
    %v4125 = vunpack.c.h.b16 %v3471
    %v4126 = vunpack.c.l.b16 %v3472
    %v4127 = vunpack.c.h.b16 %v3472
    %v4128 = vunpack.c.l.b16 %v3473
    %v4129 = vunpack.c.h.b16 %v3473
    %v4130 = vunpack.c.l.b16 %v3474
    %v4131 = vunpack.c.h.b16 %v3474
    %v4132 = vunpack.c.l.b16 %v3475
    %v4133 = vunpack.c.h.b16 %v3475
    %v4134 = vunpack.c.l.b16 %v3476
    %v4135 = vunpack.c.h.b16 %v3476
    %v4136 = vunpack.c.l.b16 %v3477
    %v4137 = vunpack.c.h.b16 %v3477
    %v4138 = vunpack.c.l.b16 %v3478
    %v4139 = vunpack.c.h.b16 %v3478
    %v4140 = vunpack.c.l.b16 %v3479
    %v4141 = vunpack.c.h.b16 %v3479
    %v4142 = vunpack.c.l.b16 %v3480
    %v4143 = vunpack.c.h.b16 %v3480
    %v4144 = vunpack.c.l.b16 %v3481
    %v4145 = vunpack.c.h.b16 %v3481
    %v4146 = vunpack.c.l.b16 %v3482
    %v4147 = vunpack.c.h.b16 %v3482
    %v4148 = vunpack.c.l.b16 %v3483
    %v4149 = vunpack.c.h.b16 %v3483
    %v4150 = vunpack.c.l.b16 %v3484
    %v4151 = vunpack.c.h.b16 %v3484
    %v4152 = vunpack.c.l.b16 %v3485
    %v4153 = vunpack.c.h.b16 %v3485
    %v4154 = vunpack.c.l.b16 %v3486
    %v4155 = vunpack.c.h.b16 %v3486
    %v4156 = vunpack.c.l.b16 %v3487
    %v4157 = vunpack.c.h.b16 %v3487
    %v4158 = vunpack.c.l.b16 %v3488
    %v4159 = vunpack.c.h.b16 %v3488
    %v4160 = vunpack.c.l.b16 %v3489
    %v4161 = vunpack.c.h.b16 %v3489
    %v4162 = vunpack.c.l.b16 %v3490
    %v4163 = vunpack.c.h.b16 %v3490
    %v4164 = vunpack.c.l.b16 %v3491
    %v4165 = vunpack.c.h.b16 %v3491
    %v4166 = vunpack.c.l.b16 %v3492
    %v4167 = vunpack.c.h.b16 %v3492
    %v4168 = vunpack.c.l.b16 %v3493
    %v4169 = vunpack.c.h.b16 %v3493
    %v4170 = vunpack.c.l.b16 %v3494
    %v4171 = vunpack.c.h.b16 %v3494
    %v4172 = vunpack.c.l.b16 %v3495
    %v4173 = vunpack.c.h.b16 %v3495
    %v4174 = vunpack.c.l.b16 %v3496
    %v4175 = vunpack.c.h.b16 %v3496
    %v4176 = vunpack.c.l.b16 %v3497
    %v4177 = vunpack.c.h.b16 %v3497
    %v4178 = vunpack.c.l.b16 %v3498
    %v4179 = vunpack.c.h.b16 %v3498
    %v4180 = vunpack.c.l.b16 %v3499
    %v4181 = vunpack.c.h.b16 %v3499
    %v4182 = vunpack.c.l.b16 %v3500
    %v4183 = vunpack.c.h.b16 %v3500
    %v4184 = vunpack.c.l.b16 %v3501
    %v4185 = vunpack.c.h.b16 %v3501
    %v4186 = vunpack.c.l.b16 %v3502
    %v4187 = vunpack.c.h.b16 %v3502
    %v4188 = vunpack.c.l.b16 %v3503
    %v4189 = vunpack.c.h.b16 %v3503
    %v4190 = vunpack.c.l.b16 %v3504
    %v4191 = vunpack.c.h.b16 %v3504
    %v4192 = vunpack.c.l.b16 %v3505
    %v4193 = vunpack.c.h.b16 %v3505
    %v4194 = vunpack.c.l.b16 %v3506
    %v4195 = vunpack.c.h.b16 %v3506
    %v4196 = vunpack.c.l.b16 %v3507
    %v4197 = vunpack.c.h.b16 %v3507
    %v4198 = vunpack.c.l.b16 %v3508
    %v4199 = vunpack.c.h.b16 %v3508
    %v4200 = vunpack.c.l.b16 %v3509
    %v4201 = vunpack.c.h.b16 %v3509
    %v4202 = vunpack.c.l.b16 %v3510
    %v4203 = vunpack.c.h.b16 %v3510
    %v4204 = vunpack.c.l.b16 %v3511
    %v4205 = vunpack.c.h.b16 %v3511
    %v4206 = vunpack.c.l.b16 %v3512
    %v4207 = vunpack.c.h.b16 %v3512
    %v4208 = vunpack.c.l.b16 %v3513
    %v4209 = vunpack.c.h.b16 %v3513
    %v4210 = vunpack.c.l.b16 %v3514
    %v4211 = vunpack.c.h.b16 %v3514
    %v4212 = vunpack.c.l.b16 %v3515
    %v4213 = vunpack.c.h.b16 %v3515
    %v4214 = vunpack.c.l.b16 %v3516
    %v4215 = vunpack.c.h.b16 %v3516
    %v4216 = vunpack.c.l.b16 %v3517
    %v4217 = vunpack.c.h.b16 %v3517
    %v4218 = vunpack.c.l.b16 %v3518
    %v4219 = vunpack.c.h.b16 %v3518
    %v4220 = vunpack.c.l.b16 %v3519
    %v4221 = vunpack.c.h.b16 %v3519
    %v4222 = vunpack.c.l.b16 %v3520
    %v4223 = vunpack.c.h.b16 %v3520
    %v4224 = vunpack.c.l.b16 %v3521
    %v4225 = vunpack.c.h.b16 %v3521
    %v4226 = vunpack.c.l.b16 %v3522
    %v4227 = vunpack.c.h.b16 %v3522
    %v4228 = vunpack.c.l.b16 %v3523
    %v4229 = vunpack.c.h.b16 %v3523
    %v4230 = vunpack.c.l.b16 %v3524
    %v4231 = vunpack.c.h.b16 %v3524
    %v4232 = vunpack.c.l.b16 %v3525
    %v4233 = vunpack.c.h.b16 %v3525
    %v4234 = vunpack.c.l.b16 %v3526
    %v4235 = vunpack.c.h.b16 %v3526
    %v4236 = vunpack.c.l.b16 %v3527
    %v4237 = vunpack.c.h.b16 %v3527
    %v4238 = vunpack.c.l.b16 %v3528
    %v4239 = vunpack.c.h.b16 %v3528
    %v4240 = vunpack.c.l.b16 %v3529
    %v4241 = vunpack.c.h.b16 %v3529
    %v4242 = vunpack.c.l.b16 %v3530
    %v4243 = vunpack.c.h.b16 %v3530
    %v4244 = vunpack.c.l.b16 %v3531
    %v4245 = vunpack.c.h.b16 %v3531
    %v4246 = vunpack.c.l.b16 %v3532
    %v4247 = vunpack.c.h.b16 %v3532
    %v4248 = vunpack.c.l.b16 %v3533
    %v4249 = vunpack.c.h.b16 %v3533
    %v4250 = vunpack.c.l.b16 %v3534
    %v4251 = vunpack.c.h.b16 %v3534
    %v4252 = vunpack.c.l.b16 %v3535
    %v4253 = vunpack.c.h.b16 %v3535
    %v4254 = vunpack.c.l.b16 %v3536
    %v4255 = vunpack.c.h.b16 %v3536
    %v4256 = vunpack.c.l.b16 %v3537
    %v4257 = vunpack.c.h.b16 %v3537
    %v4258 = vunpack.c.l.b16 %v3538
    %v4259 = vunpack.c.h.b16 %v3538
    %v4260 = vunpack.c.l.b16 %v3539
    %v4261 = vunpack.c.h.b16 %v3539
    %v4262 = vunpack.c.l.b16 %v3540
    %v4263 = vunpack.c.h.b16 %v3540
    %v4264 = vunpack.c.l.b16 %v3541
    %v4265 = vunpack.c.h.b16 %v3541
    %v4266 = vunpack.c.l.b16 %v3542
    %v4267 = vunpack.c.h.b16 %v3542
    %v4268 = vunpack.c.l.b16 %v3543
    %v4269 = vunpack.c.h.b16 %v3543
    %v4270 = vunpack.c.l.b16 %v3544
    %v4271 = vunpack.c.h.b16 %v3544
    %v4272 = vunpack.c.l.b16 %v3545
    %v4273 = vunpack.c.h.b16 %v3545
    %v4274 = vunpack.c.l.b16 %v3546
    %v4275 = vunpack.c.h.b16 %v3546
    %v4276 = vunpack.c.l.b16 %v3547
    %v4277 = vunpack.c.h.b16 %v3547
    %v4278 = vunpack.c.l.b16 %v3548
    %v4279 = vunpack.c.h.b16 %v3548
    %v4280 = vunpack.c.l.b16 %v3549
    %v4281 = vunpack.c.h.b16 %v3549
    %v4282 = vunpack.c.l.b16 %v3550
    %v4283 = vunpack.c.h.b16 %v3550
    %v4284 = vunpack.c.l.b16 %v3551
    %v4285 = vunpack.c.h.b16 %v3551
    %v4286 = vunpack.c.l.b16 %v3552
    %v4287 = vunpack.c.h.b16 %v3552
    %v4288 = vunpack.c.l.b16 %v3553
    %v4289 = vunpack.c.h.b16 %v3553
    %v4290 = vunpack.c.l.b16 %v3554
    %v4291 = vunpack.c.h.b16 %v3554
    %v4292 = vunpack.c.l.b16 %v3555
    %v4293 = vunpack.c.h.b16 %v3555
    %v4294 = vunpack.c.l.b16 %v3556
    %v4295 = vunpack.c.h.b16 %v3556
    %v4296 = vunpack.c.l.b16 %v3557
    %v4297 = vunpack.c.h.b16 %v3557
    %v4298 = vunpack.c.l.b16 %v3558
    %v4299 = vunpack.c.h.b16 %v3558
    %v4300 = vunpack.c.l.b16 %v3559
    %v4301 = vunpack.c.h.b16 %v3559
    %v4302 = vunpack.c.l.b16 %v3560
    %v4303 = vunpack.c.h.b16 %v3560
    %v4304 = vunpack.c.l.b16 %v3561
    %v4305 = vunpack.c.h.b16 %v3561
    %v4306 = vunpack.c.l.b16 %v3562
    %v4307 = vunpack.c.h.b16 %v3562
    %v4308 = vunpack.c.l.b16 %v3563
    %v4309 = vunpack.c.h.b16 %v3563
    %v4310 = vunpack.c.l.b16 %v3564
    %v4311 = vunpack.c.h.b16 %v3564
    %v4312 = vunpack.c.l.b16 %v3565
    %v4313 = vunpack.c.h.b16 %v3565
    %v4314 = vunpack.c.l.b16 %v3566
    %v4315 = vunpack.c.h.b16 %v3566
    %v4316 = vunpack.c.l.b16 %v3567
    %v4317 = vunpack.c.h.b16 %v3567
    %v4318 = vunpack.c.l.b16 %v3568
    %v4319 = vunpack.c.h.b16 %v3568
    %v4320 = vunpack.c.l.b16 %v3569
    %v4321 = vunpack.c.h.b16 %v3569
    %v4322 = vunpack.c.l.b16 %v3570
    %v4323 = vunpack.c.h.b16 %v3570
    %v4324 = vunpack.c.l.b16 %v3571
    %v4325 = vunpack.c.h.b16 %v3571
    %v4326 = vunpack.c.l.b16 %v3572
    %v4327 = vunpack.c.h.b16 %v3572
    %v4328 = vunpack.c.l.b16 %v3573
    %v4329 = vunpack.c.h.b16 %v3573
    %v4330 = vunpack.c.l.b16 %v3574
    %v4331 = vunpack.c.h.b16 %v3574
    %v4332 = vunpack.c.l.b16 %v3575
    %v4333 = vunpack.c.h.b16 %v3575
    %v4334 = vunpack.c.l.b16 %v3576
    %v4335 = vunpack.c.h.b16 %v3576
    %v4336 = vunpack.c.l.b16 %v3577
    %v4337 = vunpack.c.h.b16 %v3577
    %v4338 = vunpack.c.l.b16 %v3578
    %v4339 = vunpack.c.h.b16 %v3578
    %v4340 = vunpack.c.l.b16 %v3579
    %v4341 = vunpack.c.h.b16 %v3579
    %v4342 = vunpack.c.l.b16 %v3580
    %v4343 = vunpack.c.h.b16 %v3580
    %v4344 = vunpack.c.l.b16 %v3581
    %v4345 = vunpack.c.h.b16 %v3581
    %v4346 = vunpack.c.l.b16 %v3582
    %v4347 = vunpack.c.h.b16 %v3582
    %v4348 = vunpack.c.l.b16 %v3583
    %v4349 = vunpack.c.h.b16 %v3583
    %v4350 = vunpack.c.l.b16 %v3584
    %v4351 = vunpack.c.h.b16 %v3584
    %v4352 = vunpack.c.l.b16 %v3585
    %v4353 = vunpack.c.h.b16 %v3585
    %v4354 = vunpack.c.l.b16 %v3586
    %v4355 = vunpack.c.h.b16 %v3586
    %v4356 = vunpack.c.l.b16 %v3587
    %v4357 = vunpack.c.h.b16 %v3587
    %v4358 = vunpack.c.l.b16 %v3588
    %v4359 = vunpack.c.h.b16 %v3588
    %v4360 = vunpack.c.l.b16 %v3589
    %v4361 = vunpack.c.h.b16 %v3589
    %v4362 = vunpack.c.l.b16 %v3590
    %v4363 = vunpack.c.h.b16 %v3590
    %v4364 = vunpack.c.l.b16 %v3591
    %v4365 = vunpack.c.h.b16 %v3591
    %v4366 = vunpack.c.l.b16 %v3592
    %v4367 = vunpack.c.h.b16 %v3592
    %v4368 = vunpack.c.l.b16 %v3593
    %v4369 = vunpack.c.h.b16 %v3593
    %v4370 = vunpack.c.l.b16 %v3594
    %v4371 = vunpack.c.h.b16 %v3594
    %v4372 = vunpack.c.l.b16 %v3595
    %v4373 = vunpack.c.h.b16 %v3595
    %v4374 = vunpack.c.l.b16 %v3596
    %v4375 = vunpack.c.h.b16 %v3596
    %v4376 = vunpack.c.l.b16 %v3597
    %v4377 = vunpack.c.h.b16 %v3597
    %v4378 = vunpack.c.l.b16 %v3598
    %v4379 = vunpack.c.h.b16 %v3598
    %v4380 = vunpack.c.l.b16 %v3599
    %v4381 = vunpack.c.h.b16 %v3599
    %v4382 = vunpack.c.l.b16 %v3600
    %v4383 = vunpack.c.h.b16 %v3600
    %v4384 = vunpack.c.l.b16 %v3601
    %v4385 = vunpack.c.h.b16 %v3601
    %v4386 = vunpack.c.l.b16 %v3602
    %v4387 = vunpack.c.h.b16 %v3602
    %v4388 = vunpack.c.l.b16 %v3603
    %v4389 = vunpack.c.h.b16 %v3603
    %v4390 = vunpack.c.l.b16 %v3604
    %v4391 = vunpack.c.h.b16 %v3604
    %v4392 = vunpack.c.l.b16 %v3605
    %v4393 = vunpack.c.h.b16 %v3605
    %v4394 = vunpack.c.l.b16 %v3606
    %v4395 = vunpack.c.h.b16 %v3606
    %v4396 = vunpack.c.l.b16 %v3607
    %v4397 = vunpack.c.h.b16 %v3607
    %v4398 = vunpack.c.l.b16 %v3608
    %v4399 = vunpack.c.h.b16 %v3608
    %v4400 = vunpack.c.l.b16 %v3609
    %v4401 = vunpack.c.h.b16 %v3609
    %v4402 = vunpack.c.l.b16 %v3610
    %v4403 = vunpack.c.h.b16 %v3610
    %v4404 = vunpack.c.l.b16 %v3611
    %v4405 = vunpack.c.h.b16 %v3611
    %v4406 = vunpack.c.l.b16 %v3612
    %v4407 = vunpack.c.h.b16 %v3612
    %v4408 = vunpack.c.l.b16 %v3613
    %v4409 = vunpack.c.h.b16 %v3613
    %v4410 = vunpack.c.l.b16 %v3614
    %v4411 = vunpack.c.h.b16 %v3614
    %v4412 = vunpack.c.l.b16 %v3615
    %v4413 = vunpack.c.h.b16 %v3615
    %v4414 = vunpack.c.l.b16 %v3616
    %v4415 = vunpack.c.h.b16 %v3616
    %v4416 = vunpack.c.l.b16 %v3617
    %v4417 = vunpack.c.h.b16 %v3617
    %v4418 = vunpack.c.l.b16 %v3618
    %v4419 = vunpack.c.h.b16 %v3618
    %v4420 = vunpack.c.l.b16 %v3619
    %v4421 = vunpack.c.h.b16 %v3619
    %v4422 = vunpack.c.l.b16 %v3620
    %v4423 = vunpack.c.h.b16 %v3620
    %v4424 = vunpack.c.l.b16 %v3621
    %v4425 = vunpack.c.h.b16 %v3621
    %v4426 = vunpack.c.l.b16 %v3622
    %v4427 = vunpack.c.h.b16 %v3622
    %v4428 = vunpack.c.l.b16 %v3623
    %v4429 = vunpack.c.h.b16 %v3623
    %v4430 = vunpack.c.l.b16 %v3624
    %v4431 = vunpack.c.h.b16 %v3624
    %v4432 = vunpack.c.l.b16 %v3625
    %v4433 = vunpack.c.h.b16 %v3625
    %v4434 = vunpack.c.l.b16 %v3626
    %v4435 = vunpack.c.h.b16 %v3626
    %v4436 = vunpack.c.l.b16 %v3627
    %v4437 = vunpack.c.h.b16 %v3627
    %v4438 = vpack.c.b16 %v3934, %v3926
    %v4439 = vpack.c.b16 %v3935, %v3927
    %v4440 = vpack.c.b16 %v3936, %v3928
    %v4441 = vpack.c.b16 %v3937, %v3929
    %v4442 = vpack.c.b16 %v3938, %v3930
    %v4443 = vpack.c.b16 %v3939, %v3931
    %v4444 = vpack.c.b16 %v3940, %v3932
    %v4445 = vpack.c.b16 %v3941, %v3933
    %v4446 = vpack.c.b16 %v3950, %v3942
    %v4447 = vpack.c.b16 %v3951, %v3943
    %v4448 = vpack.c.b16 %v3952, %v3944
    %v4449 = vpack.c.b16 %v3953, %v3945
    %v4450 = vpack.c.b16 %v3954, %v3946
    %v4451 = vpack.c.b16 %v3955, %v3947
    %v4452 = vpack.c.b16 %v3956, %v3948
    %v4453 = vpack.c.b16 %v3957, %v3949
    %v4454 = vpack.c.b16 %v3966, %v3958
    %v4455 = vpack.c.b16 %v3967, %v3959
    %v4456 = vpack.c.b16 %v3968, %v3960
    %v4457 = vpack.c.b16 %v3969, %v3961
    %v4458 = vpack.c.b16 %v3970, %v3962
    %v4459 = vpack.c.b16 %v3971, %v3963
    %v4460 = vpack.c.b16 %v3972, %v3964
    %v4461 = vpack.c.b16 %v3973, %v3965
    %v4462 = vpack.c.b16 %v3982, %v3974
    %v4463 = vpack.c.b16 %v3983, %v3975
    %v4464 = vpack.c.b16 %v3984, %v3976
    %v4465 = vpack.c.b16 %v3985, %v3977
    %v4466 = vpack.c.b16 %v3986, %v3978
    %v4467 = vpack.c.b16 %v3987, %v3979
    %v4468 = vpack.c.b16 %v3988, %v3980
    %v4469 = vpack.c.b16 %v3989, %v3981
    %v4470 = vpack.c.b16 %v3998, %v3990
    %v4471 = vpack.c.b16 %v3999, %v3991
    %v4472 = vpack.c.b16 %v4000, %v3992
    %v4473 = vpack.c.b16 %v4001, %v3993
    %v4474 = vpack.c.b16 %v4002, %v3994
    %v4475 = vpack.c.b16 %v4003, %v3995
    %v4476 = vpack.c.b16 %v4004, %v3996
    %v4477 = vpack.c.b16 %v4005, %v3997
    %v4478 = vpack.c.b16 %v4014, %v4006
    %v4479 = vpack.c.b16 %v4015, %v4007
    %v4480 = vpack.c.b16 %v4016, %v4008
    %v4481 = vpack.c.b16 %v4017, %v4009
    %v4482 = vpack.c.b16 %v4018, %v4010
    %v4483 = vpack.c.b16 %v4019, %v4011
    %v4484 = vpack.c.b16 %v4020, %v4012
    %v4485 = vpack.c.b16 %v4021, %v4013
    %v4486 = vpack.c.b16 %v4030, %v4022
    %v4487 = vpack.c.b16 %v4031, %v4023
    %v4488 = vpack.c.b16 %v4032, %v4024
    %v4489 = vpack.c.b16 %v4033, %v4025
    %v4490 = vpack.c.b16 %v4034, %v4026
    %v4491 = vpack.c.b16 %v4035, %v4027
    %v4492 = vpack.c.b16 %v4036, %v4028
    %v4493 = vpack.c.b16 %v4037, %v4029
    %v4494 = vpack.c.b16 %v4046, %v4038
    %v4495 = vpack.c.b16 %v4047, %v4039
    %v4496 = vpack.c.b16 %v4048, %v4040
    %v4497 = vpack.c.b16 %v4049, %v4041
    %v4498 = vpack.c.b16 %v4050, %v4042
    %v4499 = vpack.c.b16 %v4051, %v4043
    %v4500 = vpack.c.b16 %v4052, %v4044
    %v4501 = vpack.c.b16 %v4053, %v4045
    %v4502 = vpack.c.b16 %v4062, %v4054
    %v4503 = vpack.c.b16 %v4063, %v4055
    %v4504 = vpack.c.b16 %v4064, %v4056
    %v4505 = vpack.c.b16 %v4065, %v4057
    %v4506 = vpack.c.b16 %v4066, %v4058
    %v4507 = vpack.c.b16 %v4067, %v4059
    %v4508 = vpack.c.b16 %v4068, %v4060
    %v4509 = vpack.c.b16 %v4069, %v4061
    %v4510 = vpack.c.b16 %v4078, %v4070
    %v4511 = vpack.c.b16 %v4079, %v4071
    %v4512 = vpack.c.b16 %v4080, %v4072
    %v4513 = vpack.c.b16 %v4081, %v4073
    %v4514 = vpack.c.b16 %v4082, %v4074
    %v4515 = vpack.c.b16 %v4083, %v4075
    %v4516 = vpack.c.b16 %v4084, %v4076
    %v4517 = vpack.c.b16 %v4085, %v4077
    %v4518 = vpack.c.b16 %v4094, %v4086
    %v4519 = vpack.c.b16 %v4095, %v4087
    %v4520 = vpack.c.b16 %v4096, %v4088
    %v4521 = vpack.c.b16 %v4097, %v4089
    %v4522 = vpack.c.b16 %v4098, %v4090
    %v4523 = vpack.c.b16 %v4099, %v4091
    %v4524 = vpack.c.b16 %v4100, %v4092
    %v4525 = vpack.c.b16 %v4101, %v4093
    %v4526 = vpack.c.b16 %v4110, %v4102
    %v4527 = vpack.c.b16 %v4111, %v4103
    %v4528 = vpack.c.b16 %v4112, %v4104
    %v4529 = vpack.c.b16 %v4113, %v4105
    %v4530 = vpack.c.b16 %v4114, %v4106
    %v4531 = vpack.c.b16 %v4115, %v4107
    %v4532 = vpack.c.b16 %v4116, %v4108
    %v4533 = vpack.c.b16 %v4117, %v4109
    %v4534 = vpack.c.b16 %v4126, %v4118
    %v4535 = vpack.c.b16 %v4127, %v4119
    %v4536 = vpack.c.b16 %v4128, %v4120
    %v4537 = vpack.c.b16 %v4129, %v4121
    %v4538 = vpack.c.b16 %v4130, %v4122
    %v4539 = vpack.c.b16 %v4131, %v4123
    %v4540 = vpack.c.b16 %v4132, %v4124
    %v4541 = vpack.c.b16 %v4133, %v4125
    %v4542 = vpack.c.b16 %v4142, %v4134
    %v4543 = vpack.c.b16 %v4143, %v4135
    %v4544 = vpack.c.b16 %v4144, %v4136
    %v4545 = vpack.c.b16 %v4145, %v4137
    %v4546 = vpack.c.b16 %v4146, %v4138
    %v4547 = vpack.c.b16 %v4147, %v4139
    %v4548 = vpack.c.b16 %v4148, %v4140
    %v4549 = vpack.c.b16 %v4149, %v4141
    %v4550 = vpack.c.b16 %v4158, %v4150
    %v4551 = vpack.c.b16 %v4159, %v4151
    %v4552 = vpack.c.b16 %v4160, %v4152
    %v4553 = vpack.c.b16 %v4161, %v4153
    %v4554 = vpack.c.b16 %v4162, %v4154
    %v4555 = vpack.c.b16 %v4163, %v4155
    %v4556 = vpack.c.b16 %v4164, %v4156
    %v4557 = vpack.c.b16 %v4165, %v4157
    %v4558 = vpack.c.b16 %v4174, %v4166
    %v4559 = vpack.c.b16 %v4175, %v4167
    %v4560 = vpack.c.b16 %v4176, %v4168
    %v4561 = vpack.c.b16 %v4177, %v4169
    %v4562 = vpack.c.b16 %v4178, %v4170
    %v4563 = vpack.c.b16 %v4179, %v4171
    %v4564 = vpack.c.b16 %v4180, %v4172
    %v4565 = vpack.c.b16 %v4181, %v4173
    %v4566 = vpack.c.b16 %v4190, %v4182
    %v4567 = vpack.c.b16 %v4191, %v4183
    %v4568 = vpack.c.b16 %v4192, %v4184
    %v4569 = vpack.c.b16 %v4193, %v4185
    %v4570 = vpack.c.b16 %v4194, %v4186
    %v4571 = vpack.c.b16 %v4195, %v4187
    %v4572 = vpack.c.b16 %v4196, %v4188
    %v4573 = vpack.c.b16 %v4197, %v4189
    %v4574 = vpack.c.b16 %v4206, %v4198
    %v4575 = vpack.c.b16 %v4207, %v4199
    %v4576 = vpack.c.b16 %v4208, %v4200
    %v4577 = vpack.c.b16 %v4209, %v4201
    %v4578 = vpack.c.b16 %v4210, %v4202
    %v4579 = vpack.c.b16 %v4211, %v4203
    %v4580 = vpack.c.b16 %v4212, %v4204
    %v4581 = vpack.c.b16 %v4213, %v4205
    %v4582 = vpack.c.b16 %v4222, %v4214
    %v4583 = vpack.c.b16 %v4223, %v4215
    %v4584 = vpack.c.b16 %v4224, %v4216
    %v4585 = vpack.c.b16 %v4225, %v4217
    %v4586 = vpack.c.b16 %v4226, %v4218
    %v4587 = vpack.c.b16 %v4227, %v4219
    %v4588 = vpack.c.b16 %v4228, %v4220
    %v4589 = vpack.c.b16 %v4229, %v4221
    %v4590 = vpack.c.b16 %v4238, %v4230
    %v4591 = vpack.c.b16 %v4239, %v4231
    %v4592 = vpack.c.b16 %v4240, %v4232
    %v4593 = vpack.c.b16 %v4241, %v4233
    %v4594 = vpack.c.b16 %v4242, %v4234
    %v4595 = vpack.c.b16 %v4243, %v4235
    %v4596 = vpack.c.b16 %v4244, %v4236
    %v4597 = vpack.c.b16 %v4245, %v4237
    %v4598 = vpack.c.b16 %v4254, %v4246
    %v4599 = vpack.c.b16 %v4255, %v4247
    %v4600 = vpack.c.b16 %v4256, %v4248
    %v4601 = vpack.c.b16 %v4257, %v4249
    %v4602 = vpack.c.b16 %v4258, %v4250
    %v4603 = vpack.c.b16 %v4259, %v4251
    %v4604 = vpack.c.b16 %v4260, %v4252
    %v4605 = vpack.c.b16 %v4261, %v4253
    %v4606 = vpack.c.b16 %v4270, %v4262
    %v4607 = vpack.c.b16 %v4271, %v4263
    %v4608 = vpack.c.b16 %v4272, %v4264
    %v4609 = vpack.c.b16 %v4273, %v4265
    %v4610 = vpack.c.b16 %v4274, %v4266
    %v4611 = vpack.c.b16 %v4275, %v4267
    %v4612 = vpack.c.b16 %v4276, %v4268
    %v4613 = vpack.c.b16 %v4277, %v4269
    %v4614 = vpack.c.b16 %v4286, %v4278
    %v4615 = vpack.c.b16 %v4287, %v4279
    %v4616 = vpack.c.b16 %v4288, %v4280
    %v4617 = vpack.c.b16 %v4289, %v4281
    %v4618 = vpack.c.b16 %v4290, %v4282
    %v4619 = vpack.c.b16 %v4291, %v4283
    %v4620 = vpack.c.b16 %v4292, %v4284
    %v4621 = vpack.c.b16 %v4293, %v4285
    %v4622 = vpack.c.b16 %v4302, %v4294
    %v4623 = vpack.c.b16 %v4303, %v4295
    %v4624 = vpack.c.b16 %v4304, %v4296
    %v4625 = vpack.c.b16 %v4305, %v4297
    %v4626 = vpack.c.b16 %v4306, %v4298
    %v4627 = vpack.c.b16 %v4307, %v4299
    %v4628 = vpack.c.b16 %v4308, %v4300
    %v4629 = vpack.c.b16 %v4309, %v4301
    %v4630 = vpack.c.b16 %v4318, %v4310
    %v4631 = vpack.c.b16 %v4319, %v4311
    %v4632 = vpack.c.b16 %v4320, %v4312
    %v4633 = vpack.c.b16 %v4321, %v4313
    %v4634 = vpack.c.b16 %v4322, %v4314
    %v4635 = vpack.c.b16 %v4323, %v4315
    %v4636 = vpack.c.b16 %v4324, %v4316
    %v4637 = vpack.c.b16 %v4325, %v4317
    %v4638 = vpack.c.b16 %v4334, %v4326
    %v4639 = vpack.c.b16 %v4335, %v4327
    %v4640 = vpack.c.b16 %v4336, %v4328
    %v4641 = vpack.c.b16 %v4337, %v4329
    %v4642 = vpack.c.b16 %v4338, %v4330
    %v4643 = vpack.c.b16 %v4339, %v4331
    %v4644 = vpack.c.b16 %v4340, %v4332
    %v4645 = vpack.c.b16 %v4341, %v4333
    %v4646 = vpack.c.b16 %v4350, %v4342
    %v4647 = vpack.c.b16 %v4351, %v4343
    %v4648 = vpack.c.b16 %v4352, %v4344
    %v4649 = vpack.c.b16 %v4353, %v4345
    %v4650 = vpack.c.b16 %v4354, %v4346
    %v4651 = vpack.c.b16 %v4355, %v4347
    %v4652 = vpack.c.b16 %v4356, %v4348
    %v4653 = vpack.c.b16 %v4357, %v4349
    %v4654 = vpack.c.b16 %v4366, %v4358
    %v4655 = vpack.c.b16 %v4367, %v4359
    %v4656 = vpack.c.b16 %v4368, %v4360
    %v4657 = vpack.c.b16 %v4369, %v4361
    %v4658 = vpack.c.b16 %v4370, %v4362
    %v4659 = vpack.c.b16 %v4371, %v4363
    %v4660 = vpack.c.b16 %v4372, %v4364
    %v4661 = vpack.c.b16 %v4373, %v4365
    %v4662 = vpack.c.b16 %v4382, %v4374
    %v4663 = vpack.c.b16 %v4383, %v4375
    %v4664 = vpack.c.b16 %v4384, %v4376
    %v4665 = vpack.c.b16 %v4385, %v4377
    %v4666 = vpack.c.b16 %v4386, %v4378
    %v4667 = vpack.c.b16 %v4387, %v4379
    %v4668 = vpack.c.b16 %v4388, %v4380
    %v4669 = vpack.c.b16 %v4389, %v4381
    %v4670 = vpack.c.b16 %v4398, %v4390
    %v4671 = vpack.c.b16 %v4399, %v4391
    %v4672 = vpack.c.b16 %v4400, %v4392
    %v4673 = vpack.c.b16 %v4401, %v4393
    %v4674 = vpack.c.b16 %v4402, %v4394
    %v4675 = vpack.c.b16 %v4403, %v4395
    %v4676 = vpack.c.b16 %v4404, %v4396
    %v4677 = vpack.c.b16 %v4405, %v4397
    %v4678 = vpack.c.b16 %v4414, %v4406
    %v4679 = vpack.c.b16 %v4415, %v4407
    %v4680 = vpack.c.b16 %v4416, %v4408
    %v4681 = vpack.c.b16 %v4417, %v4409
    %v4682 = vpack.c.b16 %v4418, %v4410
    %v4683 = vpack.c.b16 %v4419, %v4411
    %v4684 = vpack.c.b16 %v4420, %v4412
    %v4685 = vpack.c.b16 %v4421, %v4413
    %v4686 = vpack.c.b16 %v4430, %v4422
    %v4687 = vpack.c.b16 %v4431, %v4423
    %v4688 = vpack.c.b16 %v4432, %v4424
    %v4689 = vpack.c.b16 %v4433, %v4425
    %v4690 = vpack.c.b16 %v4434, %v4426
    %v4691 = vpack.c.b16 %v4435, %v4427
    %v4692 = vpack.c.b16 %v4436, %v4428
    %v4693 = vpack.c.b16 %v4437, %v4429
    %4950 = vmatprep.subr.bf16.mxu0 %v4439
    %4951 = vmatpush1.bf16.msra.mxu0 %v4438
    %4952 = vmatprep.subr.bf16.mxu0 %v4447
    %4953 = vmatpush1.bf16.msra.mxu0 %v4446
    %4954 = vmatprep.subr.bf16.mxu0 %v4455
    %4955 = vmatpush1.bf16.msra.mxu0 %v4454
    %4956 = vmatprep.subr.bf16.mxu0 %v4463
    %4957 = vmatpush1.bf16.msra.mxu0 %v4462
    %4958 = vmatprep.subr.bf16.mxu0 %v4471
    %4959 = vmatpush1.bf16.msra.mxu0 %v4470
    %4960 = vmatprep.subr.bf16.mxu0 %v4479
    %4961 = vmatpush1.bf16.msra.mxu0 %v4478
    %4962 = vmatprep.subr.bf16.mxu0 %v4487
    %4963 = vmatpush1.bf16.msra.mxu0 %v4486
    %4964 = vmatprep.subr.bf16.mxu0 %v4495
    %4965 = vmatpush1.bf16.msra.mxu0 %v4494
    %4966 = vmatprep.subr.bf16.mxu0 %v4503
    %4967 = vmatpush1.bf16.msra.mxu0 %v4502
    %4968 = vmatprep.subr.bf16.mxu0 %v4511
    %4969 = vmatpush1.bf16.msra.mxu0 %v4510
    %4970 = vmatprep.subr.bf16.mxu0 %v4519
    %4971 = vmatpush1.bf16.msra.mxu0 %v4518
    %4972 = vmatprep.subr.bf16.mxu0 %v4527
    %4973 = vmatpush1.bf16.msra.mxu0 %v4526
    %4974 = vmatprep.subr.bf16.mxu0 %v4535
    %4975 = vmatpush1.bf16.msra.mxu0 %v4534
    %4976 = vmatprep.subr.bf16.mxu0 %v4543
    %4977 = vmatpush1.bf16.msra.mxu0 %v4542
    %4978 = vmatprep.subr.bf16.mxu0 %v4551
    %4979 = vmatpush1.bf16.msra.mxu0 %v4550
    %4980 = vmatprep.subr.bf16.mxu0 %v4559
    %4981 = vmatpush1.bf16.msra.mxu0 %v4558
    %4982 = vmatprep.mubr.bf16.mxu0 %v3369
    %4983 = vmatmul.mubr.bf16.gmra.mrb[0].mxu0 %v3368
    %v4984 = vpop.f32.mrb[0].mxu0
    %v4985 = vadd.f32 %v3633, %v4984
    %v4986 = vpop.f32.mrb[0].mxu0
    %v4987 = vadd.f32 %v3637, %v4986
    %v4988 = vpop.f32.mrb[0].mxu0
    %v4989 = vpop.f32.mrb[0].mxu0
    %4990 = vdwg.mxu0
    %4991 = vmatprep.subr.bf16.mxu0 %v4567
    %4992 = vmatpush1.bf16.msra.mxu0 %v4566
    %4993 = vmatprep.subr.bf16.mxu0 %v4575
    %4994 = vmatpush1.bf16.msra.mxu0 %v4574
    %4995 = vmatprep.subr.bf16.mxu0 %v4583
    %4996 = vmatpush1.bf16.msra.mxu0 %v4582
    %4997 = vmatprep.subr.bf16.mxu0 %v4591
    %4998 = vmatpush1.bf16.msra.mxu0 %v4590
    %4999 = vmatprep.subr.bf16.mxu0 %v4599
    %5000 = vmatpush1.bf16.msra.mxu0 %v4598
    %5001 = vmatprep.subr.bf16.mxu0 %v4607
    %5002 = vmatpush1.bf16.msra.mxu0 %v4606
    %5003 = vmatprep.subr.bf16.mxu0 %v4615
    %5004 = vmatpush1.bf16.msra.mxu0 %v4614
    %5005 = vmatprep.subr.bf16.mxu0 %v4623
    %5006 = vmatpush1.bf16.msra.mxu0 %v4622
    %5007 = vmatprep.subr.bf16.mxu0 %v4631
    %5008 = vmatpush1.bf16.msra.mxu0 %v4630
    %5009 = vmatprep.subr.bf16.mxu0 %v4639
    %5010 = vmatpush1.bf16.msra.mxu0 %v4638
    %5011 = vmatprep.subr.bf16.mxu0 %v4647
    %5012 = vmatpush1.bf16.msra.mxu0 %v4646
    %5013 = vmatprep.subr.bf16.mxu0 %v4655
    %5014 = vmatpush1.bf16.msra.mxu0 %v4654
    %5015 = vmatprep.subr.bf16.mxu0 %v4663
    %5016 = vmatpush1.bf16.msra.mxu0 %v4662
    %5017 = vmatprep.subr.bf16.mxu0 %v4671
    %5018 = vmatpush1.bf16.msra.mxu0 %v4670
    %5019 = vmatprep.subr.bf16.mxu0 %v4679
    %5020 = vmatpush1.bf16.msra.mxu0 %v4678
    %5021 = vmatprep.subr.bf16.mxu0 %v4687
    %5022 = vmatpush1.bf16.msra.mxu0 %v4686
    %5023 = vmatprep.mubr.bf16.mxu0 %v3371
    %5024 = vmatmul.mubr.bf16.gmra.mrb[0].mxu0 %v3370
    %v5025 = vpop.f32.mrb[0].mxu0
    %v5026 = vadd.f32 %v4985, %v5025
    %v5027 = vpop.f32.mrb[0].mxu0
    %v5028 = vadd.f32 %v4987, %v5027
    %v5029 = vpop.f32.mrb[0].mxu0
    %v5030 = vpop.f32.mrb[0].mxu0
    %5031 = vdwg.mxu0
    %5032 = vmatprep.subr.bf16.mxu0 %v4441
    %5033 = vmatpush1.bf16.msra.mxu0 %v4440
    %5034 = vmatprep.subr.bf16.mxu0 %v4449
    %5035 = vmatpush1.bf16.msra.mxu0 %v4448
    %5036 = vmatprep.subr.bf16.mxu0 %v4457
    %5037 = vmatpush1.bf16.msra.mxu0 %v4456
    %5038 = vmatprep.subr.bf16.mxu0 %v4465
    %5039 = vmatpush1.bf16.msra.mxu0 %v4464
    %5040 = vmatprep.subr.bf16.mxu0 %v4473
    %5041 = vmatpush1.bf16.msra.mxu0 %v4472
    %5042 = vmatprep.subr.bf16.mxu0 %v4481
    %5043 = vmatpush1.bf16.msra.mxu0 %v4480
    %5044 = vmatprep.subr.bf16.mxu0 %v4489
    %5045 = vmatpush1.bf16.msra.mxu0 %v4488
    %5046 = vmatprep.subr.bf16.mxu0 %v4497
    %5047 = vmatpush1.bf16.msra.mxu0 %v4496
    %5048 = vmatprep.subr.bf16.mxu0 %v4505
    %5049 = vmatpush1.bf16.msra.mxu0 %v4504
    %5050 = vmatprep.subr.bf16.mxu0 %v4513
    %5051 = vmatpush1.bf16.msra.mxu0 %v4512
    %5052 = vmatprep.subr.bf16.mxu0 %v4521
    %5053 = vmatpush1.bf16.msra.mxu0 %v4520
    %5054 = vmatprep.subr.bf16.mxu0 %v4529
    %5055 = vmatpush1.bf16.msra.mxu0 %v4528
    %5056 = vmatprep.subr.bf16.mxu0 %v4537
    %5057 = vmatpush1.bf16.msra.mxu0 %v4536
    %5058 = vmatprep.subr.bf16.mxu0 %v4545
    %5059 = vmatpush1.bf16.msra.mxu0 %v4544
    %5060 = vmatprep.subr.bf16.mxu0 %v4553
    %5061 = vmatpush1.bf16.msra.mxu0 %v4552
    %5062 = vmatprep.subr.bf16.mxu0 %v4561
    %5063 = vmatpush1.bf16.msra.mxu0 %v4560
    %5064 = vmatprep.mubr.bf16.mxu0 %v3369
    %5065 = vmatmul.mubr.bf16.gmra.mrb[0].mxu0 %v3368
    %v5066 = vpop.f32.mrb[0].mxu0
    %v5067 = vadd.f32 %v3641, %v5066
    %v5068 = vpop.f32.mrb[0].mxu0
    %v5069 = vadd.f32 %v3645, %v5068
    %v5070 = vpop.f32.mrb[0].mxu0
    %v5071 = vpop.f32.mrb[0].mxu0
    %5072 = vdwg.mxu0
    %5073 = vmatprep.subr.bf16.mxu0 %v4569
    %5074 = vmatpush1.bf16.msra.mxu0 %v4568
    %5075 = vmatprep.subr.bf16.mxu0 %v4577
    %5076 = vmatpush1.bf16.msra.mxu0 %v4576
    %5077 = vmatprep.subr.bf16.mxu0 %v4585
    %5078 = vmatpush1.bf16.msra.mxu0 %v4584
    %5079 = vmatprep.subr.bf16.mxu0 %v4593
    %5080 = vmatpush1.bf16.msra.mxu0 %v4592
    %5081 = vmatprep.subr.bf16.mxu0 %v4601
    %5082 = vmatpush1.bf16.msra.mxu0 %v4600
    %5083 = vmatprep.subr.bf16.mxu0 %v4609
    %5084 = vmatpush1.bf16.msra.mxu0 %v4608
    %5085 = vmatprep.subr.bf16.mxu0 %v4617
    %5086 = vmatpush1.bf16.msra.mxu0 %v4616
    %5087 = vmatprep.subr.bf16.mxu0 %v4625
    %5088 = vmatpush1.bf16.msra.mxu0 %v4624
    %5089 = vmatprep.subr.bf16.mxu0 %v4633
    %5090 = vmatpush1.bf16.msra.mxu0 %v4632
    %5091 = vmatprep.subr.bf16.mxu0 %v4641
    %5092 = vmatpush1.bf16.msra.mxu0 %v4640
    %5093 = vmatprep.subr.bf16.mxu0 %v4649
    %5094 = vmatpush1.bf16.msra.mxu0 %v4648
    %5095 = vmatprep.subr.bf16.mxu0 %v4657
    %5096 = vmatpush1.bf16.msra.mxu0 %v4656
    %5097 = vmatprep.subr.bf16.mxu0 %v4665
    %5098 = vmatpush1.bf16.msra.mxu0 %v4664
    %5099 = vmatprep.subr.bf16.mxu0 %v4673
    %5100 = vmatpush1.bf16.msra.mxu0 %v4672
    %5101 = vmatprep.subr.bf16.mxu0 %v4681
    %5102 = vmatpush1.bf16.msra.mxu0 %v4680
    %5103 = vmatprep.subr.bf16.mxu0 %v4689
    %5104 = vmatpush1.bf16.msra.mxu0 %v4688
    %5105 = vmatprep.mubr.bf16.mxu0 %v3371
    %5106 = vmatmul.mubr.bf16.gmra.mrb[0].mxu0 %v3370
    %v5107 = vpop.f32.mrb[0].mxu0
    %v5108 = vadd.f32 %v5067, %v5107
    %v5109 = vpop.f32.mrb[0].mxu0
    %v5110 = vadd.f32 %v5069, %v5109
    %v5111 = vpop.f32.mrb[0].mxu0
    %v5112 = vpop.f32.mrb[0].mxu0
    %5113 = vdwg.mxu0
    %5114 = vmatprep.subr.bf16.mxu0 %v4443
    %5115 = vmatpush1.bf16.msra.mxu0 %v4442
    %5116 = vmatprep.subr.bf16.mxu0 %v4451
    %5117 = vmatpush1.bf16.msra.mxu0 %v4450
    %5118 = vmatprep.subr.bf16.mxu0 %v4459
    %5119 = vmatpush1.bf16.msra.mxu0 %v4458
    %5120 = vmatprep.subr.bf16.mxu0 %v4467
    %5121 = vmatpush1.bf16.msra.mxu0 %v4466
    %5122 = vmatprep.subr.bf16.mxu0 %v4475
    %5123 = vmatpush1.bf16.msra.mxu0 %v4474
    %5124 = vmatprep.subr.bf16.mxu0 %v4483
    %5125 = vmatpush1.bf16.msra.mxu0 %v4482
    %5126 = vmatprep.subr.bf16.mxu0 %v4491
    %5127 = vmatpush1.bf16.msra.mxu0 %v4490
    %5128 = vmatprep.subr.bf16.mxu0 %v4499
    %5129 = vmatpush1.bf16.msra.mxu0 %v4498
    %5130 = vmatprep.subr.bf16.mxu0 %v4507
    %5131 = vmatpush1.bf16.msra.mxu0 %v4506
    %5132 = vmatprep.subr.bf16.mxu0 %v4515
    %5133 = vmatpush1.bf16.msra.mxu0 %v4514
    %5134 = vmatprep.subr.bf16.mxu0 %v4523
    %5135 = vmatpush1.bf16.msra.mxu0 %v4522
    %5136 = vmatprep.subr.bf16.mxu0 %v4531
    %5137 = vmatpush1.bf16.msra.mxu0 %v4530
    %5138 = vmatprep.subr.bf16.mxu0 %v4539
    %5139 = vmatpush1.bf16.msra.mxu0 %v4538
    %5140 = vmatprep.subr.bf16.mxu0 %v4547
    %5141 = vmatpush1.bf16.msra.mxu0 %v4546
    %5142 = vmatprep.subr.bf16.mxu0 %v4555
    %5143 = vmatpush1.bf16.msra.mxu0 %v4554
    %5144 = vmatprep.subr.bf16.mxu0 %v4563
    %5145 = vmatpush1.bf16.msra.mxu0 %v4562
    %5146 = vmatprep.mubr.bf16.mxu0 %v3369
    %5147 = vmatmul.mubr.bf16.gmra.mrb[0].mxu0 %v3368
    %v5148 = vpop.f32.mrb[0].mxu0
    %v5149 = vadd.f32 %v3649, %v5148
    %v5150 = vpop.f32.mrb[0].mxu0
    %v5151 = vadd.f32 %v3653, %v5150
    %v5152 = vpop.f32.mrb[0].mxu0
    %v5153 = vpop.f32.mrb[0].mxu0
    %5154 = vdwg.mxu0
    %5155 = vmatprep.subr.bf16.mxu0 %v4571
    %5156 = vmatpush1.bf16.msra.mxu0 %v4570
    %5157 = vmatprep.subr.bf16.mxu0 %v4579
    %5158 = vmatpush1.bf16.msra.mxu0 %v4578
    %5159 = vmatprep.subr.bf16.mxu0 %v4587
    %5160 = vmatpush1.bf16.msra.mxu0 %v4586
    %5161 = vmatprep.subr.bf16.mxu0 %v4595
    %5162 = vmatpush1.bf16.msra.mxu0 %v4594
    %5163 = vmatprep.subr.bf16.mxu0 %v4603
    %5164 = vmatpush1.bf16.msra.mxu0 %v4602
    %5165 = vmatprep.subr.bf16.mxu0 %v4611
    %5166 = vmatpush1.bf16.msra.mxu0 %v4610
    %5167 = vmatprep.subr.bf16.mxu0 %v4619
    %5168 = vmatpush1.bf16.msra.mxu0 %v4618
    %5169 = vmatprep.subr.bf16.mxu0 %v4627
    %5170 = vmatpush1.bf16.msra.mxu0 %v4626
    %5171 = vmatprep.subr.bf16.mxu0 %v4635
    %5172 = vmatpush1.bf16.msra.mxu0 %v4634
    %5173 = vmatprep.subr.bf16.mxu0 %v4643
    %5174 = vmatpush1.bf16.msra.mxu0 %v4642
    %5175 = vmatprep.subr.bf16.mxu0 %v4651
    %5176 = vmatpush1.bf16.msra.mxu0 %v4650
    %5177 = vmatprep.subr.bf16.mxu0 %v4659
    %5178 = vmatpush1.bf16.msra.mxu0 %v4658
    %5179 = vmatprep.subr.bf16.mxu0 %v4667
    %5180 = vmatpush1.bf16.msra.mxu0 %v4666
    %5181 = vmatprep.subr.bf16.mxu0 %v4675
    %5182 = vmatpush1.bf16.msra.mxu0 %v4674
    %5183 = vmatprep.subr.bf16.mxu0 %v4683
    %5184 = vmatpush1.bf16.msra.mxu0 %v4682
    %5185 = vmatprep.subr.bf16.mxu0 %v4691
    %5186 = vmatpush1.bf16.msra.mxu0 %v4690
    %5187 = vmatprep.mubr.bf16.mxu0 %v3371
    %5188 = vmatmul.mubr.bf16.gmra.mrb[0].mxu0 %v3370
    %v5189 = vpop.f32.mrb[0].mxu0
    %v5190 = vadd.f32 %v5149, %v5189
    %v5191 = vpop.f32.mrb[0].mxu0
    %v5192 = vadd.f32 %v5151, %v5191
    %v5193 = vpop.f32.mrb[0].mxu0
    %v5194 = vpop.f32.mrb[0].mxu0
    %5195 = vdwg.mxu0
    %5196 = vmatprep.subr.bf16.mxu0 %v4445
    %5197 = vmatpush1.bf16.msra.mxu0 %v4444
    %5198 = vmatprep.subr.bf16.mxu0 %v4453
    %5199 = vmatpush1.bf16.msra.mxu0 %v4452
    %5200 = vmatprep.subr.bf16.mxu0 %v4461
    %5201 = vmatpush1.bf16.msra.mxu0 %v4460
    %5202 = vmatprep.subr.bf16.mxu0 %v4469
    %5203 = vmatpush1.bf16.msra.mxu0 %v4468
    %5204 = vmatprep.subr.bf16.mxu0 %v4477
    %5205 = vmatpush1.bf16.msra.mxu0 %v4476
    %5206 = vmatprep.subr.bf16.mxu0 %v4485
    %5207 = vmatpush1.bf16.msra.mxu0 %v4484
    %5208 = vmatprep.subr.bf16.mxu0 %v4493
    %5209 = vmatpush1.bf16.msra.mxu0 %v4492
    %5210 = vmatprep.subr.bf16.mxu0 %v4501
    %5211 = vmatpush1.bf16.msra.mxu0 %v4500
    %5212 = vmatprep.subr.bf16.mxu0 %v4509
    %5213 = vmatpush1.bf16.msra.mxu0 %v4508
    %5214 = vmatprep.subr.bf16.mxu0 %v4517
    %5215 = vmatpush1.bf16.msra.mxu0 %v4516
    %5216 = vmatprep.subr.bf16.mxu0 %v4525
    %5217 = vmatpush1.bf16.msra.mxu0 %v4524
    %5218 = vmatprep.subr.bf16.mxu0 %v4533
    %5219 = vmatpush1.bf16.msra.mxu0 %v4532
    %5220 = vmatprep.subr.bf16.mxu0 %v4541
    %5221 = vmatpush1.bf16.msra.mxu0 %v4540
    %5222 = vmatprep.subr.bf16.mxu0 %v4549
    %5223 = vmatpush1.bf16.msra.mxu0 %v4548
    %5224 = vmatprep.subr.bf16.mxu0 %v4557
    %5225 = vmatpush1.bf16.msra.mxu0 %v4556
    %5226 = vmatprep.subr.bf16.mxu0 %v4565
    %5227 = vmatpush1.bf16.msra.mxu0 %v4564
    %5228 = vmatprep.mubr.bf16.mxu0 %v3369
    %5229 = vmatmul.mubr.bf16.gmra.mrb[0].mxu0 %v3368
    %v5230 = vpop.f32.mrb[0].mxu0
    %v5231 = vadd.f32 %v3657, %v5230
    %v5232 = vpop.f32.mrb[0].mxu0
    %v5233 = vadd.f32 %v3661, %v5232
    %v5234 = vpop.f32.mrb[0].mxu0
    %v5235 = vpop.f32.mrb[0].mxu0
    %5236 = vdwg.mxu0
    %5237 = vmatprep.subr.bf16.mxu0 %v4573
    %5238 = vmatpush1.bf16.msra.mxu0 %v4572
    %5239 = vmatprep.subr.bf16.mxu0 %v4581
    %5240 = vmatpush1.bf16.msra.mxu0 %v4580
    %5241 = vmatprep.subr.bf16.mxu0 %v4589
    %5242 = vmatpush1.bf16.msra.mxu0 %v4588
    %5243 = vmatprep.subr.bf16.mxu0 %v4597
    %5244 = vmatpush1.bf16.msra.mxu0 %v4596
    %5245 = vmatprep.subr.bf16.mxu0 %v4605
    %5246 = vmatpush1.bf16.msra.mxu0 %v4604
    %5247 = vmatprep.subr.bf16.mxu0 %v4613
    %5248 = vmatpush1.bf16.msra.mxu0 %v4612
    %5249 = vmatprep.subr.bf16.mxu0 %v4621
    %5250 = vmatpush1.bf16.msra.mxu0 %v4620
    %5251 = vmatprep.subr.bf16.mxu0 %v4629
    %5252 = vmatpush1.bf16.msra.mxu0 %v4628
    %5253 = vmatprep.subr.bf16.mxu0 %v4637
    %5254 = vmatpush1.bf16.msra.mxu0 %v4636
    %5255 = vmatprep.subr.bf16.mxu0 %v4645
    %5256 = vmatpush1.bf16.msra.mxu0 %v4644
    %5257 = vmatprep.subr.bf16.mxu0 %v4653
    %5258 = vmatpush1.bf16.msra.mxu0 %v4652
    %5259 = vmatprep.subr.bf16.mxu0 %v4661
    %5260 = vmatpush1.bf16.msra.mxu0 %v4660
    %5261 = vmatprep.subr.bf16.mxu0 %v4669
    %5262 = vmatpush1.bf16.msra.mxu0 %v4668
    %5263 = vmatprep.subr.bf16.mxu0 %v4677
    %5264 = vmatpush1.bf16.msra.mxu0 %v4676
    %5265 = vmatprep.subr.bf16.mxu0 %v4685
    %5266 = vmatpush1.bf16.msra.mxu0 %v4684
    %5267 = vmatprep.subr.bf16.mxu0 %v4693
    %5268 = vmatpush1.bf16.msra.mxu0 %v4692
    %5269 = vmatprep.mubr.bf16.mxu0 %v3371
    %5270 = vmatmul.mubr.bf16.gmra.mrb[0].mxu0 %v3370
    %v5271 = vpop.f32.mrb[0].mxu0
    %v5272 = vadd.f32 %v5231, %v5271
    %v5273 = vpop.f32.mrb[0].mxu0
    %v5274 = vadd.f32 %v5233, %v5273
    %v5275 = vpop.f32.mrb[0].mxu0
    %v5276 = vpop.f32.mrb[0].mxu0
    %5277 = vdwg.mxu0
    %5278 = vst [vmem:[#allocation14] sm:$0xff] %v5026
    %5279 = vst [vmem:[#allocation14 + $0x8] sm:$0xff] %v5028
    %5280 = vst [vmem:[#allocation14 + $0x10] sm:$0xff] %v5108
    %5281 = vst [vmem:[#allocation14 + $0x18] sm:$0xff] %v5110
    %5282 = vst [vmem:[#allocation14 + $0x20] sm:$0xff] %v5190
    %5283 = vst [vmem:[#allocation14 + $0x28] sm:$0xff] %v5192
    %5284 = vst [vmem:[#allocation14 + $0x30] sm:$0xff] %v5272
    %5285 = vst [vmem:[#allocation14 + $0x38] sm:$0xff] %v5274
    // Predicated region
    $region82: #{tpu_custom_call.1} parent=1 // pred_check
      _
    $region83: #{tpu_custom_call.1} parent=1 // pred_check_branch
      %5287 = sbr.rel (0) target = $region85
    $region84: #{tpu_custom_call.1} parent=1 // pred_region
      %s5289 = ssub.s32 1024, 1024
      %5290 = vsyncadd [#allocation4], %s5289
      %s5292 = sshll.u32 [#allocation14], 4
      %s5293 = int_to_ptr.vmem [resolvable:$true] %s5292
      %5295 = dma.vmem_to_hbm [thread:$0]  %s5293, 1024, %s13, [#allocation4]
    $region85: #{tpu_custom_call.1} parent=1 // pred_fallthru
      _
    // Predicated region
    $region86: #{tpu_custom_call.1} parent=1 // pred_check
      _
    $region87: #{tpu_custom_call.1} parent=1 // pred_check_branch
      %5297 = sbr.rel (0) target = $region89
    $region88: #{tpu_custom_call.1} parent=1 // pred_region
      %5298 = dma.done [#allocation4], 1024
    $region89: #{tpu_custom_call.1} parent=1 // pred_fallthru
      _
    %5299 = vsyncpa [#allocation3], 1
    %5300 = vsyncpa [#allocation6], 1
    %5301 = vsyncpa [#allocation9], 1
    %5302 = vsyncpa [#allocation12], 1
    %5303 = vsyncpa [#allocation4], 1

</llo_original>
